<compile_context>
chip_gen: v7x
topology: tpu7x:2x2x1
jax: 0.10.0
libtpu: 0.0.40
codegen_flags: <defaults>
</compile_context>

<pallas_src>
import functools

import jax
import jax.numpy as jnp
import numpy as np
from jax.experimental import pallas as pl
from jax.experimental.pallas import tpu as pltpu

K1, K2, K3 = 3, 6, 12            # kernel_size = [3, 6, 12]
BN_EPS = 1e-5
MAX_LEFT = (K3 - 1) // 2         # global left pad (largest kernel) = 5
MAX_RIGHT = (K3 - 1) - MAX_LEFT  # = 6
HALO = 128                       # lane-aligned halo block width (>= K3 - 1)


def _vmem_limit_bytes():
    """Per-generation VMEM budget (≈3/4 of physical, capped at 96 MiB)."""
    cap = 64 * 1024 * 1024       # safe fallback (v7x physical size)
    try:
        cap = int(getattr(pltpu.get_tpu_info(), "vmem_capacity_bytes", cap))
    except Exception:
        pass
    return max(32 * 1024 * 1024, min((cap * 3) // 4, 96 * 1024 * 1024))


_VMEM_LIMIT = _vmem_limit_bytes()


# --------------------------- shared in-kernel helpers -------------------------
def _conv_tile(xm_ref, xh_ref, wf_ref, col_scr):
    """Fused 3-branch conv for one (batch, L-tile): in-kernel im2col + one dot.

    xm_ref : (1, Cin, TL)      aligned main tile of the zero-padded input row
    xh_ref : (1, Cin, 128)     aligned halo tile (the next 128 columns)
    wf_ref : (3*Cout, K3*Cin)  fused conv weight (taps at their 'same' offsets)
    col_scr: (K3*Cin, TL)      VMEM scratch for the im2col operand
    """
    cin, tl = xm_ref.shape[1], xm_ref.shape[2]
    win = jnp.concatenate([xm_ref[0], xh_ref[0]], axis=1)        # (Cin, TL+128)
    for g in range(K3):                                          # 12 static taps
        col_scr[g * cin:(g + 1) * cin, :] = win[:, g:g + tl]
    # (3*Cout, K3*Cin) @ (K3*Cin, TL) -> (3*Cout, TL), L on the lane axis.
    return jnp.dot(wf_ref[...], col_scr[...], preferred_element_type=jnp.float32)


def _mask_pad(y, tile_l, l_true, mask_cols):
    """Zero out columns beyond the true sequence length (static no-op if unneeded)."""
    if not mask_cols:
        return y
    col = (jax.lax.broadcasted_iota(jnp.int32, (1, tile_l), 1)
           + pl.program_id(1) * tile_l)
    return jnp.where(col < l_true, y, 0.0)


# ------------------- pass 1: fused conv -> per-batch BN moments ---------------
def stats_kernel(xm_ref, xh_ref, wf_ref, sum_ref, sumsq_ref, col_scr, *,
                 l_true, tile_l, mask_cols):
    @pl.when(pl.program_id(1) == 0)
    def _init():
        sum_ref[...] = jnp.zeros_like(sum_ref)
        sumsq_ref[...] = jnp.zeros_like(sumsq_ref)

    y = _conv_tile(xm_ref, xh_ref, wf_ref, col_scr)
    y = _mask_pad(y, tile_l, l_true, mask_cols)
    sum_ref[0] = sum_ref[0] + jnp.sum(y, axis=1, keepdims=True)
    sumsq_ref[0] = sumsq_ref[0] + jnp.sum(y * y, axis=1, keepdims=True)


# --------- pass 2: recompute conv, BN+ReLU, per-batch SE pool accumulation ----
def pool_kernel(xm_ref, xh_ref, wf_ref, scale_ref, shift_ref, psum_ref, col_scr, *,
                l_true, tile_l, mask_cols):
    @pl.when(pl.program_id(1) == 0)
    def _init():
        psum_ref[...] = jnp.zeros_like(psum_ref)

    y = _conv_tile(xm_ref, xh_ref, wf_ref, col_scr)
    out = jnp.maximum(y * scale_ref[...] + shift_ref[...], 0.0)
    out = _mask_pad(out, tile_l, l_true, mask_cols)
    psum_ref[0] = psum_ref[0] + jnp.sum(out, axis=1, keepdims=True)


# -------- pass 3: recompute conv, BN+ReLU, apply SE gate, write output --------
def apply_kernel(xm_ref, xh_ref, wf_ref, scale_ref, shift_ref, gate_ref, out_ref,
                 col_scr):
    y = _conv_tile(xm_ref, xh_ref, wf_ref, col_scr)
    out = jnp.maximum(y * scale_ref[...] + shift_ref[...], 0.0)
    out_ref[0] = out * gate_ref[0]                # padded columns sliced off later


# ------------------------------- wrapper --------------------------------------
def _fused_weight(w1, w2, w3):
    """Assemble (3*Cout, K3*Cin) fused conv weight ('same' offsets per branch)."""
    Cin = w1.shape[1]

    def place(w, k):
        off = MAX_LEFT - (k - 1) // 2            # PyTorch 'same': left = (k-1)//2
        full = jnp.zeros((K3, Cin, w.shape[2]), w.dtype).at[off:off + k].set(w)
        return full.reshape(K3 * Cin, -1).T      # (Cout, K3*Cin), row = g*Cin + c

    return jnp.concatenate([place(w1, K1), place(w2, K2), place(w3, K3)], axis=0)


def _tile_plan(L):
    lp128 = ((L + 127) // 128) * 128
    tl = 2048 if lp128 >= 2048 else lp128        # largest TL, up to 2048 lanes
    lp = ((L + tl - 1) // tl) * tl
    return tl, lp


@jax.jit
def macnn_block_forward(x, params):
    """x: (B, C_in, L) float32 (NCW). Returns (B, 3*C_out, L) (NCW)."""
    B, Cin, L = x.shape
    Cout = params["w1"].shape[2]
    C3 = 3 * Cout
    KC = K3 * Cin

    TL, Lp = _tile_plan(L)
    NLT = Lp // TL
    W = Lp + TL                      # every main tile + 128-col halo stays in-bounds
    mask_cols = (Lp != L)

    wf = _fused_weight(params["w1"], params["w2"], params["w3"])
    # conv biases b1/b2/b3 intentionally dropped: a per-channel constant cancels
    # exactly under training-mode BatchNorm mean subtraction.

    # zero-padded input row: [MAX_LEFT zeros | x | zeros]  -> (B, Cin, W)
    xpad = jnp.pad(x, ((0, 0), (0, 0), (MAX_LEFT, W - MAX_LEFT - L)))

    main_spec = pl.BlockSpec((1, Cin, TL), lambda b, j: (b, 0, j))
    halo_spec = pl.BlockSpec((1, Cin, HALO),
                             lambda b, j: (b, 0, (j + 1) * (TL // HALO)))
    wf_spec = pl.BlockSpec((C3, KC), lambda b, j: (0, 0))
    vec_spec = pl.BlockSpec((C3, 1), lambda b, j: (0, 0))
    acc_spec = pl.BlockSpec((1, C3, 1), lambda b, j: (b, 0, 0))
    col_scr = pltpu.VMEM((KC, TL), jnp.float32)

    conv_flops = 2 * B * NLT * C3 * KC * TL
    x_bytes = 4 * B * Cin * (Lp + NLT * HALO)

    # ---- pass 1: per-batch channel moments of the fused conv output ----------
    ch_sum, ch_sumsq = pl.pallas_call(
        functools.partial(stats_kernel, l_true=L, tile_l=TL, mask_cols=mask_cols),
        grid=(B, NLT),
        in_specs=[main_spec, halo_spec, wf_spec],
        out_specs=(acc_spec, acc_spec),
        out_shape=(jax.ShapeDtypeStruct((B, C3, 1), jnp.float32),
                   jax.ShapeDtypeStruct((B, C3, 1), jnp.float32)),
        scratch_shapes=[col_scr],
        compiler_params=pltpu.CompilerParams(
            dimension_semantics=("parallel", "arbitrary"),
            vmem_limit_bytes=_VMEM_LIMIT),
        cost_estimate=pl.CostEstimate(
            flops=int(conv_flops + 4 * B * C3 * Lp), transcendentals=0,
            bytes_accessed=int(x_bytes + 4 * (C3 * KC + 2 * B * C3))),
    )(xpad, xpad, wf)

    # ---- fold training-mode BatchNorm statistics into a per-channel affine ---
    n = float(B * L)
    mean = jnp.sum(ch_sum[:, :, 0], axis=0) / n
    ex2 = jnp.sum(ch_sumsq[:, :, 0], axis=0) / n
    var = jnp.maximum(ex2 - mean * mean, 0.0)
    inv_std = jax.lax.rsqrt(var + BN_EPS)
    scale = (params["gamma"] * inv_std).reshape(C3, 1)
    shift = (params["beta"] - params["gamma"] * inv_std * mean).reshape(C3, 1)

    # ---- pass 2: SE average pool of relu(BN(conv)) (conv recomputed) ---------
    psum = pl.pallas_call(
        functools.partial(pool_kernel, l_true=L, tile_l=TL, mask_cols=mask_cols),
        grid=(B, NLT),
        in_specs=[main_spec, halo_spec, wf_spec, vec_spec, vec_spec],
        out_specs=acc_spec,
        out_shape=jax.ShapeDtypeStruct((B, C3, 1), jnp.float32),
        scratch_shapes=[col_scr],
        compiler_params=pltpu.CompilerParams(
            dimension_semantics=("parallel", "arbitrary"),
            vmem_limit_bytes=_VMEM_LIMIT),
        cost_estimate=pl.CostEstimate(
            flops=int(conv_flops + 5 * B * C3 * Lp), transcendentals=0,
            bytes_accessed=int(x_bytes + 4 * (C3 * KC + 2 * C3 + B * C3))),
    )(xpad, xpad, wf, scale, shift)

    # ---- tiny SE FC layers on the (B, C3) pooled vectors (wrapper-side) ------
    pooled = psum[:, :, 0] / L
    h = jnp.maximum(pooled @ params["fc1_w"].T, 0.0)
    gate = jax.nn.sigmoid(h @ params["fc2_w"].T).reshape(B, C3, 1)

    # ---- pass 3: recompute conv, BN + ReLU, gate, write lane-dense tiles -----
    out_p = pl.pallas_call(
        apply_kernel,
        grid=(B, NLT),
        in_specs=[main_spec, halo_spec, wf_spec, vec_spec, vec_spec, acc_spec],
        out_specs=pl.BlockSpec((1, C3, TL), lambda b, j: (b, 0, j)),
        out_shape=jax.ShapeDtypeStruct((B, C3, Lp), jnp.float32),
        scratch_shapes=[col_scr],
        compiler_params=pltpu.CompilerParams(
            dimension_semantics=("parallel", "parallel"),
            vmem_limit_bytes=_VMEM_LIMIT),
        cost_estimate=pl.CostEstimate(
            flops=int(conv_flops + 4 * B * C3 * Lp), transcendentals=0,
            bytes_accessed=int(x_bytes
                               + 4 * (C3 * KC + 2 * C3 + B * C3 + B * C3 * Lp))),
    )(xpad, xpad, wf, scale, shift, gate)

    return out_p[:, :, :L]                        # drop the lane padding


# ----------------------------- pure-JAX reference -----------------------------
def ref_forward(x, params):
    def conv(xx, w_kio, b, k):
        w_oik = jnp.transpose(w_kio, (2, 1, 0))   # (Cout, Cin, K)
        left = (k - 1) // 2
        y = jax.lax.conv_general_dilated(
            xx, w_oik, window_strides=(1,), padding=[(left, k - 1 - left)],
            dimension_numbers=("NCH", "OIH", "NCH"))
        return y + b.reshape(1, -1, 1)

    y1 = conv(x, params["w1"], params["b1"], K1)
    y2 = conv(x, params["w2"], params["b2"], K2)
    y3 = conv(x, params["w3"], params["b3"], K3)
    xcon = jnp.concatenate([y1, y2, y3], axis=1)  # (B, 3*Cout, L)

    mu = jnp.mean(xcon, axis=(0, 2), keepdims=True)
    var = jnp.mean((xcon - mu) ** 2, axis=(0, 2), keepdims=True)
    out = (xcon - mu) / jnp.sqrt(var + BN_EPS)
    out = out * params["gamma"].reshape(1, -1, 1) + params["beta"].reshape(1, -1, 1)
    out = jnp.maximum(out, 0.0)

    pooled = jnp.mean(out, axis=2)                # (B, 3*Cout)
    h = jnp.maximum(pooled @ params["fc1_w"].T, 0.0)
    gate = jax.nn.sigmoid(h @ params["fc2_w"].T)
    return out * gate[:, :, None]


# ------------------------------------ main ------------------------------------
if __name__ == "__main__":
    B, Cin, L = 2, 4, 16
    Cout = 32                      # out_channels -> concat channels = 96
    reduction = 16                 # SE hidden = 96 // 16 = 6
    C3 = 3 * Cout
    HID = C3 // reduction

    key = jax.random.PRNGKey(0)
    ks = jax.random.split(key, 11)

    params = {
        "w1": 0.1 * jax.random.normal(ks[0], (K1, Cin, Cout), jnp.float32),
        "b1": 0.1 * jax.random.normal(ks[1], (Cout,), jnp.float32),
        "w2": 0.1 * jax.random.normal(ks[2], (K2, Cin, Cout), jnp.float32),
        "b2": 0.1 * jax.random.normal(ks[3], (Cout,), jnp.float32),
        "w3": 0.1 * jax.random.normal(ks[4], (K3, Cin, Cout), jnp.float32),
        "b3": 0.1 * jax.random.normal(ks[5], (Cout,), jnp.float32),
        "gamma": 1.0 + 0.1 * jax.random.normal(ks[6], (C3,), jnp.float32),
        "beta": 0.1 * jax.random.normal(ks[7], (C3,), jnp.float32),
        "fc1_w": 0.05 * jax.random.normal(ks[8], (HID, C3), jnp.float32),
        "fc2_w": 0.05 * jax.random.normal(ks[9], (C3, HID), jnp.float32),
    }

    x = jax.random.normal(ks[10], (B, Cin, L), jnp.float32)

    out = jax.block_until_ready(macnn_block_forward(x, params))
    ref = jax.block_until_ready(ref_forward(x, params))

    assert out.shape == (B, C3, L), out.shape
    if not np.allclose(np.asarray(out), np.asarray(ref), atol=2e-3, rtol=2e-3):
        raise SystemExit("mismatch vs reference: max abs diff = %g"
                         % float(np.max(np.abs(np.asarray(out) - np.asarray(ref)))))
    print("KERNEL_OK")
</pallas_src>

<mosaic_0001>
module attributes {stable_mosaic.version = 11 : i64} {
  func.func @stats_kernel(%arg0: i32, %arg1: i32, %arg2: memref<1x4x128xf32, #tpu.memory_space<vmem>>, %arg3: memref<1x4x128xf32, #tpu.memory_space<vmem>>, %arg4: memref<96x48xf32, #tpu.memory_space<vmem>>, %arg5: memref<1x96x1xf32, #tpu.memory_space<vmem>>, %arg6: memref<1x96x1xf32, #tpu.memory_space<vmem>>, %arg7: memref<48x128xf32, #tpu.memory_space<vmem>>) attributes {dimension_semantics = [#tpu.dimension_semantics<parallel>, #tpu.dimension_semantics<arbitrary>], iteration_bounds = array<i64: 2, 1>, scalar_prefetch = 0 : i64, scratch_operands = 1 : i64, tpu.core_type = #tpu.core_type<tc>, window_params = [{transform_indices = @transform_0, window_bounds = array<i64: 1, 4, 128>}, {transform_indices = @transform_1, window_bounds = array<i64: 1, 4, 128>}, {pipeline_mode = #tpu.pipeline_mode<synchronous>, transform_indices = @transform_2, window_bounds = array<i64: 96, 48>}, {transform_indices = @transform_3, window_bounds = array<i64: 1, 96, 1>}, {transform_indices = @transform_4, window_bounds = array<i64: 1, 96, 1>}]} {
    %c0_i32 = arith.constant 0 : i32
    %0 = arith.cmpi eq, %arg1, %c0_i32 : i32
    %1 = arith.extui %0 : i1 to i32
    %c0_i32_0 = arith.constant 0 : i32
    %2 = arith.cmpi ne, %1, %c0_i32_0 : i32
    scf.if %2 {
      %cst_38 = arith.constant 0.000000e+00 : f32
      %62 = vector.broadcast %cst_38 : f32 to vector<1x96x1xf32>
      %c0_39 = arith.constant 0 : index
      %c0_40 = arith.constant 0 : index
      %c0_41 = arith.constant 0 : index
      %63 = vector.load %arg5[%c0_39, %c0_40, %c0_41] : memref<1x96x1xf32, #tpu.memory_space<vmem>>, vector<1x96x1xf32>
      tpu.vector_store %arg5[%c0_39, %c0_40, %c0_41], %62 {strides = array<i32>} : memref<1x96x1xf32, #tpu.memory_space<vmem>>, vector<1x96x1xf32>,
      %cst_42 = arith.constant 0.000000e+00 : f32
      %64 = vector.broadcast %cst_42 : f32 to vector<1x96x1xf32>
      %c0_43 = arith.constant 0 : index
      %c0_44 = arith.constant 0 : index
      %c0_45 = arith.constant 0 : index
      %65 = vector.load %arg6[%c0_43, %c0_44, %c0_45] : memref<1x96x1xf32, #tpu.memory_space<vmem>>, vector<1x96x1xf32>
      tpu.vector_store %arg6[%c0_43, %c0_44, %c0_45], %64 {strides = array<i32>} : memref<1x96x1xf32, #tpu.memory_space<vmem>>, vector<1x96x1xf32>,
    } else {
    }
    %c0 = arith.constant 0 : index
    %c0_1 = arith.constant 0 : index
    %c0_2 = arith.constant 0 : index
    %3 = vector.load %arg2[%c0, %c0_1, %c0_2] : memref<1x4x128xf32, #tpu.memory_space<vmem>>, vector<1x4x128xf32>
    %4 = vector.shape_cast %3 : vector<1x4x128xf32> to vector<4x128xf32>
    %c0_3 = arith.constant 0 : index
    %c0_4 = arith.constant 0 : index
    %c0_5 = arith.constant 0 : index
    %5 = vector.load %arg3[%c0_3, %c0_4, %c0_5] : memref<1x4x128xf32, #tpu.memory_space<vmem>>, vector<1x4x128xf32>
    %6 = vector.shape_cast %5 : vector<1x4x128xf32> to vector<4x128xf32>
    %7 = tpu.concatenate %4, %6 in 1 : vector<4x128xf32>, vector<4x128xf32> -> vector<4x256xf32>
    %8 = vector.extract_strided_slice %7 {offsets = [0, 0], sizes = [4, 128], strides = [1, 1]} : vector<4x256xf32> to vector<4x128xf32>
    %c0_6 = arith.constant 0 : index
    %c0_7 = arith.constant 0 : index
    %9 = vector.load %arg7[%c0_6, %c0_7] : memref<48x128xf32, #tpu.memory_space<vmem>>, vector<4x128xf32>
    tpu.vector_store %arg7[%c0_6, %c0_7], %8 {strides = array<i32>} : memref<48x128xf32, #tpu.memory_space<vmem>>, vector<4x128xf32>,
    %10 = vector.extract_strided_slice %7 {offsets = [0, 1], sizes = [4, 128], strides = [1, 1]} : vector<4x256xf32> to vector<4x128xf32>
    %c4 = arith.constant 4 : index
    %c0_8 = arith.constant 0 : index
    %11 = vector.load %arg7[%c4, %c0_8] : memref<48x128xf32, #tpu.memory_space<vmem>>, vector<4x128xf32>
    tpu.vector_store %arg7[%c4, %c0_8], %10 {strides = array<i32>} : memref<48x128xf32, #tpu.memory_space<vmem>>, vector<4x128xf32>,
    %12 = vector.extract_strided_slice %7 {offsets = [0, 2], sizes = [4, 128], strides = [1, 1]} : vector<4x256xf32> to vector<4x128xf32>
    %c8 = arith.constant 8 : index
    %c0_9 = arith.constant 0 : index
    %13 = vector.load %arg7[%c8, %c0_9] : memref<48x128xf32, #tpu.memory_space<vmem>>, vector<4x128xf32>
    tpu.vector_store %arg7[%c8, %c0_9], %12 {strides = array<i32>} : memref<48x128xf32, #tpu.memory_space<vmem>>, vector<4x128xf32>,
    %14 = vector.extract_strided_slice %7 {offsets = [0, 3], sizes = [4, 128], strides = [1, 1]} : vector<4x256xf32> to vector<4x128xf32>
    %c12 = arith.constant 12 : index
    %c0_10 = arith.constant 0 : index
    %15 = vector.load %arg7[%c12, %c0_10] : memref<48x128xf32, #tpu.memory_space<vmem>>, vector<4x128xf32>
    tpu.vector_store %arg7[%c12, %c0_10], %14 {strides = array<i32>} : memref<48x128xf32, #tpu.memory_space<vmem>>, vector<4x128xf32>,
    %16 = vector.extract_strided_slice %7 {offsets = [0, 4], sizes = [4, 128], strides = [1, 1]} : vector<4x256xf32> to vector<4x128xf32>
    %c16 = arith.constant 16 : index
    %c0_11 = arith.constant 0 : index
    %17 = vector.load %arg7[%c16, %c0_11] : memref<48x128xf32, #tpu.memory_space<vmem>>, vector<4x128xf32>
    tpu.vector_store %arg7[%c16, %c0_11], %16 {strides = array<i32>} : memref<48x128xf32, #tpu.memory_space<vmem>>, vector<4x128xf32>,
    %18 = vector.extract_strided_slice %7 {offsets = [0, 5], sizes = [4, 128], strides = [1, 1]} : vector<4x256xf32> to vector<4x128xf32>
    %c20 = arith.constant 20 : index
    %c0_12 = arith.constant 0 : index
    %19 = vector.load %arg7[%c20, %c0_12] : memref<48x128xf32, #tpu.memory_space<vmem>>, vector<4x128xf32>
    tpu.vector_store %arg7[%c20, %c0_12], %18 {strides = array<i32>} : memref<48x128xf32, #tpu.memory_space<vmem>>, vector<4x128xf32>,
    %20 = vector.extract_strided_slice %7 {offsets = [0, 6], sizes = [4, 128], strides = [1, 1]} : vector<4x256xf32> to vector<4x128xf32>
    %c24 = arith.constant 24 : index
    %c0_13 = arith.constant 0 : index
    %21 = vector.load %arg7[%c24, %c0_13] : memref<48x128xf32, #tpu.memory_space<vmem>>, vector<4x128xf32>
    tpu.vector_store %arg7[%c24, %c0_13], %20 {strides = array<i32>} : memref<48x128xf32, #tpu.memory_space<vmem>>, vector<4x128xf32>,
    %22 = vector.extract_strided_slice %7 {offsets = [0, 7], sizes = [4, 128], strides = [1, 1]} : vector<4x256xf32> to vector<4x128xf32>
    %c28 = arith.constant 28 : index
    %c0_14 = arith.constant 0 : index
    %23 = vector.load %arg7[%c28, %c0_14] : memref<48x128xf32, #tpu.memory_space<vmem>>, vector<4x128xf32>
    tpu.vector_store %arg7[%c28, %c0_14], %22 {strides = array<i32>} : memref<48x128xf32, #tpu.memory_space<vmem>>, vector<4x128xf32>,
    %24 = vector.extract_strided_slice %7 {offsets = [0, 8], sizes = [4, 128], strides = [1, 1]} : vector<4x256xf32> to vector<4x128xf32>
    %c32 = arith.constant 32 : index
    %c0_15 = arith.constant 0 : index
    %25 = vector.load %arg7[%c32, %c0_15] : memref<48x128xf32, #tpu.memory_space<vmem>>, vector<4x128xf32>
    tpu.vector_store %arg7[%c32, %c0_15], %24 {strides = array<i32>} : memref<48x128xf32, #tpu.memory_space<vmem>>, vector<4x128xf32>,
    %26 = vector.extract_strided_slice %7 {offsets = [0, 9], sizes = [4, 128], strides = [1, 1]} : vector<4x256xf32> to vector<4x128xf32>
    %c36 = arith.constant 36 : index
    %c0_16 = arith.constant 0 : index
    %27 = vector.load %arg7[%c36, %c0_16] : memref<48x128xf32, #tpu.memory_space<vmem>>, vector<4x128xf32>
    tpu.vector_store %arg7[%c36, %c0_16], %26 {strides = array<i32>} : memref<48x128xf32, #tpu.memory_space<vmem>>, vector<4x128xf32>,
    %28 = vector.extract_strided_slice %7 {offsets = [0, 10], sizes = [4, 128], strides = [1, 1]} : vector<4x256xf32> to vector<4x128xf32>
    %c40 = arith.constant 40 : index
    %c0_17 = arith.constant 0 : index
    %29 = vector.load %arg7[%c40, %c0_17] : memref<48x128xf32, #tpu.memory_space<vmem>>, vector<4x128xf32>
    tpu.vector_store %arg7[%c40, %c0_17], %28 {strides = array<i32>} : memref<48x128xf32, #tpu.memory_space<vmem>>, vector<4x128xf32>,
    %30 = vector.extract_strided_slice %7 {offsets = [0, 11], sizes = [4, 128], strides = [1, 1]} : vector<4x256xf32> to vector<4x128xf32>
    %c44 = arith.constant 44 : index
    %c0_18 = arith.constant 0 : index
    %31 = vector.load %arg7[%c44, %c0_18] : memref<48x128xf32, #tpu.memory_space<vmem>>, vector<4x128xf32>
    tpu.vector_store %arg7[%c44, %c0_18], %30 {strides = array<i32>} : memref<48x128xf32, #tpu.memory_space<vmem>>, vector<4x128xf32>,
    %c0_19 = arith.constant 0 : index
    %c0_20 = arith.constant 0 : index
    %32 = vector.load %arg4[%c0_19, %c0_20] : memref<96x48xf32, #tpu.memory_space<vmem>>, vector<96x48xf32>
    %c0_21 = arith.constant 0 : index
    %c0_22 = arith.constant 0 : index
    %33 = vector.load %arg7[%c0_21, %c0_22] : memref<48x128xf32, #tpu.memory_space<vmem>>, vector<48x128xf32>
    %cst = arith.constant dense<0.000000e+00> : vector<96x128xf32>
    %34 = tpu.matmul %32, %33, %cst {dimension_numbers = #tpu.dot_dimension_numbers<[1], [0], [0], [1], [0, 0, 1, 1], [], []>} : vector<96x48xf32>, vector<48x128xf32>, vector<96x128xf32> -> vector<96x128xf32>
    %35 = tpu.iota {dimensions = array<i32: 1>} : vector<1x128xi32>
    %c128_i32 = arith.constant 128 : i32
    %36 = arith.muli %arg1, %c128_i32 : i32
    %37 = vector.broadcast %36 : i32 to vector<1x128xi32>
    %38 = arith.addi %35, %37 : vector<1x128xi32>
    %c16_i32 = arith.constant 16 : i32
    %39 = vector.broadcast %c16_i32 : i32 to vector<1x128xi32>
    %40 = arith.cmpi slt, %38, %39 : vector<1x128xi32>
    %cst_23 = arith.constant 0.000000e+00 : f32
    %41 = vector.shape_cast %40 : vector<1x128xi1> to vector<1x128xi1>
    %42 = vector.broadcast %41 : vector<1x128xi1> to vector<96x128xi1>
    %43 = vector.broadcast %cst_23 : f32 to vector<96x128xf32>
    %44 = arith.select %42, %34, %43 : vector<96x128xi1>, vector<96x128xf32>
    %c0_24 = arith.constant 0 : index
    %c0_25 = arith.constant 0 : index
    %c0_26 = arith.constant 0 : index
    %45 = vector.load %arg5[%c0_24, %c0_25, %c0_26] : memref<1x96x1xf32, #tpu.memory_space<vmem>>, vector<1x96x1xf32>
    %46 = vector.shape_cast %45 : vector<1x96x1xf32> to vector<96x1xf32>
    %cst_27 = arith.constant dense<0.000000e+00> : vector<96xf32>
    %47 = vector.multi_reduction <add>, %44, %cst_27 [1] : vector<96x128xf32> to vector<96xf32>
    %48 = vector.shape_cast %47 : vector<96xf32> to vector<96x1xf32>
    %49 = arith.addf %46, %48 : vector<96x1xf32>
    %c0_28 = arith.constant 0 : index
    %c0_29 = arith.constant 0 : index
    %c0_30 = arith.constant 0 : index
    %50 = vector.load %arg5[%c0_28, %c0_29, %c0_30] : memref<1x96x1xf32, #tpu.memory_space<vmem>>, vector<1x96x1xf32>
    %51 = vector.shape_cast %50 : vector<1x96x1xf32> to vector<96x1xf32>
    %52 = vector.shape_cast %49 : vector<96x1xf32> to vector<1x96x1xf32>
    tpu.vector_store %arg5[%c0_28, %c0_29, %c0_30], %52 {strides = array<i32>} : memref<1x96x1xf32, #tpu.memory_space<vmem>>, vector<1x96x1xf32>,
    %c0_31 = arith.constant 0 : index
    %c0_32 = arith.constant 0 : index
    %c0_33 = arith.constant 0 : index
    %53 = vector.load %arg6[%c0_31, %c0_32, %c0_33] : memref<1x96x1xf32, #tpu.memory_space<vmem>>, vector<1x96x1xf32>
    %54 = vector.shape_cast %53 : vector<1x96x1xf32> to vector<96x1xf32>
    %55 = arith.mulf %44, %44 : vector<96x128xf32>
    %cst_34 = arith.constant dense<0.000000e+00> : vector<96xf32>
    %56 = vector.multi_reduction <add>, %55, %cst_34 [1] : vector<96x128xf32> to vector<96xf32>
    %57 = vector.shape_cast %56 : vector<96xf32> to vector<96x1xf32>
    %58 = arith.addf %54, %57 : vector<96x1xf32>
    %c0_35 = arith.constant 0 : index
    %c0_36 = arith.constant 0 : index
    %c0_37 = arith.constant 0 : index
    %59 = vector.load %arg6[%c0_35, %c0_36, %c0_37] : memref<1x96x1xf32, #tpu.memory_space<vmem>>, vector<1x96x1xf32>
    %60 = vector.shape_cast %59 : vector<1x96x1xf32> to vector<96x1xf32>
    %61 = vector.shape_cast %58 : vector<96x1xf32> to vector<1x96x1xf32>
    tpu.vector_store %arg6[%c0_35, %c0_36, %c0_37], %61 {strides = array<i32>} : memref<1x96x1xf32, #tpu.memory_space<vmem>>, vector<1x96x1xf32>,
    return
  }
  func.func @transform_0(%arg0: i32, %arg1: i32) -> (i32, i32, i32) {
    %c0_i32 = arith.constant 0 : i32
    %c0_i32_0 = arith.constant 0 : i32
    return %arg0, %c0_i32, %arg1 : i32, i32, i32
  }
  func.func @transform_1(%arg0: i32, %arg1: i32) -> (i32, i32, i32) {
    %c1_i32 = arith.constant 1 : i32
    %0 = arith.addi %arg1, %c1_i32 : i32
    %c1_i32_0 = arith.constant 1 : i32
    %1 = arith.muli %0, %c1_i32_0 : i32
    %c0_i32 = arith.constant 0 : i32
    %c0_i32_1 = arith.constant 0 : i32
    return %arg0, %c0_i32, %1 : i32, i32, i32
  }
  func.func @transform_2(%arg0: i32, %arg1: i32) -> (i32, i32) {
    %c0_i32 = arith.constant 0 : i32
    %c0_i32_0 = arith.constant 0 : i32
    %c0_i32_1 = arith.constant 0 : i32
    return %c0_i32, %c0_i32_0 : i32, i32
  }
  func.func @transform_3(%arg0: i32, %arg1: i32) -> (i32, i32, i32) {
    %c0_i32 = arith.constant 0 : i32
    %c0_i32_0 = arith.constant 0 : i32
    %c0_i32_1 = arith.constant 0 : i32
    return %arg0, %c0_i32, %c0_i32_0 : i32, i32, i32
  }
  func.func @transform_4(%arg0: i32, %arg1: i32) -> (i32, i32, i32) {
    %c0_i32 = arith.constant 0 : i32
    %c0_i32_0 = arith.constant 0 : i32
    %c0_i32_1 = arith.constant 0 : i32
    return %arg0, %c0_i32, %c0_i32_0 : i32, i32, i32
  }
}

module attributes {stable_mosaic.version = 11 : i64} {
  func.func @pool_kernel(%arg0: i32, %arg1: i32, %arg2: memref<1x4x128xf32, #tpu.memory_space<vmem>>, %arg3: memref<1x4x128xf32, #tpu.memory_space<vmem>>, %arg4: memref<96x48xf32, #tpu.memory_space<vmem>>, %arg5: memref<96x1xf32, #tpu.memory_space<vmem>>, %arg6: memref<96x1xf32, #tpu.memory_space<vmem>>, %arg7: memref<1x96x1xf32, #tpu.memory_space<vmem>>, %arg8: memref<48x128xf32, #tpu.memory_space<vmem>>) attributes {dimension_semantics = [#tpu.dimension_semantics<parallel>, #tpu.dimension_semantics<arbitrary>], iteration_bounds = array<i64: 2, 1>, scalar_prefetch = 0 : i64, scratch_operands = 1 : i64, tpu.core_type = #tpu.core_type<tc>, window_params = [{transform_indices = @transform_0, window_bounds = array<i64: 1, 4, 128>}, {transform_indices = @transform_1, window_bounds = array<i64: 1, 4, 128>}, {pipeline_mode = #tpu.pipeline_mode<synchronous>, transform_indices = @transform_2, window_bounds = array<i64: 96, 48>}, {pipeline_mode = #tpu.pipeline_mode<synchronous>, transform_indices = @transform_3, window_bounds = array<i64: 96, 1>}, {pipeline_mode = #tpu.pipeline_mode<synchronous>, transform_indices = @transform_4, window_bounds = array<i64: 96, 1>}, {transform_indices = @transform_5, window_bounds = array<i64: 1, 96, 1>}]} {
    %c0_i32 = arith.constant 0 : i32
    %0 = arith.cmpi eq, %arg1, %c0_i32 : i32
    %1 = arith.extui %0 : i1 to i32
    %c0_i32_0 = arith.constant 0 : i32
    %2 = arith.cmpi ne, %1, %c0_i32_0 : i32
    scf.if %2 {
      %cst_36 = arith.constant 0.000000e+00 : f32
      %61 = vector.broadcast %cst_36 : f32 to vector<1x96x1xf32>
      %c0_37 = arith.constant 0 : index
      %c0_38 = arith.constant 0 : index
      %c0_39 = arith.constant 0 : index
      %62 = vector.load %arg7[%c0_37, %c0_38, %c0_39] : memref<1x96x1xf32, #tpu.memory_space<vmem>>, vector<1x96x1xf32>
      tpu.vector_store %arg7[%c0_37, %c0_38, %c0_39], %61 {strides = array<i32>} : memref<1x96x1xf32, #tpu.memory_space<vmem>>, vector<1x96x1xf32>,
    } else {
    }
    %c0 = arith.constant 0 : index
    %c0_1 = arith.constant 0 : index
    %c0_2 = arith.constant 0 : index
    %3 = vector.load %arg2[%c0, %c0_1, %c0_2] : memref<1x4x128xf32, #tpu.memory_space<vmem>>, vector<1x4x128xf32>
    %4 = vector.shape_cast %3 : vector<1x4x128xf32> to vector<4x128xf32>
    %c0_3 = arith.constant 0 : index
    %c0_4 = arith.constant 0 : index
    %c0_5 = arith.constant 0 : index
    %5 = vector.load %arg3[%c0_3, %c0_4, %c0_5] : memref<1x4x128xf32, #tpu.memory_space<vmem>>, vector<1x4x128xf32>
    %6 = vector.shape_cast %5 : vector<1x4x128xf32> to vector<4x128xf32>
    %7 = tpu.concatenate %4, %6 in 1 : vector<4x128xf32>, vector<4x128xf32> -> vector<4x256xf32>
    %8 = vector.extract_strided_slice %7 {offsets = [0, 0], sizes = [4, 128], strides = [1, 1]} : vector<4x256xf32> to vector<4x128xf32>
    %c0_6 = arith.constant 0 : index
    %c0_7 = arith.constant 0 : index
    %9 = vector.load %arg8[%c0_6, %c0_7] : memref<48x128xf32, #tpu.memory_space<vmem>>, vector<4x128xf32>
    tpu.vector_store %arg8[%c0_6, %c0_7], %8 {strides = array<i32>} : memref<48x128xf32, #tpu.memory_space<vmem>>, vector<4x128xf32>,
    %10 = vector.extract_strided_slice %7 {offsets = [0, 1], sizes = [4, 128], strides = [1, 1]} : vector<4x256xf32> to vector<4x128xf32>
    %c4 = arith.constant 4 : index
    %c0_8 = arith.constant 0 : index
    %11 = vector.load %arg8[%c4, %c0_8] : memref<48x128xf32, #tpu.memory_space<vmem>>, vector<4x128xf32>
    tpu.vector_store %arg8[%c4, %c0_8], %10 {strides = array<i32>} : memref<48x128xf32, #tpu.memory_space<vmem>>, vector<4x128xf32>,
    %12 = vector.extract_strided_slice %7 {offsets = [0, 2], sizes = [4, 128], strides = [1, 1]} : vector<4x256xf32> to vector<4x128xf32>
    %c8 = arith.constant 8 : index
    %c0_9 = arith.constant 0 : index
    %13 = vector.load %arg8[%c8, %c0_9] : memref<48x128xf32, #tpu.memory_space<vmem>>, vector<4x128xf32>
    tpu.vector_store %arg8[%c8, %c0_9], %12 {strides = array<i32>} : memref<48x128xf32, #tpu.memory_space<vmem>>, vector<4x128xf32>,
    %14 = vector.extract_strided_slice %7 {offsets = [0, 3], sizes = [4, 128], strides = [1, 1]} : vector<4x256xf32> to vector<4x128xf32>
    %c12 = arith.constant 12 : index
    %c0_10 = arith.constant 0 : index
    %15 = vector.load %arg8[%c12, %c0_10] : memref<48x128xf32, #tpu.memory_space<vmem>>, vector<4x128xf32>
    tpu.vector_store %arg8[%c12, %c0_10], %14 {strides = array<i32>} : memref<48x128xf32, #tpu.memory_space<vmem>>, vector<4x128xf32>,
    %16 = vector.extract_strided_slice %7 {offsets = [0, 4], sizes = [4, 128], strides = [1, 1]} : vector<4x256xf32> to vector<4x128xf32>
    %c16 = arith.constant 16 : index
    %c0_11 = arith.constant 0 : index
    %17 = vector.load %arg8[%c16, %c0_11] : memref<48x128xf32, #tpu.memory_space<vmem>>, vector<4x128xf32>
    tpu.vector_store %arg8[%c16, %c0_11], %16 {strides = array<i32>} : memref<48x128xf32, #tpu.memory_space<vmem>>, vector<4x128xf32>,
    %18 = vector.extract_strided_slice %7 {offsets = [0, 5], sizes = [4, 128], strides = [1, 1]} : vector<4x256xf32> to vector<4x128xf32>
    %c20 = arith.constant 20 : index
    %c0_12 = arith.constant 0 : index
    %19 = vector.load %arg8[%c20, %c0_12] : memref<48x128xf32, #tpu.memory_space<vmem>>, vector<4x128xf32>
    tpu.vector_store %arg8[%c20, %c0_12], %18 {strides = array<i32>} : memref<48x128xf32, #tpu.memory_space<vmem>>, vector<4x128xf32>,
    %20 = vector.extract_strided_slice %7 {offsets = [0, 6], sizes = [4, 128], strides = [1, 1]} : vector<4x256xf32> to vector<4x128xf32>
    %c24 = arith.constant 24 : index
    %c0_13 = arith.constant 0 : index
    %21 = vector.load %arg8[%c24, %c0_13] : memref<48x128xf32, #tpu.memory_space<vmem>>, vector<4x128xf32>
    tpu.vector_store %arg8[%c24, %c0_13], %20 {strides = array<i32>} : memref<48x128xf32, #tpu.memory_space<vmem>>, vector<4x128xf32>,
    %22 = vector.extract_strided_slice %7 {offsets = [0, 7], sizes = [4, 128], strides = [1, 1]} : vector<4x256xf32> to vector<4x128xf32>
    %c28 = arith.constant 28 : index
    %c0_14 = arith.constant 0 : index
    %23 = vector.load %arg8[%c28, %c0_14] : memref<48x128xf32, #tpu.memory_space<vmem>>, vector<4x128xf32>
    tpu.vector_store %arg8[%c28, %c0_14], %22 {strides = array<i32>} : memref<48x128xf32, #tpu.memory_space<vmem>>, vector<4x128xf32>,
    %24 = vector.extract_strided_slice %7 {offsets = [0, 8], sizes = [4, 128], strides = [1, 1]} : vector<4x256xf32> to vector<4x128xf32>
    %c32 = arith.constant 32 : index
    %c0_15 = arith.constant 0 : index
    %25 = vector.load %arg8[%c32, %c0_15] : memref<48x128xf32, #tpu.memory_space<vmem>>, vector<4x128xf32>
    tpu.vector_store %arg8[%c32, %c0_15], %24 {strides = array<i32>} : memref<48x128xf32, #tpu.memory_space<vmem>>, vector<4x128xf32>,
    %26 = vector.extract_strided_slice %7 {offsets = [0, 9], sizes = [4, 128], strides = [1, 1]} : vector<4x256xf32> to vector<4x128xf32>
    %c36 = arith.constant 36 : index
    %c0_16 = arith.constant 0 : index
    %27 = vector.load %arg8[%c36, %c0_16] : memref<48x128xf32, #tpu.memory_space<vmem>>, vector<4x128xf32>
    tpu.vector_store %arg8[%c36, %c0_16], %26 {strides = array<i32>} : memref<48x128xf32, #tpu.memory_space<vmem>>, vector<4x128xf32>,
    %28 = vector.extract_strided_slice %7 {offsets = [0, 10], sizes = [4, 128], strides = [1, 1]} : vector<4x256xf32> to vector<4x128xf32>
    %c40 = arith.constant 40 : index
    %c0_17 = arith.constant 0 : index
    %29 = vector.load %arg8[%c40, %c0_17] : memref<48x128xf32, #tpu.memory_space<vmem>>, vector<4x128xf32>
    tpu.vector_store %arg8[%c40, %c0_17], %28 {strides = array<i32>} : memref<48x128xf32, #tpu.memory_space<vmem>>, vector<4x128xf32>,
    %30 = vector.extract_strided_slice %7 {offsets = [0, 11], sizes = [4, 128], strides = [1, 1]} : vector<4x256xf32> to vector<4x128xf32>
    %c44 = arith.constant 44 : index
    %c0_18 = arith.constant 0 : index
    %31 = vector.load %arg8[%c44, %c0_18] : memref<48x128xf32, #tpu.memory_space<vmem>>, vector<4x128xf32>
    tpu.vector_store %arg8[%c44, %c0_18], %30 {strides = array<i32>} : memref<48x128xf32, #tpu.memory_space<vmem>>, vector<4x128xf32>,
    %c0_19 = arith.constant 0 : index
    %c0_20 = arith.constant 0 : index
    %32 = vector.load %arg4[%c0_19, %c0_20] : memref<96x48xf32, #tpu.memory_space<vmem>>, vector<96x48xf32>
    %c0_21 = arith.constant 0 : index
    %c0_22 = arith.constant 0 : index
    %33 = vector.load %arg8[%c0_21, %c0_22] : memref<48x128xf32, #tpu.memory_space<vmem>>, vector<48x128xf32>
    %cst = arith.constant dense<0.000000e+00> : vector<96x128xf32>
    %34 = tpu.matmul %32, %33, %cst {dimension_numbers = #tpu.dot_dimension_numbers<[1], [0], [0], [1], [0, 0, 1, 1], [], []>} : vector<96x48xf32>, vector<48x128xf32>, vector<96x128xf32> -> vector<96x128xf32>
    %c0_23 = arith.constant 0 : index
    %c0_24 = arith.constant 0 : index
    %35 = vector.load %arg5[%c0_23, %c0_24] : memref<96x1xf32, #tpu.memory_space<vmem>>, vector<96x1xf32>
    %36 = vector.broadcast %35 : vector<96x1xf32> to vector<96x128xf32>
    %37 = arith.mulf %34, %36 : vector<96x128xf32>
    %c0_25 = arith.constant 0 : index
    %c0_26 = arith.constant 0 : index
    %38 = vector.load %arg6[%c0_25, %c0_26] : memref<96x1xf32, #tpu.memory_space<vmem>>, vector<96x1xf32>
    %39 = vector.broadcast %38 : vector<96x1xf32> to vector<96x128xf32>
    %40 = arith.addf %37, %39 : vector<96x128xf32>
    %cst_27 = arith.constant 0.000000e+00 : f32
    %41 = vector.broadcast %cst_27 : f32 to vector<96x128xf32>
    %42 = arith.maximumf %40, %41 : vector<96x128xf32>
    %43 = tpu.iota {dimensions = array<i32: 1>} : vector<1x128xi32>
    %c128_i32 = arith.constant 128 : i32
    %44 = arith.muli %arg1, %c128_i32 : i32
    %45 = vector.broadcast %44 : i32 to vector<1x128xi32>
    %46 = arith.addi %43, %45 : vector<1x128xi32>
    %c16_i32 = arith.constant 16 : i32
    %47 = vector.broadcast %c16_i32 : i32 to vector<1x128xi32>
    %48 = arith.cmpi slt, %46, %47 : vector<1x128xi32>
    %cst_28 = arith.constant 0.000000e+00 : f32
    %49 = vector.shape_cast %48 : vector<1x128xi1> to vector<1x128xi1>
    %50 = vector.broadcast %49 : vector<1x128xi1> to vector<96x128xi1>
    %51 = vector.broadcast %cst_28 : f32 to vector<96x128xf32>
    %52 = arith.select %50, %42, %51 : vector<96x128xi1>, vector<96x128xf32>
    %c0_29 = arith.constant 0 : index
    %c0_30 = arith.constant 0 : index
    %c0_31 = arith.constant 0 : index
    %53 = vector.load %arg7[%c0_29, %c0_30, %c0_31] : memref<1x96x1xf32, #tpu.memory_space<vmem>>, vector<1x96x1xf32>
    %54 = vector.shape_cast %53 : vector<1x96x1xf32> to vector<96x1xf32>
    %cst_32 = arith.constant dense<0.000000e+00> : vector<96xf32>
    %55 = vector.multi_reduction <add>, %52, %cst_32 [1] : vector<96x128xf32> to vector<96xf32>
    %56 = vector.shape_cast %55 : vector<96xf32> to vector<96x1xf32>
    %57 = arith.addf %54, %56 : vector<96x1xf32>
    %c0_33 = arith.constant 0 : index
    %c0_34 = arith.constant 0 : index
    %c0_35 = arith.constant 0 : index
    %58 = vector.load %arg7[%c0_33, %c0_34, %c0_35] : memref<1x96x1xf32, #tpu.memory_space<vmem>>, vector<1x96x1xf32>
    %59 = vector.shape_cast %58 : vector<1x96x1xf32> to vector<96x1xf32>
    %60 = vector.shape_cast %57 : vector<96x1xf32> to vector<1x96x1xf32>
    tpu.vector_store %arg7[%c0_33, %c0_34, %c0_35], %60 {strides = array<i32>} : memref<1x96x1xf32, #tpu.memory_space<vmem>>, vector<1x96x1xf32>,
    return
  }
  func.func @transform_0(%arg0: i32, %arg1: i32) -> (i32, i32, i32) {
    %c0_i32 = arith.constant 0 : i32
    %c0_i32_0 = arith.constant 0 : i32
    return %arg0, %c0_i32, %arg1 : i32, i32, i32
  }
  func.func @transform_1(%arg0: i32, %arg1: i32) -> (i32, i32, i32) {
    %c1_i32 = arith.constant 1 : i32
    %0 = arith.addi %arg1, %c1_i32 : i32
    %c1_i32_0 = arith.constant 1 : i32
    %1 = arith.muli %0, %c1_i32_0 : i32
    %c0_i32 = arith.constant 0 : i32
    %c0_i32_1 = arith.constant 0 : i32
    return %arg0, %c0_i32, %1 : i32, i32, i32
  }
  func.func @transform_2(%arg0: i32, %arg1: i32) -> (i32, i32) {
    %c0_i32 = arith.constant 0 : i32
    %c0_i32_0 = arith.constant 0 : i32
    %c0_i32_1 = arith.constant 0 : i32
    return %c0_i32, %c0_i32_0 : i32, i32
  }
  func.func @transform_3(%arg0: i32, %arg1: i32) -> (i32, i32) {
    %c0_i32 = arith.constant 0 : i32
    %c0_i32_0 = arith.constant 0 : i32
    %c0_i32_1 = arith.constant 0 : i32
    return %c0_i32, %c0_i32_0 : i32, i32
  }
  func.func @transform_4(%arg0: i32, %arg1: i32) -> (i32, i32) {
    %c0_i32 = arith.constant 0 : i32
    %c0_i32_0 = arith.constant 0 : i32
    %c0_i32_1 = arith.constant 0 : i32
    return %c0_i32, %c0_i32_0 : i32, i32
  }
  func.func @transform_5(%arg0: i32, %arg1: i32) -> (i32, i32, i32) {
    %c0_i32 = arith.constant 0 : i32
    %c0_i32_0 = arith.constant 0 : i32
    %c0_i32_1 = arith.constant 0 : i32
    return %arg0, %c0_i32, %c0_i32_0 : i32, i32, i32
  }
}

module attributes {stable_mosaic.version = 11 : i64} {
  func.func @apply_kernel(%arg0: i32, %arg1: i32, %arg2: memref<1x4x128xf32, #tpu.memory_space<vmem>>, %arg3: memref<1x4x128xf32, #tpu.memory_space<vmem>>, %arg4: memref<96x48xf32, #tpu.memory_space<vmem>>, %arg5: memref<96x1xf32, #tpu.memory_space<vmem>>, %arg6: memref<96x1xf32, #tpu.memory_space<vmem>>, %arg7: memref<1x96x1xf32, #tpu.memory_space<vmem>>, %arg8: memref<1x96x128xf32, #tpu.memory_space<vmem>>, %arg9: memref<48x128xf32, #tpu.memory_space<vmem>>) attributes {dimension_semantics = [#tpu.dimension_semantics<parallel>, #tpu.dimension_semantics<parallel>], iteration_bounds = array<i64: 2, 1>, scalar_prefetch = 0 : i64, scratch_operands = 1 : i64, tpu.core_type = #tpu.core_type<tc>, window_params = [{transform_indices = @transform_0, window_bounds = array<i64: 1, 4, 128>}, {transform_indices = @transform_1, window_bounds = array<i64: 1, 4, 128>}, {pipeline_mode = #tpu.pipeline_mode<synchronous>, transform_indices = @transform_2, window_bounds = array<i64: 96, 48>}, {pipeline_mode = #tpu.pipeline_mode<synchronous>, transform_indices = @transform_3, window_bounds = array<i64: 96, 1>}, {pipeline_mode = #tpu.pipeline_mode<synchronous>, transform_indices = @transform_4, window_bounds = array<i64: 96, 1>}, {transform_indices = @transform_5, window_bounds = array<i64: 1, 96, 1>}, {transform_indices = @transform_6, window_bounds = array<i64: 1, 96, 128>}]} {
    %c0 = arith.constant 0 : index
    %c0_0 = arith.constant 0 : index
    %c0_1 = arith.constant 0 : index
    %0 = vector.load %arg2[%c0, %c0_0, %c0_1] : memref<1x4x128xf32, #tpu.memory_space<vmem>>, vector<1x4x128xf32>
    %1 = vector.shape_cast %0 : vector<1x4x128xf32> to vector<4x128xf32>
    %c0_2 = arith.constant 0 : index
    %c0_3 = arith.constant 0 : index
    %c0_4 = arith.constant 0 : index
    %2 = vector.load %arg3[%c0_2, %c0_3, %c0_4] : memref<1x4x128xf32, #tpu.memory_space<vmem>>, vector<1x4x128xf32>
    %3 = vector.shape_cast %2 : vector<1x4x128xf32> to vector<4x128xf32>
    %4 = tpu.concatenate %1, %3 in 1 : vector<4x128xf32>, vector<4x128xf32> -> vector<4x256xf32>
    %5 = vector.extract_strided_slice %4 {offsets = [0, 0], sizes = [4, 128], strides = [1, 1]} : vector<4x256xf32> to vector<4x128xf32>
    %c0_5 = arith.constant 0 : index
    %c0_6 = arith.constant 0 : index
    %6 = vector.load %arg9[%c0_5, %c0_6] : memref<48x128xf32, #tpu.memory_space<vmem>>, vector<4x128xf32>
    tpu.vector_store %arg9[%c0_5, %c0_6], %5 {strides = array<i32>} : memref<48x128xf32, #tpu.memory_space<vmem>>, vector<4x128xf32>,
    %7 = vector.extract_strided_slice %4 {offsets = [0, 1], sizes = [4, 128], strides = [1, 1]} : vector<4x256xf32> to vector<4x128xf32>
    %c4 = arith.constant 4 : index
    %c0_7 = arith.constant 0 : index
    %8 = vector.load %arg9[%c4, %c0_7] : memref<48x128xf32, #tpu.memory_space<vmem>>, vector<4x128xf32>
    tpu.vector_store %arg9[%c4, %c0_7], %7 {strides = array<i32>} : memref<48x128xf32, #tpu.memory_space<vmem>>, vector<4x128xf32>,
    %9 = vector.extract_strided_slice %4 {offsets = [0, 2], sizes = [4, 128], strides = [1, 1]} : vector<4x256xf32> to vector<4x128xf32>
    %c8 = arith.constant 8 : index
    %c0_8 = arith.constant 0 : index
    %10 = vector.load %arg9[%c8, %c0_8] : memref<48x128xf32, #tpu.memory_space<vmem>>, vector<4x128xf32>
    tpu.vector_store %arg9[%c8, %c0_8], %9 {strides = array<i32>} : memref<48x128xf32, #tpu.memory_space<vmem>>, vector<4x128xf32>,
    %11 = vector.extract_strided_slice %4 {offsets = [0, 3], sizes = [4, 128], strides = [1, 1]} : vector<4x256xf32> to vector<4x128xf32>
    %c12 = arith.constant 12 : index
    %c0_9 = arith.constant 0 : index
    %12 = vector.load %arg9[%c12, %c0_9] : memref<48x128xf32, #tpu.memory_space<vmem>>, vector<4x128xf32>
    tpu.vector_store %arg9[%c12, %c0_9], %11 {strides = array<i32>} : memref<48x128xf32, #tpu.memory_space<vmem>>, vector<4x128xf32>,
    %13 = vector.extract_strided_slice %4 {offsets = [0, 4], sizes = [4, 128], strides = [1, 1]} : vector<4x256xf32> to vector<4x128xf32>
    %c16 = arith.constant 16 : index
    %c0_10 = arith.constant 0 : index
    %14 = vector.load %arg9[%c16, %c0_10] : memref<48x128xf32, #tpu.memory_space<vmem>>, vector<4x128xf32>
    tpu.vector_store %arg9[%c16, %c0_10], %13 {strides = array<i32>} : memref<48x128xf32, #tpu.memory_space<vmem>>, vector<4x128xf32>,
    %15 = vector.extract_strided_slice %4 {offsets = [0, 5], sizes = [4, 128], strides = [1, 1]} : vector<4x256xf32> to vector<4x128xf32>
    %c20 = arith.constant 20 : index
    %c0_11 = arith.constant 0 : index
    %16 = vector.load %arg9[%c20, %c0_11] : memref<48x128xf32, #tpu.memory_space<vmem>>, vector<4x128xf32>
    tpu.vector_store %arg9[%c20, %c0_11], %15 {strides = array<i32>} : memref<48x128xf32, #tpu.memory_space<vmem>>, vector<4x128xf32>,
    %17 = vector.extract_strided_slice %4 {offsets = [0, 6], sizes = [4, 128], strides = [1, 1]} : vector<4x256xf32> to vector<4x128xf32>
    %c24 = arith.constant 24 : index
    %c0_12 = arith.constant 0 : index
    %18 = vector.load %arg9[%c24, %c0_12] : memref<48x128xf32, #tpu.memory_space<vmem>>, vector<4x128xf32>
    tpu.vector_store %arg9[%c24, %c0_12], %17 {strides = array<i32>} : memref<48x128xf32, #tpu.memory_space<vmem>>, vector<4x128xf32>,
    %19 = vector.extract_strided_slice %4 {offsets = [0, 7], sizes = [4, 128], strides = [1, 1]} : vector<4x256xf32> to vector<4x128xf32>
    %c28 = arith.constant 28 : index
    %c0_13 = arith.constant 0 : index
    %20 = vector.load %arg9[%c28, %c0_13] : memref<48x128xf32, #tpu.memory_space<vmem>>, vector<4x128xf32>
    tpu.vector_store %arg9[%c28, %c0_13], %19 {strides = array<i32>} : memref<48x128xf32, #tpu.memory_space<vmem>>, vector<4x128xf32>,
    %21 = vector.extract_strided_slice %4 {offsets = [0, 8], sizes = [4, 128], strides = [1, 1]} : vector<4x256xf32> to vector<4x128xf32>
    %c32 = arith.constant 32 : index
    %c0_14 = arith.constant 0 : index
    %22 = vector.load %arg9[%c32, %c0_14] : memref<48x128xf32, #tpu.memory_space<vmem>>, vector<4x128xf32>
    tpu.vector_store %arg9[%c32, %c0_14], %21 {strides = array<i32>} : memref<48x128xf32, #tpu.memory_space<vmem>>, vector<4x128xf32>,
    %23 = vector.extract_strided_slice %4 {offsets = [0, 9], sizes = [4, 128], strides = [1, 1]} : vector<4x256xf32> to vector<4x128xf32>
    %c36 = arith.constant 36 : index
    %c0_15 = arith.constant 0 : index
    %24 = vector.load %arg9[%c36, %c0_15] : memref<48x128xf32, #tpu.memory_space<vmem>>, vector<4x128xf32>
    tpu.vector_store %arg9[%c36, %c0_15], %23 {strides = array<i32>} : memref<48x128xf32, #tpu.memory_space<vmem>>, vector<4x128xf32>,
    %25 = vector.extract_strided_slice %4 {offsets = [0, 10], sizes = [4, 128], strides = [1, 1]} : vector<4x256xf32> to vector<4x128xf32>
    %c40 = arith.constant 40 : index
    %c0_16 = arith.constant 0 : index
    %26 = vector.load %arg9[%c40, %c0_16] : memref<48x128xf32, #tpu.memory_space<vmem>>, vector<4x128xf32>
    tpu.vector_store %arg9[%c40, %c0_16], %25 {strides = array<i32>} : memref<48x128xf32, #tpu.memory_space<vmem>>, vector<4x128xf32>,
    %27 = vector.extract_strided_slice %4 {offsets = [0, 11], sizes = [4, 128], strides = [1, 1]} : vector<4x256xf32> to vector<4x128xf32>
    %c44 = arith.constant 44 : index
    %c0_17 = arith.constant 0 : index
    %28 = vector.load %arg9[%c44, %c0_17] : memref<48x128xf32, #tpu.memory_space<vmem>>, vector<4x128xf32>
    tpu.vector_store %arg9[%c44, %c0_17], %27 {strides = array<i32>} : memref<48x128xf32, #tpu.memory_space<vmem>>, vector<4x128xf32>,
    %c0_18 = arith.constant 0 : index
    %c0_19 = arith.constant 0 : index
    %29 = vector.load %arg4[%c0_18, %c0_19] : memref<96x48xf32, #tpu.memory_space<vmem>>, vector<96x48xf32>
    %c0_20 = arith.constant 0 : index
    %c0_21 = arith.constant 0 : index
    %30 = vector.load %arg9[%c0_20, %c0_21] : memref<48x128xf32, #tpu.memory_space<vmem>>, vector<48x128xf32>
    %cst = arith.constant dense<0.000000e+00> : vector<96x128xf32>
    %31 = tpu.matmul %29, %30, %cst {dimension_numbers = #tpu.dot_dimension_numbers<[1], [0], [0], [1], [0, 0, 1, 1], [], []>} : vector<96x48xf32>, vector<48x128xf32>, vector<96x128xf32> -> vector<96x128xf32>
    %c0_22 = arith.constant 0 : index
    %c0_23 = arith.constant 0 : index
    %32 = vector.load %arg5[%c0_22, %c0_23] : memref<96x1xf32, #tpu.memory_space<vmem>>, vector<96x1xf32>
    %33 = vector.broadcast %32 : vector<96x1xf32> to vector<96x128xf32>
    %34 = arith.mulf %31, %33 : vector<96x128xf32>
    %c0_24 = arith.constant 0 : index
    %c0_25 = arith.constant 0 : index
    %35 = vector.load %arg6[%c0_24, %c0_25] : memref<96x1xf32, #tpu.memory_space<vmem>>, vector<96x1xf32>
    %36 = vector.broadcast %35 : vector<96x1xf32> to vector<96x128xf32>
    %37 = arith.addf %34, %36 : vector<96x128xf32>
    %cst_26 = arith.constant 0.000000e+00 : f32
    %38 = vector.broadcast %cst_26 : f32 to vector<96x128xf32>
    %39 = arith.maximumf %37, %38 : vector<96x128xf32>
    %c0_27 = arith.constant 0 : index
    %c0_28 = arith.constant 0 : index
    %c0_29 = arith.constant 0 : index
    %40 = vector.load %arg7[%c0_27, %c0_28, %c0_29] : memref<1x96x1xf32, #tpu.memory_space<vmem>>, vector<1x96x1xf32>
    %41 = vector.shape_cast %40 : vector<1x96x1xf32> to vector<96x1xf32>
    %42 = vector.broadcast %41 : vector<96x1xf32> to vector<96x128xf32>
    %43 = arith.mulf %39, %42 : vector<96x128xf32>
    %c0_30 = arith.constant 0 : index
    %c0_31 = arith.constant 0 : index
    %c0_32 = arith.constant 0 : index
    %44 = vector.load %arg8[%c0_30, %c0_31, %c0_32] : memref<1x96x128xf32, #tpu.memory_space<vmem>>, vector<1x96x128xf32>
    %45 = vector.shape_cast %44 : vector<1x96x128xf32> to vector<96x128xf32>
    %46 = vector.shape_cast %43 : vector<96x128xf32> to vector<1x96x128xf32>
    tpu.vector_store %arg8[%c0_30, %c0_31, %c0_32], %46 {strides = array<i32>} : memref<1x96x128xf32, #tpu.memory_space<vmem>>, vector<1x96x128xf32>,
    return
  }
  func.func @transform_0(%arg0: i32, %arg1: i32) -> (i32, i32, i32) {
    %c0_i32 = arith.constant 0 : i32
    %c0_i32_0 = arith.constant 0 : i32
    return %arg0, %c0_i32, %arg1 : i32, i32, i32
  }
  func.func @transform_1(%arg0: i32, %arg1: i32) -> (i32, i32, i32) {
    %c1_i32 = arith.constant 1 : i32
    %0 = arith.addi %arg1, %c1_i32 : i32
    %c1_i32_0 = arith.constant 1 : i32
    %1 = arith.muli %0, %c1_i32_0 : i32
    %c0_i32 = arith.constant 0 : i32
    %c0_i32_1 = arith.constant 0 : i32
    return %arg0, %c0_i32, %1 : i32, i32, i32
  }
  func.func @transform_2(%arg0: i32, %arg1: i32) -> (i32, i32) {
    %c0_i32 = arith.constant 0 : i32
    %c0_i32_0 = arith.constant 0 : i32
    %c0_i32_1 = arith.constant 0 : i32
    return %c0_i32, %c0_i32_0 : i32, i32
  }
  func.func @transform_3(%arg0: i32, %arg1: i32) -> (i32, i32) {
    %c0_i32 = arith.constant 0 : i32
    %c0_i32_0 = arith.constant 0 : i32
    %c0_i32_1 = arith.constant 0 : i32
    return %c0_i32, %c0_i32_0 : i32, i32
  }
  func.func @transform_4(%arg0: i32, %arg1: i32) -> (i32, i32) {
    %c0_i32 = arith.constant 0 : i32
    %c0_i32_0 = arith.constant 0 : i32
    %c0_i32_1 = arith.constant 0 : i32
    return %c0_i32, %c0_i32_0 : i32, i32
  }
  func.func @transform_5(%arg0: i32, %arg1: i32) -> (i32, i32, i32) {
    %c0_i32 = arith.constant 0 : i32
    %c0_i32_0 = arith.constant 0 : i32
    %c0_i32_1 = arith.constant 0 : i32
    return %arg0, %c0_i32, %c0_i32_0 : i32, i32, i32
  }
  func.func @transform_6(%arg0: i32, %arg1: i32) -> (i32, i32, i32) {
    %c0_i32 = arith.constant 0 : i32
    %c0_i32_0 = arith.constant 0 : i32
    return %arg0, %c0_i32, %arg1 : i32, i32, i32
  }
}

</mosaic_0001>

<llo_original>
// kernel: macnn_block_forward.3
$region0: #{macnn_block_forward.3}
  #allocation0 [shape = 'u32[]', space=smem, size = 0x4, offset = 0x4, fixed_abs, tag = 'smem constant byte address 0x4 - core index']
  #allocation1 [shape = 'u32[144,128]{1,0:T(1,128)}', space=vmem, size = 0x12000, scoped, tag = 'internal scratch']
  #allocation2 [shape = 'f32[48,128]{1,0:T(8,128)}', space=vmem, size = 0x6000, scoped, tag = 'scratch operand']
  %s0 = inlined_call_operand.vmem [shape: f32[2,4,256], index: 0, kind: input, shape index: {}, may-alias: {0,1}]
  %s1 = inlined_call_operand.vmem [shape: f32[2,4,256], index: 1, kind: input, shape index: {}, may-alias: {0,1}]
  %s2 = inlined_call_operand.vmem [shape: f32[96,48], index: 2, kind: input, shape index: {}]
  %s3 = inlined_call_operand.vmem [shape: f32[2,96,1], index: 3, kind: output, shape index: {0}]
  %s4 = inlined_call_operand.vmem [shape: f32[2,96,1], index: 4, kind: output, shape index: {1}]
  %5 = xla_tuple %s3, %s4
  %s6 = sld [smem:[#allocation0]]
  $region57: #{macnn_block_forward.3} parent=0
    _
  %s8 = ssub.s32 1, %s6
  %s9 = scalar_select 0, %s8, %s6
  loop: start=0, step=1, limit=4
  $region2: #{macnn_block_forward.3} parent=0 // loop_pre_header
    _
  $region3: #{macnn_block_forward.3} parent=0 // loop_header
    %s11 = sphi 0, %s15
    %p12 = scmp.ge.s32.totalorder %s11, 4
    %s18 = sphi 0, %s30
    %s19 = sphi 0, %s26
    %s20 = sphi 0, %s18
    %s21 = sphi 0, %s19
    %s22 = sphi 0, %s20
    %s23 = sphi 0, %s21
    %s35 = sphi 0, %s37
    %s38 = sphi 0, %s35
    %s39 = sphi 0, %s38
    %s55 = sphi 0, %s39
    %s65 = sphi 0, %s67
    %s68 = sphi 0, %s65
    %s69 = sphi 0, %s68
    %s85 = sphi 0, %s69
    %s89 = sphi 0, %s89
    %s91 = sphi 0, %s89
    %s92 = sphi 0, %s91
    %s106 = sphi 0, %s92
    %s112 = sphi 0, %s114
    %s115 = sphi 0, %s112
    %s116 = sphi 0, %s115
    %s132 = sphi 0, %s116
    %s138 = sphi 0, %s140
    %s141 = sphi 0, %s138
    %s142 = sphi 0, %s141
    %s158 = sphi 0, %s142
  $region4: #{macnn_block_forward.3} parent=0 // loop_header_branch
    %14 = sbr.rel (%p12) target = $region8
  $region5: #{macnn_block_forward.3} parent=0 // loop_body
    %s16 = ssub.s32 %s11, 1
    %s17 = ssub.s32 %s11, 2
    %s24 = sadd.s32 1, %s19
    %p25 = scmp.ge.s32.totalorder %s24, 1
    %s26 = scalar_select %p25, 0, %s24
    %s27 = sadd.s32 1, %s18
    %s28 = scalar_select %p25, %s27, %s18
    %p29 = scmp.ge.s32.totalorder %s28, 2
    %s30 = scalar_select %p29, 0, %s28
    %s31 = ssub.s32 %s18, %s30
    %s32 = ssub.s32 %s19, %s26
    %s33 = sor.u32 %s31, %s32
    %p34 = scmp.eq.s32.totalorder %s33, 0
    %s36 = sadd.s32 %s35, 1
    %s37 = scalar_select %p34, %s35, %s36
    %p40 = pneg %p34
    %p41 = scmp.eq.s32.totalorder %s11, 1
    %p42 = por %p40, %p41
    %p43 = scmp.ne.s32.totalorder %s35, %s38
    %p44 = scmp.eq.s32.totalorder %s11, 0
    %p45 = por %p43, %p44
    %p46 = scmp.ne.s32.totalorder %s35, %s38
    %p47 = scmp.eq.s32.totalorder %s16, 1
    %p48 = por %p46, %p47
    %p49 = scmp.ne.s32.totalorder %s38, %s39
    %p50 = scmp.eq.s32.totalorder %s16, 0
    %p51 = por %p49, %p50
    %p52 = scmp.ne.s32.totalorder %s38, %s39
    %p53 = scmp.eq.s32.totalorder %s17, 1
    %p54 = por %p52, %p53
    %p56 = scmp.ne.s32.totalorder %s39, %s55
    %p57 = scmp.eq.s32.totalorder %s17, 0
    %p58 = por %p56, %p57
    %s59 = sadd.s32 %s19, 1
    %s60 = sadd.s32 %s26, 1
    %s61 = ssub.s32 %s18, %s30
    %s62 = ssub.s32 %s59, %s60
    %s63 = sor.u32 %s61, %s62
    %p64 = scmp.eq.s32.totalorder %s63, 0
    %s66 = sadd.s32 %s65, 1
    %s67 = scalar_select %p64, %s65, %s66
    %p70 = pneg %p64
    %p71 = scmp.eq.s32.totalorder %s11, 1
    %p72 = por %p70, %p71
    %p73 = scmp.ne.s32.totalorder %s65, %s68
    %p74 = scmp.eq.s32.totalorder %s11, 0
    %p75 = por %p73, %p74
    %p76 = scmp.ne.s32.totalorder %s65, %s68
    %p77 = scmp.eq.s32.totalorder %s16, 1
    %p78 = por %p76, %p77
    %p79 = scmp.ne.s32.totalorder %s68, %s69
    %p80 = scmp.eq.s32.totalorder %s16, 0
    %p81 = por %p79, %p80
    %p82 = scmp.ne.s32.totalorder %s68, %s69
    %p83 = scmp.eq.s32.totalorder %s17, 1
    %p84 = por %p82, %p83
    %p86 = scmp.ne.s32.totalorder %s69, %s85
    %p87 = scmp.eq.s32.totalorder %s17, 0
    %p88 = por %p86, %p87
    %s90 = sadd.s32 %s89, 1
    %p93 = scmp.eq.s32.totalorder %s11, 1
    %p94 = scmp.ne.s32.totalorder %s89, %s91
    %p95 = scmp.eq.s32.totalorder %s11, 0
    %p96 = por %p94, %p95
    %p97 = scmp.ne.s32.totalorder %s89, %s91
    %p98 = scmp.eq.s32.totalorder %s16, 1
    %p99 = por %p97, %p98
    %p100 = scmp.ne.s32.totalorder %s91, %s92
    %p101 = scmp.eq.s32.totalorder %s16, 0
    %p102 = por %p100, %p101
    %p103 = scmp.ne.s32.totalorder %s91, %s92
    %p104 = scmp.eq.s32.totalorder %s17, 1
    %p105 = por %p103, %p104
    %p107 = scmp.ne.s32.totalorder %s92, %s106
    %p108 = scmp.eq.s32.totalorder %s17, 0
    %p109 = por %p107, %p108
    %s110 = ssub.s32 %s18, %s30
    %p111 = scmp.eq.s32.totalorder %s110, 0
    %s113 = sadd.s32 %s112, 1
    %s114 = scalar_select %p111, %s112, %s113
    %p117 = pneg %p111
    %p118 = scmp.eq.s32.totalorder %s11, 1
    %p119 = por %p117, %p118
    %p120 = scmp.ne.s32.totalorder %s112, %s115
    %p121 = scmp.eq.s32.totalorder %s11, 0
    %p122 = por %p120, %p121
    %p123 = scmp.ne.s32.totalorder %s112, %s115
    %p124 = scmp.eq.s32.totalorder %s16, 1
    %p125 = por %p123, %p124
    %p126 = scmp.ne.s32.totalorder %s115, %s116
    %p127 = scmp.eq.s32.totalorder %s16, 0
    %p128 = por %p126, %p127
    %p129 = scmp.ne.s32.totalorder %s115, %s116
    %p130 = scmp.eq.s32.totalorder %s17, 1
    %p131 = por %p129, %p130
    %p133 = scmp.ne.s32.totalorder %s116, %s132
    %p134 = scmp.eq.s32.totalorder %s17, 0
    %p135 = por %p133, %p134
    %s136 = ssub.s32 %s18, %s30
    %p137 = scmp.eq.s32.totalorder %s136, 0
    %s139 = sadd.s32 %s138, 1
    %s140 = scalar_select %p137, %s138, %s139
    %p143 = pneg %p137
    %p144 = scmp.eq.s32.totalorder %s11, 1
    %p145 = por %p143, %p144
    %p146 = scmp.ne.s32.totalorder %s138, %s141
    %p147 = scmp.eq.s32.totalorder %s11, 0
    %p148 = por %p146, %p147
    %p149 = scmp.ne.s32.totalorder %s138, %s141
    %p150 = scmp.eq.s32.totalorder %s16, 1
    %p151 = por %p149, %p150
    %p152 = scmp.ne.s32.totalorder %s141, %s142
    %p153 = scmp.eq.s32.totalorder %s16, 0
    %p154 = por %p152, %p153
    %p155 = scmp.ne.s32.totalorder %s141, %s142
    %p156 = scmp.eq.s32.totalorder %s17, 1
    %p157 = por %p155, %p156
    %p159 = scmp.ne.s32.totalorder %s142, %s158
    %p160 = scmp.eq.s32.totalorder %s17, 0
    %p161 = por %p159, %p160
    %p162 = scmp.le.s32.totalorder 1, %s11
    %p163 = scmp.lt.s32.totalorder %s11, 3
    %p164 = pnand %p162, %p163
    %p165 = pneg %p164
    // Predicated region
    $region9: #{macnn_block_forward.3} parent=5 // pred_check
      _
    $region10: #{macnn_block_forward.3} parent=5 // pred_check_branch
      %167 = sbr.rel (%p164) target = $region12
    $region11: #{macnn_block_forward.3} parent=5 // pred_region
      %s168 = ssub.s32 %s11, 1
      // Predicated region
      $region13: #{macnn_block_forward.3} parent=11 // pred_check
        %p169 = pneg %p102
      $region14: #{macnn_block_forward.3} parent=11 // pred_check_branch
        %171 = sbr.rel (%p169) target = $region16
      $region15: #{macnn_block_forward.3} parent=11 // pred_region
        _
      $region16: #{macnn_block_forward.3} parent=11 // pred_fallthru
        _
    $region12: #{macnn_block_forward.3} parent=5 // pred_fallthru
      _
    %p172 = scmp.lt.s32.totalorder %s11, 2
    // Predicated region
    $region17: #{macnn_block_forward.3} parent=5 // pred_check
      %p173 = pneg %p172
    $region18: #{macnn_block_forward.3} parent=5 // pred_check_branch
      %175 = sbr.rel (%p173) target = $region20
    $region19: #{macnn_block_forward.3} parent=5 // pred_region
      // Predicated region
      $region21: #{macnn_block_forward.3} parent=19 // pred_check
        %p176 = pneg %p45
      $region22: #{macnn_block_forward.3} parent=19 // pred_check_branch
        %178 = sbr.rel (%p176) target = $region24
      $region23: #{macnn_block_forward.3} parent=19 // pred_region
        %p179 = scmp.lt.s32.totalorder %s18, 1
        %s180 = scalar_select %p179, %s18, 1
        %p181 = scmp.lt.s32.totalorder %s19, 1
        %s182 = scalar_select %p181, %s19, 1
        %s183 = smul.addr %s180, 2
        %s184 = sadd.s32 %s182, %s183
        %s185 = smul.addr %s184, 4
        %s186 = scalar_lea.vmem %s0, %s185
      $region24: #{macnn_block_forward.3} parent=19 // pred_fallthru
        _
      // Predicated region
      $region25: #{macnn_block_forward.3} parent=19 // pred_check
        %p187 = pneg %p75
      $region26: #{macnn_block_forward.3} parent=19 // pred_check_branch
        %189 = sbr.rel (%p187) target = $region28
      $region27: #{macnn_block_forward.3} parent=19 // pred_region
        %s190 = sadd.s32 %s19, 1
        %p191 = scmp.lt.s32.totalorder %s18, 1
        %s192 = scalar_select %p191, %s18, 1
        %p193 = scmp.lt.s32.totalorder %s190, 1
        %s194 = scalar_select %p193, %s190, 1
        %s195 = smul.addr %s192, 2
        %s196 = sadd.s32 %s194, %s195
        %s197 = smul.addr %s196, 4
        %s198 = scalar_lea.vmem %s1, %s197
        %s199 = sadd.s32 %s19, 1
      $region28: #{macnn_block_forward.3} parent=19 // pred_fallthru
        _
    $region20: #{macnn_block_forward.3} parent=5 // pred_fallthru
      _
    %p200 = scmp.le.s32.totalorder 1, %s11
    %p201 = scmp.lt.s32.totalorder %s11, 3
    %p202 = pnand %p200, %p201
    %p203 = pneg %p202
    // Predicated region
    $region29: #{macnn_block_forward.3} parent=5 // pred_check
      _
    $region30: #{macnn_block_forward.3} parent=5 // pred_check_branch
      %205 = sbr.rel (%p202) target = $region32
    $region31: #{macnn_block_forward.3} parent=5 // pred_region
      %s206 = ssub.s32 %s11, 1
      %p207 = scmp.lt.s32.totalorder %s20, 1
      %s208 = scalar_select %p207, %s20, 1
      %p209 = scmp.lt.s32.totalorder %s21, 1
      %s210 = scalar_select %p209, %s21, 1
      %s211 = smul.addr %s208, 2
      %s212 = sadd.s32 %s210, %s211
      %s213 = smul.addr %s212, 4
      %s214 = scalar_lea.vmem %s0, %s213
      %p215 = pneg %p51
      %p216 = pneg %p48
      %s217 = sadd.s32 %s21, 1
      %p218 = scmp.lt.s32.totalorder %s20, 1
      %s219 = scalar_select %p218, %s20, 1
      %p220 = scmp.lt.s32.totalorder %s217, 1
      %s221 = scalar_select %p220, %s217, 1
      %s222 = smul.addr %s219, 2
      %s223 = sadd.s32 %s221, %s222
      %s224 = smul.addr %s223, 4
      %s225 = scalar_lea.vmem %s1, %s224
      %p226 = pneg %p81
      %p227 = pneg %p78
      %p228 = pneg %p102
      %p229 = pneg %p99
      %p230 = pneg %p128
      %p231 = pneg %p125
      %p232 = scmp.lt.s32.totalorder %s20, 1
      %s233 = scalar_select %p232, %s20, 1
      %s234 = smul.addr %s233, 12
      %s235 = smul.addr %s234, 8
      %s236 = scalar_lea.vmem %s3, %s235
      %p237 = pneg %p154
      %p238 = pneg %p151
      %p239 = scmp.lt.s32.totalorder %s20, 1
      %s240 = scalar_select %p239, %s20, 1
      %s241 = smul.addr %s240, 12
      %s242 = smul.addr %s241, 8
      %s243 = scalar_lea.vmem %s4, %s242
      %p244 = scmp.lt.s32.totalorder %s20, 1
      %s245 = scalar_select %p244, %s20, 1
      %p246 = scmp.lt.s32.totalorder %s21, 1
      %s247 = scalar_select %p246, %s21, 1
      %s248 = smul.addr %s245, 2
      %s249 = sadd.s32 %s247, %s248
      %s250 = smul.addr %s249, 4
      %s251 = scalar_lea.vmem %s0, %s250
      %s252 = sadd.s32 %s21, 1
      %p253 = scmp.lt.s32.totalorder %s20, 1
      %s254 = scalar_select %p253, %s20, 1
      %p255 = scmp.lt.s32.totalorder %s252, 1
      %s256 = scalar_select %p255, %s252, 1
      %s257 = smul.addr %s254, 2
      %s258 = sadd.s32 %s256, %s257
      %s259 = smul.addr %s258, 4
      %s260 = scalar_lea.vmem %s1, %s259
      %s261 = sadd.s32 %s21, 1
      %p262 = scmp.lt.s32.totalorder %s20, 1
      %s263 = scalar_select %p262, %s20, 1
      %s264 = smul.addr %s263, 12
      %s265 = smul.addr %s264, 8
      %s266 = scalar_lea.vmem %s3, %s265
      %p267 = scmp.lt.s32.totalorder %s20, 1
      %s268 = scalar_select %p267, %s20, 1
      %s269 = smul.addr %s268, 12
      %s270 = smul.addr %s269, 8
      %s271 = scalar_lea.vmem %s4, %s270
      %p272 = scmp.eq.s32.totalorder %s21, 0
      // Predicated region
      $region33: #{macnn_block_forward.3} parent=31 // pred_check
        %p273 = pneg %p272
      $region34: #{macnn_block_forward.3} parent=31 // pred_check_branch
        %275 = sbr.rel (%p273) target = $region36
      $region35: #{macnn_block_forward.3} parent=31 // pred_region
        %vm276 = vcmask 7168
        %277 = vst.msk [vmem:[%s266] sm:$0xff] %vm276, 0.0
        %278 = vst.msk [vmem:[%s266 + $0x8] sm:$0xff] %vm276, 0.0
        %279 = vst.msk [vmem:[%s266 + $0x10] sm:$0xff] %vm276, 0.0
        %280 = vst.msk [vmem:[%s266 + $0x18] sm:$0xff] %vm276, 0.0
        %281 = vst.msk [vmem:[%s266 + $0x20] sm:$0xff] %vm276, 0.0
        %282 = vst.msk [vmem:[%s266 + $0x28] sm:$0xff] %vm276, 0.0
        %283 = vst.msk [vmem:[%s266 + $0x30] sm:$0xff] %vm276, 0.0
        %284 = vst.msk [vmem:[%s266 + $0x38] sm:$0xff] %vm276, 0.0
        %285 = vst.msk [vmem:[%s266 + $0x40] sm:$0xff] %vm276, 0.0
        %286 = vst.msk [vmem:[%s266 + $0x48] sm:$0xff] %vm276, 0.0
        %287 = vst.msk [vmem:[%s266 + $0x50] sm:$0xff] %vm276, 0.0
        %288 = vst.msk [vmem:[%s266 + $0x58] sm:$0xff] %vm276, 0.0
        %289 = vst.msk [vmem:[%s271] sm:$0xff] %vm276, 0.0
        %290 = vst.msk [vmem:[%s271 + $0x8] sm:$0xff] %vm276, 0.0
        %291 = vst.msk [vmem:[%s271 + $0x10] sm:$0xff] %vm276, 0.0
        %292 = vst.msk [vmem:[%s271 + $0x18] sm:$0xff] %vm276, 0.0
        %293 = vst.msk [vmem:[%s271 + $0x20] sm:$0xff] %vm276, 0.0
        %294 = vst.msk [vmem:[%s271 + $0x28] sm:$0xff] %vm276, 0.0
        %295 = vst.msk [vmem:[%s271 + $0x30] sm:$0xff] %vm276, 0.0
        %296 = vst.msk [vmem:[%s271 + $0x38] sm:$0xff] %vm276, 0.0
        %297 = vst.msk [vmem:[%s271 + $0x40] sm:$0xff] %vm276, 0.0
        %298 = vst.msk [vmem:[%s271 + $0x48] sm:$0xff] %vm276, 0.0
        %299 = vst.msk [vmem:[%s271 + $0x50] sm:$0xff] %vm276, 0.0
        %300 = vst.msk [vmem:[%s271 + $0x58] sm:$0xff] %vm276, 0.0
      $region36: #{macnn_block_forward.3} parent=31 // pred_fallthru
        _
      %v301 = vld [vmem:[%s251] sm:$0xf]
      %v302 = vld [vmem:[%s260] sm:$0xf]
      %303 = vst [vmem:[#allocation2] sm:$0xf] %v301
      %306 = vrot.lane.b32.xlu0 %v301, 127
      %v307 = vpop.permute.xlu0 %306
      %308 = vrot.lane.b32.xlu0 %v302, 127
      %v309 = vpop.permute.xlu0 %308
      %vm310 = vcmask 1039360
      %v311 = vsel %vm310, %v307, %v309
      %313 = vst [vmem:[#allocation2 + $0x4] sm:$0xf] %v311
      %314 = vrot.lane.b32.xlu0 %v301, 126
      %v315 = vpop.permute.xlu0 %314
      %316 = vrot.lane.b32.xlu0 %v302, 126
      %v317 = vpop.permute.xlu0 %316
      %vm318 = vcmask 1031168
      %v319 = vsel %vm318, %v315, %v317
      %321 = vst [vmem:[#allocation2 + $0x8] sm:$0xf] %v319
      %322 = vrot.lane.b32.xlu0 %v301, 125
      %v323 = vpop.permute.xlu0 %322
      %324 = vrot.lane.b32.xlu0 %v302, 125
      %v325 = vpop.permute.xlu0 %324
      %vm326 = vcmask 1022976
      %v327 = vsel %vm326, %v323, %v325
      %329 = vst [vmem:[#allocation2 + $0xc] sm:$0xf] %v327
      %330 = vrot.lane.b32.xlu0 %v301, 124
      %v331 = vpop.permute.xlu0 %330
      %332 = vrot.lane.b32.xlu0 %v302, 124
      %v333 = vpop.permute.xlu0 %332
      %vm334 = vcmask 1014784
      %v335 = vsel %vm334, %v331, %v333
      %337 = vst [vmem:[#allocation2 + $0x10] sm:$0xf] %v335
      %338 = vrot.lane.b32.xlu0 %v301, 123
      %v339 = vpop.permute.xlu0 %338
      %340 = vrot.lane.b32.xlu0 %v302, 123
      %v341 = vpop.permute.xlu0 %340
      %vm342 = vcmask 1006592
      %v343 = vsel %vm342, %v339, %v341
      %345 = vst [vmem:[#allocation2 + $0x14] sm:$0xf] %v343
      %346 = vrot.lane.b32.xlu0 %v301, 122
      %v347 = vpop.permute.xlu0 %346
      %348 = vrot.lane.b32.xlu0 %v302, 122
      %v349 = vpop.permute.xlu0 %348
      %vm350 = vcmask 998400
      %v351 = vsel %vm350, %v347, %v349
      %353 = vst [vmem:[#allocation2 + $0x18] sm:$0xf] %v351
      %354 = vrot.lane.b32.xlu0 %v301, 121
      %v355 = vpop.permute.xlu0 %354
      %356 = vrot.lane.b32.xlu0 %v302, 121
      %v357 = vpop.permute.xlu0 %356
      %vm358 = vcmask 990208
      %v359 = vsel %vm358, %v355, %v357
      %361 = vst [vmem:[#allocation2 + $0x1c] sm:$0xf] %v359
      %362 = vrot.lane.b32.xlu0 %v301, 120
      %v363 = vpop.permute.xlu0 %362
      %364 = vrot.lane.b32.xlu0 %v302, 120
      %v365 = vpop.permute.xlu0 %364
      %vm366 = vcmask 982016
      %v367 = vsel %vm366, %v363, %v365
      %369 = vst [vmem:[#allocation2 + $0x20] sm:$0xf] %v367
      %370 = vrot.lane.b32.xlu0 %v301, 119
      %v371 = vpop.permute.xlu0 %370
      %372 = vrot.lane.b32.xlu0 %v302, 119
      %v373 = vpop.permute.xlu0 %372
      %vm374 = vcmask 973824
      %v375 = vsel %vm374, %v371, %v373
      %377 = vst [vmem:[#allocation2 + $0x24] sm:$0xf] %v375
      %378 = vrot.lane.b32.xlu0 %v301, 118
      %v379 = vpop.permute.xlu0 %378
      %380 = vrot.lane.b32.xlu0 %v302, 118
      %v381 = vpop.permute.xlu0 %380
      %vm382 = vcmask 965632
      %v383 = vsel %vm382, %v379, %v381
      %385 = vst [vmem:[#allocation2 + $0x28] sm:$0xf] %v383
      %386 = vrot.lane.b32.xlu0 %v301, 117
      %v387 = vpop.permute.xlu0 %386
      %388 = vrot.lane.b32.xlu0 %v302, 117
      %v389 = vpop.permute.xlu0 %388
      %vm390 = vcmask 957440
      %v391 = vsel %vm390, %v387, %v389
      %393 = vst [vmem:[#allocation2 + $0x2c] sm:$0xf] %v391
      %v394 = vld [vmem:[%s2] sm:$0xff]
      %v395 = vld [vmem:[%s2 + $0x8] sm:$0xff]
      %v396 = vld [vmem:[%s2 + $0x10] sm:$0xff]
      %v397 = vld [vmem:[%s2 + $0x18] sm:$0xff]
      %v398 = vld [vmem:[%s2 + $0x20] sm:$0xff]
      %v399 = vld [vmem:[%s2 + $0x28] sm:$0xff]
      %v400 = vld [vmem:[%s2 + $0x30] sm:$0xff]
      %v401 = vld [vmem:[%s2 + $0x38] sm:$0xff]
      %v402 = vld [vmem:[%s2 + $0x40] sm:$0xff]
      %v403 = vld [vmem:[%s2 + $0x48] sm:$0xff]
      %v404 = vld [vmem:[%s2 + $0x50] sm:$0xff]
      %v405 = vld [vmem:[%s2 + $0x58] sm:$0xff]
      %v406 = vld [vmem:[#allocation2] sm:$0xff]
      %v407 = vld [vmem:[#allocation2 + $0x8] sm:$0xff]
      %v408 = vld [vmem:[#allocation2 + $0x10] sm:$0xff]
      %v409 = vld [vmem:[#allocation2 + $0x18] sm:$0xff]
      %v410 = vld [vmem:[#allocation2 + $0x20] sm:$0xff]
      %v411 = vld [vmem:[#allocation2 + $0x28] sm:$0xff]
      %vm412 = vcmask 392192
      %v414 = vsel %vm412, %v394, 0
      %v417 = vsel %vm412, %v395, 0
      %v420 = vsel %vm412, %v396, 0
      %v423 = vsel %vm412, %v397, 0
      %v426 = vsel %vm412, %v398, 0
      %v429 = vsel %vm412, %v399, 0
      %v432 = vsel %vm412, %v400, 0
      %v435 = vsel %vm412, %v401, 0
      %v438 = vsel %vm412, %v402, 0
      %v441 = vsel %vm412, %v403, 0
      %v444 = vsel %vm412, %v404, 0
      %v447 = vsel %vm412, %v405, 0
      %449 = vmatprep.subr.mxu0 0.0
      %450 = vmatpush1.msra.mxu0 %v406
      %451 = vmatprep.subr.mxu0 0.0
      %452 = vmatpush1.msra.mxu0 %v407
      %453 = vmatprep.subr.mxu0 0.0
      %454 = vmatpush1.msra.mxu0 %v408
      %455 = vmatprep.subr.mxu0 0.0
      %456 = vmatpush1.msra.mxu0 %v409
      %457 = vmatprep.subr.mxu0 0.0
      %458 = vmatpush1.msra.mxu0 %v410
      %459 = vmatprep.subr.mxu0 0.0
      %460 = vmatpush1.msra.mxu0 %v411
      %461 = vmatprep.subr.mxu0 0.0
      %462 = vmatpush1.msra.mxu0 0.0
      %463 = vmatprep.subr.mxu0 0.0
      %464 = vmatpush1.msra.mxu0 0.0
      %465 = vmatprep.subr.mxu0 0.0
      %466 = vmatpush1.msra.mxu0 0.0
      %467 = vmatprep.subr.mxu0 0.0
      %468 = vmatpush1.msra.mxu0 0.0
      %469 = vmatprep.subr.mxu0 0.0
      %470 = vmatpush1.msra.mxu0 0.0
      %471 = vmatprep.subr.mxu0 0.0
      %472 = vmatpush1.msra.mxu0 0.0
      %473 = vmatprep.subr.mxu0 0.0
      %474 = vmatpush1.msra.mxu0 0.0
      %475 = vmatprep.subr.mxu0 0.0
      %476 = vmatpush1.msra.mxu0 0.0
      %477 = vmatprep.subr.mxu0 0.0
      %478 = vmatpush1.msra.mxu0 0.0
      %479 = vmatprep.subr.mxu0 0.0
      %480 = vmatpush1.msra.mxu0 0.0
      %481 = vmatprep.subr.mxu0 0.0
      %482 = vmatpush1.msra.mxu0 0.0
      %483 = vmatprep.subr.mxu0 0.0
      %484 = vmatpush1.msra.mxu0 0.0
      %485 = vmatprep.subr.mxu0 0.0
      %486 = vmatpush1.msra.mxu0 0.0
      %487 = vmatprep.subr.mxu0 0.0
      %488 = vmatpush1.msra.mxu0 0.0
      %489 = vmatprep.subr.mxu0 0.0
      %490 = vmatpush1.msra.mxu0 0.0
      %491 = vmatprep.subr.mxu0 0.0
      %492 = vmatpush1.msra.mxu0 0.0
      %493 = vmatprep.subr.mxu0 0.0
      %494 = vmatpush1.msra.mxu0 0.0
      %495 = vmatprep.subr.mxu0 0.0
      %496 = vmatpush1.msra.mxu0 0.0
      %497 = vmatprep.subr.mxu0 0.0
      %498 = vmatpush1.msra.mxu0 0.0
      %499 = vmatprep.subr.mxu0 0.0
      %500 = vmatpush1.msra.mxu0 0.0
      %501 = vmatprep.subr.mxu0 0.0
      %502 = vmatpush1.msra.mxu0 0.0
      %503 = vmatprep.subr.mxu0 0.0
      %504 = vmatpush1.msra.mxu0 0.0
      %505 = vmatprep.subr.mxu0 0.0
      %506 = vmatpush1.msra.mxu0 0.0
      %507 = vmatprep.subr.mxu0 0.0
      %508 = vmatpush1.msra.mxu0 0.0
      %509 = vmatprep.subr.mxu0 0.0
      %510 = vmatpush1.msra.mxu0 0.0
      %511 = vmatprep.subr.mxu0 0.0
      %512 = vmatpush1.msra.mxu0 0.0
      %513 = vmatprep.mubr.f32.mxu0 0.0
      %514 = vmatmul.mubr.f32.gmra.mrb[0].mxu0 %v414
      %v515 = vpop.f32.mrb[0].mxu0
      %v516 = vadd.f32 0.0, %v515
      %v517 = vpop.f32.mrb[0].mxu0
      %518 = vmatprep.mubr.f32.mxu0 0.0
      %519 = vmatmul.mubr.f32.gmra.mrb[0].mxu0 %v417
      %v520 = vpop.f32.mrb[0].mxu0
      %v521 = vadd.f32 0.0, %v520
      %v522 = vpop.f32.mrb[0].mxu0
      %523 = vmatprep.mubr.f32.mxu0 0.0
      %524 = vmatmul.mubr.f32.gmra.mrb[0].mxu0 %v420
      %v525 = vpop.f32.mrb[0].mxu0
      %v526 = vadd.f32 0.0, %v525
      %v527 = vpop.f32.mrb[0].mxu0
      %528 = vmatprep.mubr.f32.mxu0 0.0
      %529 = vmatmul.mubr.f32.gmra.mrb[0].mxu0 %v423
      %v530 = vpop.f32.mrb[0].mxu0
      %v531 = vadd.f32 0.0, %v530
      %v532 = vpop.f32.mrb[0].mxu0
      %533 = vmatprep.mubr.f32.mxu0 0.0
      %534 = vmatmul.mubr.f32.gmra.mrb[0].mxu0 %v426
      %v535 = vpop.f32.mrb[0].mxu0
      %v536 = vadd.f32 0.0, %v535
      %v537 = vpop.f32.mrb[0].mxu0
      %538 = vmatprep.mubr.f32.mxu0 0.0
      %539 = vmatmul.mubr.f32.gmra.mrb[0].mxu0 %v429
      %v540 = vpop.f32.mrb[0].mxu0
      %v541 = vadd.f32 0.0, %v540
      %v542 = vpop.f32.mrb[0].mxu0
      %543 = vmatprep.mubr.f32.mxu0 0.0
      %544 = vmatmul.mubr.f32.gmra.mrb[0].mxu0 %v432
      %v545 = vpop.f32.mrb[0].mxu0
      %v546 = vadd.f32 0.0, %v545
      %v547 = vpop.f32.mrb[0].mxu0
      %548 = vmatprep.mubr.f32.mxu0 0.0
      %549 = vmatmul.mubr.f32.gmra.mrb[0].mxu0 %v435
      %v550 = vpop.f32.mrb[0].mxu0
      %v551 = vadd.f32 0.0, %v550
      %v552 = vpop.f32.mrb[0].mxu0
      %553 = vmatprep.mubr.f32.mxu0 0.0
      %554 = vmatmul.mubr.f32.gmra.mrb[0].mxu0 %v438
      %v555 = vpop.f32.mrb[0].mxu0
      %v556 = vadd.f32 0.0, %v555
      %v557 = vpop.f32.mrb[0].mxu0
      %558 = vmatprep.mubr.f32.mxu0 0.0
      %559 = vmatmul.mubr.f32.gmra.mrb[0].mxu0 %v441
      %v560 = vpop.f32.mrb[0].mxu0
      %v561 = vadd.f32 0.0, %v560
      %v562 = vpop.f32.mrb[0].mxu0
      %563 = vmatprep.mubr.f32.mxu0 0.0
      %564 = vmatmul.mubr.f32.gmra.mrb[0].mxu0 %v444
      %v565 = vpop.f32.mrb[0].mxu0
      %v566 = vadd.f32 0.0, %v565
      %v567 = vpop.f32.mrb[0].mxu0
      %568 = vmatprep.mubr.f32.mxu0 0.0
      %569 = vmatmul.mubr.f32.gmra.mrb[0].mxu0 %v447
      %v570 = vpop.f32.mrb[0].mxu0
      %v571 = vadd.f32 0.0, %v570
      %v572 = vpop.f32.mrb[0].mxu0
      %573 = vdwg.mxu0
      %v574 = vlaneseq
      %v575 = vand.u32 %v574, 127
      %s576 = smul.u32 %s21, 128
      %v577 = vstv %s576
      %v578 = vadd.s32 %v575, %v577
      %vm579 = vcmp.lt.s32.totalorder %v578, 16
      %v580 = vsel %vm579, 1, 0
      %vm581 = vcmp.eq.s32.totalorder %v580, 1
      %v582 = vsel %vm581, %v516, 0.0
      %v583 = vsel %vm581, %v521, 0.0
      %v584 = vsel %vm581, %v526, 0.0
      %v585 = vsel %vm581, %v531, 0.0
      %v586 = vsel %vm581, %v536, 0.0
      %v587 = vsel %vm581, %v541, 0.0
      %v588 = vsel %vm581, %v546, 0.0
      %v589 = vsel %vm581, %v551, 0.0
      %v590 = vsel %vm581, %v556, 0.0
      %v591 = vsel %vm581, %v561, 0.0
      %v592 = vsel %vm581, %v566, 0.0
      %v593 = vsel %vm581, %v571, 0.0
      %v594 = vld [vmem:[%s266] sm:$0xff]
      %v595 = vld [vmem:[%s266 + $0x8] sm:$0xff]
      %v596 = vld [vmem:[%s266 + $0x10] sm:$0xff]
      %v597 = vld [vmem:[%s266 + $0x18] sm:$0xff]
      %v598 = vld [vmem:[%s266 + $0x20] sm:$0xff]
      %v599 = vld [vmem:[%s266 + $0x28] sm:$0xff]
      %v600 = vld [vmem:[%s266 + $0x30] sm:$0xff]
      %v601 = vld [vmem:[%s266 + $0x38] sm:$0xff]
      %v602 = vld [vmem:[%s266 + $0x40] sm:$0xff]
      %v603 = vld [vmem:[%s266 + $0x48] sm:$0xff]
      %v604 = vld [vmem:[%s266 + $0x50] sm:$0xff]
      %v605 = vld [vmem:[%s266 + $0x58] sm:$0xff]
      %606 = vadd.xlane.f32.xlu0 %v582
      %v607 = vpop.xlane.xlu0 %606
      %608 = vadd.xlane.f32.xlu0 %v583
      %v609 = vpop.xlane.xlu0 %608
      %610 = vadd.xlane.f32.xlu0 %v584
      %v611 = vpop.xlane.xlu0 %610
      %612 = vadd.xlane.f32.xlu0 %v585
      %v613 = vpop.xlane.xlu0 %612
      %614 = vadd.xlane.f32.xlu0 %v586
      %v615 = vpop.xlane.xlu0 %614
      %616 = vadd.xlane.f32.xlu0 %v587
      %v617 = vpop.xlane.xlu0 %616
      %618 = vadd.xlane.f32.xlu0 %v588
      %v619 = vpop.xlane.xlu0 %618
      %620 = vadd.xlane.f32.xlu0 %v589
      %v621 = vpop.xlane.xlu0 %620
      %622 = vadd.xlane.f32.xlu0 %v590
      %v623 = vpop.xlane.xlu0 %622
      %624 = vadd.xlane.f32.xlu0 %v591
      %v625 = vpop.xlane.xlu0 %624
      %626 = vadd.xlane.f32.xlu0 %v592
      %v627 = vpop.xlane.xlu0 %626
      %628 = vadd.xlane.f32.xlu0 %v593
      %v629 = vpop.xlane.xlu0 %628
      %v630 = vadd.f32 %v594, %v607
      %v631 = vadd.f32 %v595, %v609
      %v632 = vadd.f32 %v596, %v611
      %v633 = vadd.f32 %v597, %v613
      %v634 = vadd.f32 %v598, %v615
      %v635 = vadd.f32 %v599, %v617
      %v636 = vadd.f32 %v600, %v619
      %v637 = vadd.f32 %v601, %v621
      %v638 = vadd.f32 %v602, %v623
      %v639 = vadd.f32 %v603, %v625
      %v640 = vadd.f32 %v604, %v627
      %v641 = vadd.f32 %v605, %v629
      %vm642 = vcmask 7168
      %643 = vst.msk [vmem:[%s266] sm:$0xff] %vm642, %v630
      %644 = vst.msk [vmem:[%s266 + $0x8] sm:$0xff] %vm642, %v631
      %645 = vst.msk [vmem:[%s266 + $0x10] sm:$0xff] %vm642, %v632
      %646 = vst.msk [vmem:[%s266 + $0x18] sm:$0xff] %vm642, %v633
      %647 = vst.msk [vmem:[%s266 + $0x20] sm:$0xff] %vm642, %v634
      %648 = vst.msk [vmem:[%s266 + $0x28] sm:$0xff] %vm642, %v635
      %649 = vst.msk [vmem:[%s266 + $0x30] sm:$0xff] %vm642, %v636
      %650 = vst.msk [vmem:[%s266 + $0x38] sm:$0xff] %vm642, %v637
      %651 = vst.msk [vmem:[%s266 + $0x40] sm:$0xff] %vm642, %v638
      %652 = vst.msk [vmem:[%s266 + $0x48] sm:$0xff] %vm642, %v639
      %653 = vst.msk [vmem:[%s266 + $0x50] sm:$0xff] %vm642, %v640
      %654 = vst.msk [vmem:[%s266 + $0x58] sm:$0xff] %vm642, %v641
      %v655 = vld [vmem:[%s271] sm:$0xff]
      %v656 = vld [vmem:[%s271 + $0x8] sm:$0xff]
      %v657 = vld [vmem:[%s271 + $0x10] sm:$0xff]
      %v658 = vld [vmem:[%s271 + $0x18] sm:$0xff]
      %v659 = vld [vmem:[%s271 + $0x20] sm:$0xff]
      %v660 = vld [vmem:[%s271 + $0x28] sm:$0xff]
      %v661 = vld [vmem:[%s271 + $0x30] sm:$0xff]
      %v662 = vld [vmem:[%s271 + $0x38] sm:$0xff]
      %v663 = vld [vmem:[%s271 + $0x40] sm:$0xff]
      %v664 = vld [vmem:[%s271 + $0x48] sm:$0xff]
      %v665 = vld [vmem:[%s271 + $0x50] sm:$0xff]
      %v666 = vld [vmem:[%s271 + $0x58] sm:$0xff]
      %v667 = vmul.f32 %v582, %v582
      %v668 = vmul.f32 %v583, %v583
      %v669 = vmul.f32 %v584, %v584
      %v670 = vmul.f32 %v585, %v585
      %v671 = vmul.f32 %v586, %v586
      %v672 = vmul.f32 %v587, %v587
      %v673 = vmul.f32 %v588, %v588
      %v674 = vmul.f32 %v589, %v589
      %v675 = vmul.f32 %v590, %v590
      %v676 = vmul.f32 %v591, %v591
      %v677 = vmul.f32 %v592, %v592
      %v678 = vmul.f32 %v593, %v593
      %679 = vadd.xlane.f32.xlu0 %v667
      %v680 = vpop.xlane.xlu0 %679
      %681 = vadd.xlane.f32.xlu0 %v668
      %v682 = vpop.xlane.xlu0 %681
      %683 = vadd.xlane.f32.xlu0 %v669
      %v684 = vpop.xlane.xlu0 %683
      %685 = vadd.xlane.f32.xlu0 %v670
      %v686 = vpop.xlane.xlu0 %685
      %687 = vadd.xlane.f32.xlu0 %v671
      %v688 = vpop.xlane.xlu0 %687
      %689 = vadd.xlane.f32.xlu0 %v672
      %v690 = vpop.xlane.xlu0 %689
      %691 = vadd.xlane.f32.xlu0 %v673
      %v692 = vpop.xlane.xlu0 %691
      %693 = vadd.xlane.f32.xlu0 %v674
      %v694 = vpop.xlane.xlu0 %693
      %695 = vadd.xlane.f32.xlu0 %v675
      %v696 = vpop.xlane.xlu0 %695
      %697 = vadd.xlane.f32.xlu0 %v676
      %v698 = vpop.xlane.xlu0 %697
      %699 = vadd.xlane.f32.xlu0 %v677
      %v700 = vpop.xlane.xlu0 %699
      %701 = vadd.xlane.f32.xlu0 %v678
      %v702 = vpop.xlane.xlu0 %701
      %v703 = vadd.f32 %v655, %v680
      %v704 = vadd.f32 %v656, %v682
      %v705 = vadd.f32 %v657, %v684
      %v706 = vadd.f32 %v658, %v686
      %v707 = vadd.f32 %v659, %v688
      %v708 = vadd.f32 %v660, %v690
      %v709 = vadd.f32 %v661, %v692
      %v710 = vadd.f32 %v662, %v694
      %v711 = vadd.f32 %v663, %v696
      %v712 = vadd.f32 %v664, %v698
      %v713 = vadd.f32 %v665, %v700
      %v714 = vadd.f32 %v666, %v702
      %715 = vst.msk [vmem:[%s271] sm:$0xff] %vm642, %v703
      %716 = vst.msk [vmem:[%s271 + $0x8] sm:$0xff] %vm642, %v704
      %717 = vst.msk [vmem:[%s271 + $0x10] sm:$0xff] %vm642, %v705
      %718 = vst.msk [vmem:[%s271 + $0x18] sm:$0xff] %vm642, %v706
      %719 = vst.msk [vmem:[%s271 + $0x20] sm:$0xff] %vm642, %v707
      %720 = vst.msk [vmem:[%s271 + $0x28] sm:$0xff] %vm642, %v708
      %721 = vst.msk [vmem:[%s271 + $0x30] sm:$0xff] %vm642, %v709
      %722 = vst.msk [vmem:[%s271 + $0x38] sm:$0xff] %vm642, %v710
      %723 = vst.msk [vmem:[%s271 + $0x40] sm:$0xff] %vm642, %v711
      %724 = vst.msk [vmem:[%s271 + $0x48] sm:$0xff] %vm642, %v712
      %725 = vst.msk [vmem:[%s271 + $0x50] sm:$0xff] %vm642, %v713
      %726 = vst.msk [vmem:[%s271 + $0x58] sm:$0xff] %vm642, %v714
      %p727 = scmp.lt.s32.totalorder %s20, 1
      %s728 = scalar_select %p727, %s20, 1
      %s729 = smul.addr %s728, 12
      %s730 = smul.addr %s729, 8
      %s731 = scalar_lea.vmem %s3, %s730
      %p732 = scmp.lt.s32.totalorder %s20, 1
      %s733 = scalar_select %p732, %s20, 1
      %s734 = smul.addr %s733, 12
      %s735 = smul.addr %s734, 8
      %s736 = scalar_lea.vmem %s4, %s735
      // Predicated region
      $region37: #{macnn_block_forward.3} parent=31 // pred_check
        %p737 = pneg %p125
      $region38: #{macnn_block_forward.3} parent=31 // pred_check_branch
        %739 = sbr.rel (%p737) target = $region40
      $region39: #{macnn_block_forward.3} parent=31 // pred_region
        _
      $region40: #{macnn_block_forward.3} parent=31 // pred_fallthru
        _
      // Predicated region
      $region41: #{macnn_block_forward.3} parent=31 // pred_check
        %p740 = pneg %p151
      $region42: #{macnn_block_forward.3} parent=31 // pred_check_branch
        %742 = sbr.rel (%p740) target = $region44
      $region43: #{macnn_block_forward.3} parent=31 // pred_region
        _
      $region44: #{macnn_block_forward.3} parent=31 // pred_fallthru
        _
    $region32: #{macnn_block_forward.3} parent=5 // pred_fallthru
      _
    %p743 = scmp.le.s32.totalorder 2, %s11
    // Predicated region
    $region45: #{macnn_block_forward.3} parent=5 // pred_check
      %p744 = pneg %p743
    $region46: #{macnn_block_forward.3} parent=5 // pred_check_branch
      %746 = sbr.rel (%p744) target = $region48
    $region47: #{macnn_block_forward.3} parent=5 // pred_region
      %s747 = ssub.s32 %s11, 2
      // Predicated region
      $region49: #{macnn_block_forward.3} parent=47 // pred_check
        %p748 = pneg %p131
      $region50: #{macnn_block_forward.3} parent=47 // pred_check_branch
        %750 = sbr.rel (%p748) target = $region52
      $region51: #{macnn_block_forward.3} parent=47 // pred_region
        %p751 = scmp.lt.s32.totalorder %s22, 1
        %s752 = scalar_select %p751, %s22, 1
        %s753 = smul.addr %s752, 12
        %s754 = smul.addr %s753, 8
        %s755 = scalar_lea.vmem %s3, %s754
      $region52: #{macnn_block_forward.3} parent=47 // pred_fallthru
        _
      // Predicated region
      $region53: #{macnn_block_forward.3} parent=47 // pred_check
        %p756 = pneg %p157
      $region54: #{macnn_block_forward.3} parent=47 // pred_check_branch
        %758 = sbr.rel (%p756) target = $region56
      $region55: #{macnn_block_forward.3} parent=47 // pred_region
        %p759 = scmp.lt.s32.totalorder %s22, 1
        %s760 = scalar_select %p759, %s22, 1
        %s761 = smul.addr %s760, 12
        %s762 = smul.addr %s761, 8
        %s763 = scalar_lea.vmem %s4, %s762
      $region56: #{macnn_block_forward.3} parent=47 // pred_fallthru
        _
    $region48: #{macnn_block_forward.3} parent=5 // pred_fallthru
      _
  $region6: #{macnn_block_forward.3} parent=0 // loop_footer
    %s15 = sadd.s32 1, %s11
  $region7: #{macnn_block_forward.3} parent=0 // loop_footer_branch
    %10 = sbr.rel target = $region3
  $region8: #{macnn_block_forward.3} parent=0 // loop_exit
    _

// kernel: macnn_block_forward.5
$region0: #{macnn_block_forward.5}
  #allocation0 [shape = 'u32[]', space=smem, size = 0x4, offset = 0x4, fixed_abs, tag = 'smem constant byte address 0x4 - core index']
  #allocation1 [shape = 'u32[144,128]{1,0:T(1,128)}', space=vmem, size = 0x12000, scoped, tag = 'internal scratch']
  #allocation2 [shape = 'f32[48,128]{1,0:T(8,128)}', space=vmem, size = 0x6000, scoped, tag = 'scratch operand']
  %s0 = inlined_call_operand.vmem [shape: f32[2,4,256], index: 0, kind: input, shape index: {}, may-alias: {0,1}]
  %s1 = inlined_call_operand.vmem [shape: f32[2,4,256], index: 1, kind: input, shape index: {}, may-alias: {0,1}]
  %s2 = inlined_call_operand.vmem [shape: f32[96,48], index: 2, kind: input, shape index: {}]
  %s3 = inlined_call_operand.vmem [shape: f32[96,1], index: 3, kind: input, shape index: {}]
  %s4 = inlined_call_operand.vmem [shape: f32[96,1], index: 4, kind: input, shape index: {}]
  %s5 = inlined_call_operand.vmem [shape: f32[2,96,1], index: 5, kind: input, shape index: {}]
  %s6 = inlined_call_operand.vmem [shape: f32[2,96,128], index: 6, kind: output, shape index: {}]
  %s7 = sld [smem:[#allocation0]]
  $region57: #{macnn_block_forward.5} parent=0
    _
  %s9 = ssub.s32 1, %s7
  %s10 = scalar_select 0, %s9, %s7
  loop: start=0, step=1, limit=4
  $region2: #{macnn_block_forward.5} parent=0 // loop_pre_header
    _
  $region3: #{macnn_block_forward.5} parent=0 // loop_header
    %s12 = sphi 0, %s16
    %p13 = scmp.ge.s32.totalorder %s12, 4
    %s19 = sphi 0, %s31
    %s20 = sphi 0, %s27
    %s21 = sphi 0, %s19
    %s22 = sphi 0, %s20
    %s23 = sphi 0, %s21
    %s24 = sphi 0, %s22
    %s36 = sphi 0, %s38
    %s39 = sphi 0, %s36
    %s40 = sphi 0, %s39
    %s56 = sphi 0, %s40
    %s66 = sphi 0, %s68
    %s69 = sphi 0, %s66
    %s70 = sphi 0, %s69
    %s86 = sphi 0, %s70
    %s90 = sphi 0, %s90
    %s92 = sphi 0, %s90
    %s93 = sphi 0, %s92
    %s107 = sphi 0, %s93
    %s111 = sphi 0, %s111
    %s113 = sphi 0, %s111
    %s114 = sphi 0, %s113
    %s128 = sphi 0, %s114
    %s132 = sphi 0, %s132
    %s134 = sphi 0, %s132
    %s135 = sphi 0, %s134
    %s149 = sphi 0, %s135
    %s155 = sphi 0, %s157
    %s158 = sphi 0, %s155
    %s159 = sphi 0, %s158
    %s175 = sphi 0, %s159
    %s183 = sphi 0, %s185
    %s186 = sphi 0, %s183
    %s187 = sphi 0, %s186
    %s203 = sphi 0, %s187
  $region4: #{macnn_block_forward.5} parent=0 // loop_header_branch
    %15 = sbr.rel (%p13) target = $region8
  $region5: #{macnn_block_forward.5} parent=0 // loop_body
    %s17 = ssub.s32 %s12, 1
    %s18 = ssub.s32 %s12, 2
    %s25 = sadd.s32 1, %s20
    %p26 = scmp.ge.s32.totalorder %s25, 1
    %s27 = scalar_select %p26, 0, %s25
    %s28 = sadd.s32 1, %s19
    %s29 = scalar_select %p26, %s28, %s19
    %p30 = scmp.ge.s32.totalorder %s29, 2
    %s31 = scalar_select %p30, 0, %s29
    %s32 = ssub.s32 %s19, %s31
    %s33 = ssub.s32 %s20, %s27
    %s34 = sor.u32 %s32, %s33
    %p35 = scmp.eq.s32.totalorder %s34, 0
    %s37 = sadd.s32 %s36, 1
    %s38 = scalar_select %p35, %s36, %s37
    %p41 = pneg %p35
    %p42 = scmp.eq.s32.totalorder %s12, 1
    %p43 = por %p41, %p42
    %p44 = scmp.ne.s32.totalorder %s36, %s39
    %p45 = scmp.eq.s32.totalorder %s12, 0
    %p46 = por %p44, %p45
    %p47 = scmp.ne.s32.totalorder %s36, %s39
    %p48 = scmp.eq.s32.totalorder %s17, 1
    %p49 = por %p47, %p48
    %p50 = scmp.ne.s32.totalorder %s39, %s40
    %p51 = scmp.eq.s32.totalorder %s17, 0
    %p52 = por %p50, %p51
    %p53 = scmp.ne.s32.totalorder %s39, %s40
    %p54 = scmp.eq.s32.totalorder %s18, 1
    %p55 = por %p53, %p54
    %p57 = scmp.ne.s32.totalorder %s40, %s56
    %p58 = scmp.eq.s32.totalorder %s18, 0
    %p59 = por %p57, %p58
    %s60 = sadd.s32 %s20, 1
    %s61 = sadd.s32 %s27, 1
    %s62 = ssub.s32 %s19, %s31
    %s63 = ssub.s32 %s60, %s61
    %s64 = sor.u32 %s62, %s63
    %p65 = scmp.eq.s32.totalorder %s64, 0
    %s67 = sadd.s32 %s66, 1
    %s68 = scalar_select %p65, %s66, %s67
    %p71 = pneg %p65
    %p72 = scmp.eq.s32.totalorder %s12, 1
    %p73 = por %p71, %p72
    %p74 = scmp.ne.s32.totalorder %s66, %s69
    %p75 = scmp.eq.s32.totalorder %s12, 0
    %p76 = por %p74, %p75
    %p77 = scmp.ne.s32.totalorder %s66, %s69
    %p78 = scmp.eq.s32.totalorder %s17, 1
    %p79 = por %p77, %p78
    %p80 = scmp.ne.s32.totalorder %s69, %s70
    %p81 = scmp.eq.s32.totalorder %s17, 0
    %p82 = por %p80, %p81
    %p83 = scmp.ne.s32.totalorder %s69, %s70
    %p84 = scmp.eq.s32.totalorder %s18, 1
    %p85 = por %p83, %p84
    %p87 = scmp.ne.s32.totalorder %s70, %s86
    %p88 = scmp.eq.s32.totalorder %s18, 0
    %p89 = por %p87, %p88
    %s91 = sadd.s32 %s90, 1
    %p94 = scmp.eq.s32.totalorder %s12, 1
    %p95 = scmp.ne.s32.totalorder %s90, %s92
    %p96 = scmp.eq.s32.totalorder %s12, 0
    %p97 = por %p95, %p96
    %p98 = scmp.ne.s32.totalorder %s90, %s92
    %p99 = scmp.eq.s32.totalorder %s17, 1
    %p100 = por %p98, %p99
    %p101 = scmp.ne.s32.totalorder %s92, %s93
    %p102 = scmp.eq.s32.totalorder %s17, 0
    %p103 = por %p101, %p102
    %p104 = scmp.ne.s32.totalorder %s92, %s93
    %p105 = scmp.eq.s32.totalorder %s18, 1
    %p106 = por %p104, %p105
    %p108 = scmp.ne.s32.totalorder %s93, %s107
    %p109 = scmp.eq.s32.totalorder %s18, 0
    %p110 = por %p108, %p109
    %s112 = sadd.s32 %s111, 1
    %p115 = scmp.eq.s32.totalorder %s12, 1
    %p116 = scmp.ne.s32.totalorder %s111, %s113
    %p117 = scmp.eq.s32.totalorder %s12, 0
    %p118 = por %p116, %p117
    %p119 = scmp.ne.s32.totalorder %s111, %s113
    %p120 = scmp.eq.s32.totalorder %s17, 1
    %p121 = por %p119, %p120
    %p122 = scmp.ne.s32.totalorder %s113, %s114
    %p123 = scmp.eq.s32.totalorder %s17, 0
    %p124 = por %p122, %p123
    %p125 = scmp.ne.s32.totalorder %s113, %s114
    %p126 = scmp.eq.s32.totalorder %s18, 1
    %p127 = por %p125, %p126
    %p129 = scmp.ne.s32.totalorder %s114, %s128
    %p130 = scmp.eq.s32.totalorder %s18, 0
    %p131 = por %p129, %p130
    %s133 = sadd.s32 %s132, 1
    %p136 = scmp.eq.s32.totalorder %s12, 1
    %p137 = scmp.ne.s32.totalorder %s132, %s134
    %p138 = scmp.eq.s32.totalorder %s12, 0
    %p139 = por %p137, %p138
    %p140 = scmp.ne.s32.totalorder %s132, %s134
    %p141 = scmp.eq.s32.totalorder %s17, 1
    %p142 = por %p140, %p141
    %p143 = scmp.ne.s32.totalorder %s134, %s135
    %p144 = scmp.eq.s32.totalorder %s17, 0
    %p145 = por %p143, %p144
    %p146 = scmp.ne.s32.totalorder %s134, %s135
    %p147 = scmp.eq.s32.totalorder %s18, 1
    %p148 = por %p146, %p147
    %p150 = scmp.ne.s32.totalorder %s135, %s149
    %p151 = scmp.eq.s32.totalorder %s18, 0
    %p152 = por %p150, %p151
    %s153 = ssub.s32 %s19, %s31
    %p154 = scmp.eq.s32.totalorder %s153, 0
    %s156 = sadd.s32 %s155, 1
    %s157 = scalar_select %p154, %s155, %s156
    %p160 = pneg %p154
    %p161 = scmp.eq.s32.totalorder %s12, 1
    %p162 = por %p160, %p161
    %p163 = scmp.ne.s32.totalorder %s155, %s158
    %p164 = scmp.eq.s32.totalorder %s12, 0
    %p165 = por %p163, %p164
    %p166 = scmp.ne.s32.totalorder %s155, %s158
    %p167 = scmp.eq.s32.totalorder %s17, 1
    %p168 = por %p166, %p167
    %p169 = scmp.ne.s32.totalorder %s158, %s159
    %p170 = scmp.eq.s32.totalorder %s17, 0
    %p171 = por %p169, %p170
    %p172 = scmp.ne.s32.totalorder %s158, %s159
    %p173 = scmp.eq.s32.totalorder %s18, 1
    %p174 = por %p172, %p173
    %p176 = scmp.ne.s32.totalorder %s159, %s175
    %p177 = scmp.eq.s32.totalorder %s18, 0
    %p178 = por %p176, %p177
    %s179 = ssub.s32 %s19, %s31
    %s180 = ssub.s32 %s20, %s27
    %s181 = sor.u32 %s179, %s180
    %p182 = scmp.eq.s32.totalorder %s181, 0
    %s184 = sadd.s32 %s183, 1
    %s185 = scalar_select %p182, %s183, %s184
    %p188 = pneg %p182
    %p189 = scmp.eq.s32.totalorder %s12, 1
    %p190 = por %p188, %p189
    %p191 = scmp.ne.s32.totalorder %s183, %s186
    %p192 = scmp.eq.s32.totalorder %s12, 0
    %p193 = por %p191, %p192
    %p194 = scmp.ne.s32.totalorder %s183, %s186
    %p195 = scmp.eq.s32.totalorder %s17, 1
    %p196 = por %p194, %p195
    %p197 = scmp.ne.s32.totalorder %s186, %s187
    %p198 = scmp.eq.s32.totalorder %s17, 0
    %p199 = por %p197, %p198
    %p200 = scmp.ne.s32.totalorder %s186, %s187
    %p201 = scmp.eq.s32.totalorder %s18, 1
    %p202 = por %p200, %p201
    %p204 = scmp.ne.s32.totalorder %s187, %s203
    %p205 = scmp.eq.s32.totalorder %s18, 0
    %p206 = por %p204, %p205
    %p207 = scmp.le.s32.totalorder 1, %s12
    %p208 = scmp.lt.s32.totalorder %s12, 3
    %p209 = pnand %p207, %p208
    %p210 = pneg %p209
    // Predicated region
    $region9: #{macnn_block_forward.5} parent=5 // pred_check
      _
    $region10: #{macnn_block_forward.5} parent=5 // pred_check_branch
      %212 = sbr.rel (%p209) target = $region12
    $region11: #{macnn_block_forward.5} parent=5 // pred_region
      %s213 = ssub.s32 %s12, 1
      // Predicated region
      $region13: #{macnn_block_forward.5} parent=11 // pred_check
        %p214 = pneg %p103
      $region14: #{macnn_block_forward.5} parent=11 // pred_check_branch
        %216 = sbr.rel (%p214) target = $region16
      $region15: #{macnn_block_forward.5} parent=11 // pred_region
        _
      $region16: #{macnn_block_forward.5} parent=11 // pred_fallthru
        _
      // Predicated region
      $region17: #{macnn_block_forward.5} parent=11 // pred_check
        %p217 = pneg %p124
      $region18: #{macnn_block_forward.5} parent=11 // pred_check_branch
        %219 = sbr.rel (%p217) target = $region20
      $region19: #{macnn_block_forward.5} parent=11 // pred_region
        _
      $region20: #{macnn_block_forward.5} parent=11 // pred_fallthru
        _
      // Predicated region
      $region21: #{macnn_block_forward.5} parent=11 // pred_check
        %p220 = pneg %p145
      $region22: #{macnn_block_forward.5} parent=11 // pred_check_branch
        %222 = sbr.rel (%p220) target = $region24
      $region23: #{macnn_block_forward.5} parent=11 // pred_region
        _
      $region24: #{macnn_block_forward.5} parent=11 // pred_fallthru
        _
    $region12: #{macnn_block_forward.5} parent=5 // pred_fallthru
      _
    %p223 = scmp.lt.s32.totalorder %s12, 2
    // Predicated region
    $region25: #{macnn_block_forward.5} parent=5 // pred_check
      %p224 = pneg %p223
    $region26: #{macnn_block_forward.5} parent=5 // pred_check_branch
      %226 = sbr.rel (%p224) target = $region28
    $region27: #{macnn_block_forward.5} parent=5 // pred_region
      // Predicated region
      $region29: #{macnn_block_forward.5} parent=27 // pred_check
        %p227 = pneg %p46
      $region30: #{macnn_block_forward.5} parent=27 // pred_check_branch
        %229 = sbr.rel (%p227) target = $region32
      $region31: #{macnn_block_forward.5} parent=27 // pred_region
        %p230 = scmp.lt.s32.totalorder %s19, 1
        %s231 = scalar_select %p230, %s19, 1
        %p232 = scmp.lt.s32.totalorder %s20, 1
        %s233 = scalar_select %p232, %s20, 1
        %s234 = smul.addr %s231, 2
        %s235 = sadd.s32 %s233, %s234
        %s236 = smul.addr %s235, 4
        %s237 = scalar_lea.vmem %s0, %s236
      $region32: #{macnn_block_forward.5} parent=27 // pred_fallthru
        _
      // Predicated region
      $region33: #{macnn_block_forward.5} parent=27 // pred_check
        %p238 = pneg %p76
      $region34: #{macnn_block_forward.5} parent=27 // pred_check_branch
        %240 = sbr.rel (%p238) target = $region36
      $region35: #{macnn_block_forward.5} parent=27 // pred_region
        %s241 = sadd.s32 %s20, 1
        %p242 = scmp.lt.s32.totalorder %s19, 1
        %s243 = scalar_select %p242, %s19, 1
        %p244 = scmp.lt.s32.totalorder %s241, 1
        %s245 = scalar_select %p244, %s241, 1
        %s246 = smul.addr %s243, 2
        %s247 = sadd.s32 %s245, %s246
        %s248 = smul.addr %s247, 4
        %s249 = scalar_lea.vmem %s1, %s248
        %s250 = sadd.s32 %s20, 1
      $region36: #{macnn_block_forward.5} parent=27 // pred_fallthru
        _
      // Predicated region
      $region37: #{macnn_block_forward.5} parent=27 // pred_check
        %p251 = pneg %p165
      $region38: #{macnn_block_forward.5} parent=27 // pred_check_branch
        %253 = sbr.rel (%p251) target = $region40
      $region39: #{macnn_block_forward.5} parent=27 // pred_region
        %p254 = scmp.lt.s32.totalorder %s19, 1
        %s255 = scalar_select %p254, %s19, 1
        %s256 = smul.addr %s255, 12
        %s257 = smul.addr %s256, 8
        %s258 = scalar_lea.vmem %s5, %s257
      $region40: #{macnn_block_forward.5} parent=27 // pred_fallthru
        _
    $region28: #{macnn_block_forward.5} parent=5 // pred_fallthru
      _
    %p259 = scmp.le.s32.totalorder 1, %s12
    %p260 = scmp.lt.s32.totalorder %s12, 3
    %p261 = pnand %p259, %p260
    %p262 = pneg %p261
    // Predicated region
    $region41: #{macnn_block_forward.5} parent=5 // pred_check
      _
    $region42: #{macnn_block_forward.5} parent=5 // pred_check_branch
      %264 = sbr.rel (%p261) target = $region44
    $region43: #{macnn_block_forward.5} parent=5 // pred_region
      %s265 = ssub.s32 %s12, 1
      %p266 = scmp.lt.s32.totalorder %s21, 1
      %s267 = scalar_select %p266, %s21, 1
      %p268 = scmp.lt.s32.totalorder %s22, 1
      %s269 = scalar_select %p268, %s22, 1
      %s270 = smul.addr %s267, 2
      %s271 = sadd.s32 %s269, %s270
      %s272 = smul.addr %s271, 4
      %s273 = scalar_lea.vmem %s0, %s272
      %p274 = pneg %p52
      %p275 = pneg %p49
      %s276 = sadd.s32 %s22, 1
      %p277 = scmp.lt.s32.totalorder %s21, 1
      %s278 = scalar_select %p277, %s21, 1
      %p279 = scmp.lt.s32.totalorder %s276, 1
      %s280 = scalar_select %p279, %s276, 1
      %s281 = smul.addr %s278, 2
      %s282 = sadd.s32 %s280, %s281
      %s283 = smul.addr %s282, 4
      %s284 = scalar_lea.vmem %s1, %s283
      %p285 = pneg %p82
      %p286 = pneg %p79
      %p287 = pneg %p103
      %p288 = pneg %p100
      %p289 = pneg %p124
      %p290 = pneg %p121
      %p291 = pneg %p145
      %p292 = pneg %p142
      %p293 = scmp.lt.s32.totalorder %s21, 1
      %s294 = scalar_select %p293, %s21, 1
      %s295 = smul.addr %s294, 12
      %s296 = smul.addr %s295, 8
      %s297 = scalar_lea.vmem %s5, %s296
      %p298 = pneg %p171
      %p299 = pneg %p168
      %p300 = pneg %p199
      %p301 = pneg %p196
      %p302 = scmp.lt.s32.totalorder %s21, 1
      %s303 = scalar_select %p302, %s21, 1
      %p304 = scmp.lt.s32.totalorder %s22, 0
      %s305 = scalar_select %p304, %s22, 0
      %s306 = smul.addr %s303, 12
      %s307 = sadd.s32 %s305, %s306
      %s308 = smul.addr %s307, 8
      %s309 = scalar_lea.vmem %s6, %s308
      %p310 = scmp.lt.s32.totalorder %s21, 1
      %s311 = scalar_select %p310, %s21, 1
      %p312 = scmp.lt.s32.totalorder %s22, 1
      %s313 = scalar_select %p312, %s22, 1
      %s314 = smul.addr %s311, 2
      %s315 = sadd.s32 %s313, %s314
      %s316 = smul.addr %s315, 4
      %s317 = scalar_lea.vmem %s0, %s316
      %s318 = sadd.s32 %s22, 1
      %p319 = scmp.lt.s32.totalorder %s21, 1
      %s320 = scalar_select %p319, %s21, 1
      %p321 = scmp.lt.s32.totalorder %s318, 1
      %s322 = scalar_select %p321, %s318, 1
      %s323 = smul.addr %s320, 2
      %s324 = sadd.s32 %s322, %s323
      %s325 = smul.addr %s324, 4
      %s326 = scalar_lea.vmem %s1, %s325
      %s327 = sadd.s32 %s22, 1
      %p328 = scmp.lt.s32.totalorder %s21, 1
      %s329 = scalar_select %p328, %s21, 1
      %s330 = smul.addr %s329, 12
      %s331 = smul.addr %s330, 8
      %s332 = scalar_lea.vmem %s5, %s331
      %p333 = scmp.lt.s32.totalorder %s21, 1
      %s334 = scalar_select %p333, %s21, 1
      %p335 = scmp.lt.s32.totalorder %s22, 0
      %s336 = scalar_select %p335, %s22, 0
      %s337 = smul.addr %s334, 12
      %s338 = sadd.s32 %s336, %s337
      %s339 = smul.addr %s338, 8
      %s340 = scalar_lea.vmem %s6, %s339
      %v341 = vld [vmem:[%s317] sm:$0xf]
      %v342 = vld [vmem:[%s326] sm:$0xf]
      %343 = vst [vmem:[#allocation2] sm:$0xf] %v341
      %346 = vrot.lane.b32.xlu0 %v341, 127
      %v347 = vpop.permute.xlu0 %346
      %348 = vrot.lane.b32.xlu0 %v342, 127
      %v349 = vpop.permute.xlu0 %348
      %vm350 = vcmask 1039360
      %v351 = vsel %vm350, %v347, %v349
      %353 = vst [vmem:[#allocation2 + $0x4] sm:$0xf] %v351
      %354 = vrot.lane.b32.xlu0 %v341, 126
      %v355 = vpop.permute.xlu0 %354
      %356 = vrot.lane.b32.xlu0 %v342, 126
      %v357 = vpop.permute.xlu0 %356
      %vm358 = vcmask 1031168
      %v359 = vsel %vm358, %v355, %v357
      %361 = vst [vmem:[#allocation2 + $0x8] sm:$0xf] %v359
      %362 = vrot.lane.b32.xlu0 %v341, 125
      %v363 = vpop.permute.xlu0 %362
      %364 = vrot.lane.b32.xlu0 %v342, 125
      %v365 = vpop.permute.xlu0 %364
      %vm366 = vcmask 1022976
      %v367 = vsel %vm366, %v363, %v365
      %369 = vst [vmem:[#allocation2 + $0xc] sm:$0xf] %v367
      %370 = vrot.lane.b32.xlu0 %v341, 124
      %v371 = vpop.permute.xlu0 %370
      %372 = vrot.lane.b32.xlu0 %v342, 124
      %v373 = vpop.permute.xlu0 %372
      %vm374 = vcmask 1014784
      %v375 = vsel %vm374, %v371, %v373
      %377 = vst [vmem:[#allocation2 + $0x10] sm:$0xf] %v375
      %378 = vrot.lane.b32.xlu0 %v341, 123
      %v379 = vpop.permute.xlu0 %378
      %380 = vrot.lane.b32.xlu0 %v342, 123
      %v381 = vpop.permute.xlu0 %380
      %vm382 = vcmask 1006592
      %v383 = vsel %vm382, %v379, %v381
      %385 = vst [vmem:[#allocation2 + $0x14] sm:$0xf] %v383
      %386 = vrot.lane.b32.xlu0 %v341, 122
      %v387 = vpop.permute.xlu0 %386
      %388 = vrot.lane.b32.xlu0 %v342, 122
      %v389 = vpop.permute.xlu0 %388
      %vm390 = vcmask 998400
      %v391 = vsel %vm390, %v387, %v389
      %393 = vst [vmem:[#allocation2 + $0x18] sm:$0xf] %v391
      %394 = vrot.lane.b32.xlu0 %v341, 121
      %v395 = vpop.permute.xlu0 %394
      %396 = vrot.lane.b32.xlu0 %v342, 121
      %v397 = vpop.permute.xlu0 %396
      %vm398 = vcmask 990208
      %v399 = vsel %vm398, %v395, %v397
      %401 = vst [vmem:[#allocation2 + $0x1c] sm:$0xf] %v399
      %402 = vrot.lane.b32.xlu0 %v341, 120
      %v403 = vpop.permute.xlu0 %402
      %404 = vrot.lane.b32.xlu0 %v342, 120
      %v405 = vpop.permute.xlu0 %404
      %vm406 = vcmask 982016
      %v407 = vsel %vm406, %v403, %v405
      %409 = vst [vmem:[#allocation2 + $0x20] sm:$0xf] %v407
      %410 = vrot.lane.b32.xlu0 %v341, 119
      %v411 = vpop.permute.xlu0 %410
      %412 = vrot.lane.b32.xlu0 %v342, 119
      %v413 = vpop.permute.xlu0 %412
      %vm414 = vcmask 973824
      %v415 = vsel %vm414, %v411, %v413
      %417 = vst [vmem:[#allocation2 + $0x24] sm:$0xf] %v415
      %418 = vrot.lane.b32.xlu0 %v341, 118
      %v419 = vpop.permute.xlu0 %418
      %420 = vrot.lane.b32.xlu0 %v342, 118
      %v421 = vpop.permute.xlu0 %420
      %vm422 = vcmask 965632
      %v423 = vsel %vm422, %v419, %v421
      %425 = vst [vmem:[#allocation2 + $0x28] sm:$0xf] %v423
      %426 = vrot.lane.b32.xlu0 %v341, 117
      %v427 = vpop.permute.xlu0 %426
      %428 = vrot.lane.b32.xlu0 %v342, 117
      %v429 = vpop.permute.xlu0 %428
      %vm430 = vcmask 957440
      %v431 = vsel %vm430, %v427, %v429
      %433 = vst [vmem:[#allocation2 + $0x2c] sm:$0xf] %v431
      %v434 = vld [vmem:[%s2] sm:$0xff]
      %v435 = vld [vmem:[%s2 + $0x8] sm:$0xff]
      %v436 = vld [vmem:[%s2 + $0x10] sm:$0xff]
      %v437 = vld [vmem:[%s2 + $0x18] sm:$0xff]
      %v438 = vld [vmem:[%s2 + $0x20] sm:$0xff]
      %v439 = vld [vmem:[%s2 + $0x28] sm:$0xff]
      %v440 = vld [vmem:[%s2 + $0x30] sm:$0xff]
      %v441 = vld [vmem:[%s2 + $0x38] sm:$0xff]
      %v442 = vld [vmem:[%s2 + $0x40] sm:$0xff]
      %v443 = vld [vmem:[%s2 + $0x48] sm:$0xff]
      %v444 = vld [vmem:[%s2 + $0x50] sm:$0xff]
      %v445 = vld [vmem:[%s2 + $0x58] sm:$0xff]
      %v446 = vld [vmem:[#allocation2] sm:$0xff]
      %v447 = vld [vmem:[#allocation2 + $0x8] sm:$0xff]
      %v448 = vld [vmem:[#allocation2 + $0x10] sm:$0xff]
      %v449 = vld [vmem:[#allocation2 + $0x18] sm:$0xff]
      %v450 = vld [vmem:[#allocation2 + $0x20] sm:$0xff]
      %v451 = vld [vmem:[#allocation2 + $0x28] sm:$0xff]
      %vm452 = vcmask 392192
      %v454 = vsel %vm452, %v434, 0
      %v457 = vsel %vm452, %v435, 0
      %v460 = vsel %vm452, %v436, 0
      %v463 = vsel %vm452, %v437, 0
      %v466 = vsel %vm452, %v438, 0
      %v469 = vsel %vm452, %v439, 0
      %v472 = vsel %vm452, %v440, 0
      %v475 = vsel %vm452, %v441, 0
      %v478 = vsel %vm452, %v442, 0
      %v481 = vsel %vm452, %v443, 0
      %v484 = vsel %vm452, %v444, 0
      %v487 = vsel %vm452, %v445, 0
      %489 = vmatprep.subr.mxu0 0.0
      %490 = vmatpush1.msra.mxu0 %v446
      %491 = vmatprep.subr.mxu0 0.0
      %492 = vmatpush1.msra.mxu0 %v447
      %493 = vmatprep.subr.mxu0 0.0
      %494 = vmatpush1.msra.mxu0 %v448
      %495 = vmatprep.subr.mxu0 0.0
      %496 = vmatpush1.msra.mxu0 %v449
      %497 = vmatprep.subr.mxu0 0.0
      %498 = vmatpush1.msra.mxu0 %v450
      %499 = vmatprep.subr.mxu0 0.0
      %500 = vmatpush1.msra.mxu0 %v451
      %501 = vmatprep.subr.mxu0 0.0
      %502 = vmatpush1.msra.mxu0 0.0
      %503 = vmatprep.subr.mxu0 0.0
      %504 = vmatpush1.msra.mxu0 0.0
      %505 = vmatprep.subr.mxu0 0.0
      %506 = vmatpush1.msra.mxu0 0.0
      %507 = vmatprep.subr.mxu0 0.0
      %508 = vmatpush1.msra.mxu0 0.0
      %509 = vmatprep.subr.mxu0 0.0
      %510 = vmatpush1.msra.mxu0 0.0
      %511 = vmatprep.subr.mxu0 0.0
      %512 = vmatpush1.msra.mxu0 0.0
      %513 = vmatprep.subr.mxu0 0.0
      %514 = vmatpush1.msra.mxu0 0.0
      %515 = vmatprep.subr.mxu0 0.0
      %516 = vmatpush1.msra.mxu0 0.0
      %517 = vmatprep.subr.mxu0 0.0
      %518 = vmatpush1.msra.mxu0 0.0
      %519 = vmatprep.subr.mxu0 0.0
      %520 = vmatpush1.msra.mxu0 0.0
      %521 = vmatprep.subr.mxu0 0.0
      %522 = vmatpush1.msra.mxu0 0.0
      %523 = vmatprep.subr.mxu0 0.0
      %524 = vmatpush1.msra.mxu0 0.0
      %525 = vmatprep.subr.mxu0 0.0
      %526 = vmatpush1.msra.mxu0 0.0
      %527 = vmatprep.subr.mxu0 0.0
      %528 = vmatpush1.msra.mxu0 0.0
      %529 = vmatprep.subr.mxu0 0.0
      %530 = vmatpush1.msra.mxu0 0.0
      %531 = vmatprep.subr.mxu0 0.0
      %532 = vmatpush1.msra.mxu0 0.0
      %533 = vmatprep.subr.mxu0 0.0
      %534 = vmatpush1.msra.mxu0 0.0
      %535 = vmatprep.subr.mxu0 0.0
      %536 = vmatpush1.msra.mxu0 0.0
      %537 = vmatprep.subr.mxu0 0.0
      %538 = vmatpush1.msra.mxu0 0.0
      %539 = vmatprep.subr.mxu0 0.0
      %540 = vmatpush1.msra.mxu0 0.0
      %541 = vmatprep.subr.mxu0 0.0
      %542 = vmatpush1.msra.mxu0 0.0
      %543 = vmatprep.subr.mxu0 0.0
      %544 = vmatpush1.msra.mxu0 0.0
      %545 = vmatprep.subr.mxu0 0.0
      %546 = vmatpush1.msra.mxu0 0.0
      %547 = vmatprep.subr.mxu0 0.0
      %548 = vmatpush1.msra.mxu0 0.0
      %549 = vmatprep.subr.mxu0 0.0
      %550 = vmatpush1.msra.mxu0 0.0
      %551 = vmatprep.subr.mxu0 0.0
      %552 = vmatpush1.msra.mxu0 0.0
      %553 = vmatprep.mubr.f32.mxu0 0.0
      %554 = vmatmul.mubr.f32.gmra.mrb[0].mxu0 %v454
      %v555 = vpop.f32.mrb[0].mxu0
      %v556 = vadd.f32 0.0, %v555
      %v557 = vpop.f32.mrb[0].mxu0
      %558 = vmatprep.mubr.f32.mxu0 0.0
      %559 = vmatmul.mubr.f32.gmra.mrb[0].mxu0 %v457
      %v560 = vpop.f32.mrb[0].mxu0
      %v561 = vadd.f32 0.0, %v560
      %v562 = vpop.f32.mrb[0].mxu0
      %563 = vmatprep.mubr.f32.mxu0 0.0
      %564 = vmatmul.mubr.f32.gmra.mrb[0].mxu0 %v460
      %v565 = vpop.f32.mrb[0].mxu0
      %v566 = vadd.f32 0.0, %v565
      %v567 = vpop.f32.mrb[0].mxu0
      %568 = vmatprep.mubr.f32.mxu0 0.0
      %569 = vmatmul.mubr.f32.gmra.mrb[0].mxu0 %v463
      %v570 = vpop.f32.mrb[0].mxu0
      %v571 = vadd.f32 0.0, %v570
      %v572 = vpop.f32.mrb[0].mxu0
      %573 = vmatprep.mubr.f32.mxu0 0.0
      %574 = vmatmul.mubr.f32.gmra.mrb[0].mxu0 %v466
      %v575 = vpop.f32.mrb[0].mxu0
      %v576 = vadd.f32 0.0, %v575
      %v577 = vpop.f32.mrb[0].mxu0
      %578 = vmatprep.mubr.f32.mxu0 0.0
      %579 = vmatmul.mubr.f32.gmra.mrb[0].mxu0 %v469
      %v580 = vpop.f32.mrb[0].mxu0
      %v581 = vadd.f32 0.0, %v580
      %v582 = vpop.f32.mrb[0].mxu0
      %583 = vmatprep.mubr.f32.mxu0 0.0
      %584 = vmatmul.mubr.f32.gmra.mrb[0].mxu0 %v472
      %v585 = vpop.f32.mrb[0].mxu0
      %v586 = vadd.f32 0.0, %v585
      %v587 = vpop.f32.mrb[0].mxu0
      %588 = vmatprep.mubr.f32.mxu0 0.0
      %589 = vmatmul.mubr.f32.gmra.mrb[0].mxu0 %v475
      %v590 = vpop.f32.mrb[0].mxu0
      %v591 = vadd.f32 0.0, %v590
      %v592 = vpop.f32.mrb[0].mxu0
      %593 = vmatprep.mubr.f32.mxu0 0.0
      %594 = vmatmul.mubr.f32.gmra.mrb[0].mxu0 %v478
      %v595 = vpop.f32.mrb[0].mxu0
      %v596 = vadd.f32 0.0, %v595
      %v597 = vpop.f32.mrb[0].mxu0
      %598 = vmatprep.mubr.f32.mxu0 0.0
      %599 = vmatmul.mubr.f32.gmra.mrb[0].mxu0 %v481
      %v600 = vpop.f32.mrb[0].mxu0
      %v601 = vadd.f32 0.0, %v600
      %v602 = vpop.f32.mrb[0].mxu0
      %603 = vmatprep.mubr.f32.mxu0 0.0
      %604 = vmatmul.mubr.f32.gmra.mrb[0].mxu0 %v484
      %v605 = vpop.f32.mrb[0].mxu0
      %v606 = vadd.f32 0.0, %v605
      %v607 = vpop.f32.mrb[0].mxu0
      %608 = vmatprep.mubr.f32.mxu0 0.0
      %609 = vmatmul.mubr.f32.gmra.mrb[0].mxu0 %v487
      %v610 = vpop.f32.mrb[0].mxu0
      %v611 = vadd.f32 0.0, %v610
      %v612 = vpop.f32.mrb[0].mxu0
      %613 = vdwg.mxu0
      %v614 = vld [vmem:[%s3] sm:$0xff]
      %v615 = vld [vmem:[%s3 + $0x8] sm:$0xff]
      %v616 = vld [vmem:[%s3 + $0x10] sm:$0xff]
      %v617 = vld [vmem:[%s3 + $0x18] sm:$0xff]
      %v618 = vld [vmem:[%s3 + $0x20] sm:$0xff]
      %v619 = vld [vmem:[%s3 + $0x28] sm:$0xff]
      %v620 = vld [vmem:[%s3 + $0x30] sm:$0xff]
      %v621 = vld [vmem:[%s3 + $0x38] sm:$0xff]
      %v622 = vld [vmem:[%s3 + $0x40] sm:$0xff]
      %v623 = vld [vmem:[%s3 + $0x48] sm:$0xff]
      %v624 = vld [vmem:[%s3 + $0x50] sm:$0xff]
      %v625 = vld [vmem:[%s3 + $0x58] sm:$0xff]
      %627 = vset.pattern.permute.xlu0 0
      %628 = vperm.xlu0 %627, %v614
      %v629 = vpop.permute.xlu0 %628
      %632 = vset.pattern.permute.xlu0 0
      %633 = vperm.xlu0 %632, %v615
      %v634 = vpop.permute.xlu0 %633
      %637 = vset.pattern.permute.xlu0 0
      %638 = vperm.xlu0 %637, %v616
      %v639 = vpop.permute.xlu0 %638
      %642 = vset.pattern.permute.xlu0 0
      %643 = vperm.xlu0 %642, %v617
      %v644 = vpop.permute.xlu0 %643
      %647 = vset.pattern.permute.xlu0 0
      %648 = vperm.xlu0 %647, %v618
      %v649 = vpop.permute.xlu0 %648
      %652 = vset.pattern.permute.xlu0 0
      %653 = vperm.xlu0 %652, %v619
      %v654 = vpop.permute.xlu0 %653
      %657 = vset.pattern.permute.xlu0 0
      %658 = vperm.xlu0 %657, %v620
      %v659 = vpop.permute.xlu0 %658
      %662 = vset.pattern.permute.xlu0 0
      %663 = vperm.xlu0 %662, %v621
      %v664 = vpop.permute.xlu0 %663
      %667 = vset.pattern.permute.xlu0 0
      %668 = vperm.xlu0 %667, %v622
      %v669 = vpop.permute.xlu0 %668
      %672 = vset.pattern.permute.xlu0 0
      %673 = vperm.xlu0 %672, %v623
      %v674 = vpop.permute.xlu0 %673
      %677 = vset.pattern.permute.xlu0 0
      %678 = vperm.xlu0 %677, %v624
      %v679 = vpop.permute.xlu0 %678
      %682 = vset.pattern.permute.xlu0 0
      %683 = vperm.xlu0 %682, %v625
      %v684 = vpop.permute.xlu0 %683
      %v686 = vmul.f32 %v556, %v629
      %v687 = vmul.f32 %v561, %v634
      %v688 = vmul.f32 %v566, %v639
      %v689 = vmul.f32 %v571, %v644
      %v690 = vmul.f32 %v576, %v649
      %v691 = vmul.f32 %v581, %v654
      %v692 = vmul.f32 %v586, %v659
      %v693 = vmul.f32 %v591, %v664
      %v694 = vmul.f32 %v596, %v669
      %v695 = vmul.f32 %v601, %v674
      %v696 = vmul.f32 %v606, %v679
      %v697 = vmul.f32 %v611, %v684
      %v698 = vld [vmem:[%s4] sm:$0xff]
      %v699 = vld [vmem:[%s4 + $0x8] sm:$0xff]
      %v700 = vld [vmem:[%s4 + $0x10] sm:$0xff]
      %v701 = vld [vmem:[%s4 + $0x18] sm:$0xff]
      %v702 = vld [vmem:[%s4 + $0x20] sm:$0xff]
      %v703 = vld [vmem:[%s4 + $0x28] sm:$0xff]
      %v704 = vld [vmem:[%s4 + $0x30] sm:$0xff]
      %v705 = vld [vmem:[%s4 + $0x38] sm:$0xff]
      %v706 = vld [vmem:[%s4 + $0x40] sm:$0xff]
      %v707 = vld [vmem:[%s4 + $0x48] sm:$0xff]
      %v708 = vld [vmem:[%s4 + $0x50] sm:$0xff]
      %v709 = vld [vmem:[%s4 + $0x58] sm:$0xff]
      %711 = vset.pattern.permute.xlu0 0
      %712 = vperm.xlu0 %711, %v698
      %v713 = vpop.permute.xlu0 %712
      %716 = vset.pattern.permute.xlu0 0
      %717 = vperm.xlu0 %716, %v699
      %v718 = vpop.permute.xlu0 %717
      %721 = vset.pattern.permute.xlu0 0
      %722 = vperm.xlu0 %721, %v700
      %v723 = vpop.permute.xlu0 %722
      %726 = vset.pattern.permute.xlu0 0
      %727 = vperm.xlu0 %726, %v701
      %v728 = vpop.permute.xlu0 %727
      %731 = vset.pattern.permute.xlu0 0
      %732 = vperm.xlu0 %731, %v702
      %v733 = vpop.permute.xlu0 %732
      %736 = vset.pattern.permute.xlu0 0
      %737 = vperm.xlu0 %736, %v703
      %v738 = vpop.permute.xlu0 %737
      %741 = vset.pattern.permute.xlu0 0
      %742 = vperm.xlu0 %741, %v704
      %v743 = vpop.permute.xlu0 %742
      %746 = vset.pattern.permute.xlu0 0
      %747 = vperm.xlu0 %746, %v705
      %v748 = vpop.permute.xlu0 %747
      %751 = vset.pattern.permute.xlu0 0
      %752 = vperm.xlu0 %751, %v706
      %v753 = vpop.permute.xlu0 %752
      %756 = vset.pattern.permute.xlu0 0
      %757 = vperm.xlu0 %756, %v707
      %v758 = vpop.permute.xlu0 %757
      %761 = vset.pattern.permute.xlu0 0
      %762 = vperm.xlu0 %761, %v708
      %v763 = vpop.permute.xlu0 %762
      %766 = vset.pattern.permute.xlu0 0
      %767 = vperm.xlu0 %766, %v709
      %v768 = vpop.permute.xlu0 %767
      %v770 = vadd.f32 %v686, %v713
      %v771 = vadd.f32 %v687, %v718
      %v772 = vadd.f32 %v688, %v723
      %v773 = vadd.f32 %v689, %v728
      %v774 = vadd.f32 %v690, %v733
      %v775 = vadd.f32 %v691, %v738
      %v776 = vadd.f32 %v692, %v743
      %v777 = vadd.f32 %v693, %v748
      %v778 = vadd.f32 %v694, %v753
      %v779 = vadd.f32 %v695, %v758
      %v780 = vadd.f32 %v696, %v763
      %v781 = vadd.f32 %v697, %v768
      %v782 = vmax.f32 %v770, 0.0
      %v783 = vmax.f32 %v771, 0.0
      %v784 = vmax.f32 %v772, 0.0
      %v785 = vmax.f32 %v773, 0.0
      %v786 = vmax.f32 %v774, 0.0
      %v787 = vmax.f32 %v775, 0.0
      %v788 = vmax.f32 %v776, 0.0
      %v789 = vmax.f32 %v777, 0.0
      %v790 = vmax.f32 %v778, 0.0
      %v791 = vmax.f32 %v779, 0.0
      %v792 = vmax.f32 %v780, 0.0
      %v793 = vmax.f32 %v781, 0.0
      %v794 = vld [vmem:[%s332] sm:$0xff]
      %v795 = vld [vmem:[%s332 + $0x8] sm:$0xff]
      %v796 = vld [vmem:[%s332 + $0x10] sm:$0xff]
      %v797 = vld [vmem:[%s332 + $0x18] sm:$0xff]
      %v798 = vld [vmem:[%s332 + $0x20] sm:$0xff]
      %v799 = vld [vmem:[%s332 + $0x28] sm:$0xff]
      %v800 = vld [vmem:[%s332 + $0x30] sm:$0xff]
      %v801 = vld [vmem:[%s332 + $0x38] sm:$0xff]
      %v802 = vld [vmem:[%s332 + $0x40] sm:$0xff]
      %v803 = vld [vmem:[%s332 + $0x48] sm:$0xff]
      %v804 = vld [vmem:[%s332 + $0x50] sm:$0xff]
      %v805 = vld [vmem:[%s332 + $0x58] sm:$0xff]
      %807 = vset.pattern.permute.xlu0 0
      %808 = vperm.xlu0 %807, %v794
      %v809 = vpop.permute.xlu0 %808
      %812 = vset.pattern.permute.xlu0 0
      %813 = vperm.xlu0 %812, %v795
      %v814 = vpop.permute.xlu0 %813
      %817 = vset.pattern.permute.xlu0 0
      %818 = vperm.xlu0 %817, %v796
      %v819 = vpop.permute.xlu0 %818
      %822 = vset.pattern.permute.xlu0 0
      %823 = vperm.xlu0 %822, %v797
      %v824 = vpop.permute.xlu0 %823
      %827 = vset.pattern.permute.xlu0 0
      %828 = vperm.xlu0 %827, %v798
      %v829 = vpop.permute.xlu0 %828
      %832 = vset.pattern.permute.xlu0 0
      %833 = vperm.xlu0 %832, %v799
      %v834 = vpop.permute.xlu0 %833
      %837 = vset.pattern.permute.xlu0 0
      %838 = vperm.xlu0 %837, %v800
      %v839 = vpop.permute.xlu0 %838
      %842 = vset.pattern.permute.xlu0 0
      %843 = vperm.xlu0 %842, %v801
      %v844 = vpop.permute.xlu0 %843
      %847 = vset.pattern.permute.xlu0 0
      %848 = vperm.xlu0 %847, %v802
      %v849 = vpop.permute.xlu0 %848
      %852 = vset.pattern.permute.xlu0 0
      %853 = vperm.xlu0 %852, %v803
      %v854 = vpop.permute.xlu0 %853
      %857 = vset.pattern.permute.xlu0 0
      %858 = vperm.xlu0 %857, %v804
      %v859 = vpop.permute.xlu0 %858
      %862 = vset.pattern.permute.xlu0 0
      %863 = vperm.xlu0 %862, %v805
      %v864 = vpop.permute.xlu0 %863
      %v866 = vmul.f32 %v782, %v809
      %v867 = vmul.f32 %v783, %v814
      %v868 = vmul.f32 %v784, %v819
      %v869 = vmul.f32 %v785, %v824
      %v870 = vmul.f32 %v786, %v829
      %v871 = vmul.f32 %v787, %v834
      %v872 = vmul.f32 %v788, %v839
      %v873 = vmul.f32 %v789, %v844
      %v874 = vmul.f32 %v790, %v849
      %v875 = vmul.f32 %v791, %v854
      %v876 = vmul.f32 %v792, %v859
      %v877 = vmul.f32 %v793, %v864
      %878 = vst [vmem:[%s340] sm:$0xff] %v866
      %879 = vst [vmem:[%s340 + $0x8] sm:$0xff] %v867
      %880 = vst [vmem:[%s340 + $0x10] sm:$0xff] %v868
      %881 = vst [vmem:[%s340 + $0x18] sm:$0xff] %v869
      %882 = vst [vmem:[%s340 + $0x20] sm:$0xff] %v870
      %883 = vst [vmem:[%s340 + $0x28] sm:$0xff] %v871
      %884 = vst [vmem:[%s340 + $0x30] sm:$0xff] %v872
      %885 = vst [vmem:[%s340 + $0x38] sm:$0xff] %v873
      %886 = vst [vmem:[%s340 + $0x40] sm:$0xff] %v874
      %887 = vst [vmem:[%s340 + $0x48] sm:$0xff] %v875
      %888 = vst [vmem:[%s340 + $0x50] sm:$0xff] %v876
      %889 = vst [vmem:[%s340 + $0x58] sm:$0xff] %v877
      %p890 = scmp.lt.s32.totalorder %s21, 1
      %s891 = scalar_select %p890, %s21, 1
      %p892 = scmp.lt.s32.totalorder %s22, 0
      %s893 = scalar_select %p892, %s22, 0
      %s894 = smul.addr %s891, 12
      %s895 = sadd.s32 %s893, %s894
      %s896 = smul.addr %s895, 8
      %s897 = scalar_lea.vmem %s6, %s896
      // Predicated region
      $region45: #{macnn_block_forward.5} parent=43 // pred_check
        %p898 = pneg %p196
      $region46: #{macnn_block_forward.5} parent=43 // pred_check_branch
        %900 = sbr.rel (%p898) target = $region48
      $region47: #{macnn_block_forward.5} parent=43 // pred_region
        _
      $region48: #{macnn_block_forward.5} parent=43 // pred_fallthru
        _
    $region44: #{macnn_block_forward.5} parent=5 // pred_fallthru
      _
    %p901 = scmp.le.s32.totalorder 2, %s12
    // Predicated region
    $region49: #{macnn_block_forward.5} parent=5 // pred_check
      %p902 = pneg %p901
    $region50: #{macnn_block_forward.5} parent=5 // pred_check_branch
      %904 = sbr.rel (%p902) target = $region52
    $region51: #{macnn_block_forward.5} parent=5 // pred_region
      %s905 = ssub.s32 %s12, 2
      // Predicated region
      $region53: #{macnn_block_forward.5} parent=51 // pred_check
        %p906 = pneg %p202
      $region54: #{macnn_block_forward.5} parent=51 // pred_check_branch
        %908 = sbr.rel (%p906) target = $region56
      $region55: #{macnn_block_forward.5} parent=51 // pred_region
        %p909 = scmp.lt.s32.totalorder %s23, 1
        %s910 = scalar_select %p909, %s23, 1
        %p911 = scmp.lt.s32.totalorder %s24, 0
        %s912 = scalar_select %p911, %s24, 0
        %s913 = smul.addr %s910, 12
        %s914 = sadd.s32 %s912, %s913
        %s915 = smul.addr %s914, 8
        %s916 = scalar_lea.vmem %s6, %s915
      $region56: #{macnn_block_forward.5} parent=51 // pred_fallthru
        _
    $region52: #{macnn_block_forward.5} parent=5 // pred_fallthru
      _
  $region6: #{macnn_block_forward.5} parent=0 // loop_footer
    %s16 = sadd.s32 1, %s12
  $region7: #{macnn_block_forward.5} parent=0 // loop_footer_branch
    %11 = sbr.rel target = $region3
  $region8: #{macnn_block_forward.5} parent=0 // loop_exit
    _

// kernel: macnn_block_forward.4
$region0: #{macnn_block_forward.4}
  #allocation0 [shape = 'u32[]', space=smem, size = 0x4, offset = 0x4, fixed_abs, tag = 'smem constant byte address 0x4 - core index']
  #allocation1 [shape = 'u32[144,128]{1,0:T(1,128)}', space=vmem, size = 0x12000, scoped, tag = 'internal scratch']
  #allocation2 [shape = 'f32[48,128]{1,0:T(8,128)}', space=vmem, size = 0x6000, scoped, tag = 'scratch operand']
  %s0 = inlined_call_operand.vmem [shape: f32[2,4,256], index: 0, kind: input, shape index: {}, may-alias: {0,1}]
  %s1 = inlined_call_operand.vmem [shape: f32[2,4,256], index: 1, kind: input, shape index: {}, may-alias: {0,1}]
  %s2 = inlined_call_operand.vmem [shape: f32[96,48], index: 2, kind: input, shape index: {}]
  %s3 = inlined_call_operand.vmem [shape: f32[96,1], index: 3, kind: input, shape index: {}]
  %s4 = inlined_call_operand.vmem [shape: f32[96,1], index: 4, kind: input, shape index: {}]
  %s5 = inlined_call_operand.vmem [shape: f32[2,96,1], index: 5, kind: output, shape index: {}]
  %s6 = sld [smem:[#allocation0]]
  $region57: #{macnn_block_forward.4} parent=0
    _
  %s8 = ssub.s32 1, %s6
  %s9 = scalar_select 0, %s8, %s6
  loop: start=0, step=1, limit=4
  $region2: #{macnn_block_forward.4} parent=0 // loop_pre_header
    _
  $region3: #{macnn_block_forward.4} parent=0 // loop_header
    %s11 = sphi 0, %s15
    %p12 = scmp.ge.s32.totalorder %s11, 4
    %s18 = sphi 0, %s30
    %s19 = sphi 0, %s26
    %s20 = sphi 0, %s18
    %s21 = sphi 0, %s19
    %s22 = sphi 0, %s20
    %s23 = sphi 0, %s21
    %s35 = sphi 0, %s37
    %s38 = sphi 0, %s35
    %s39 = sphi 0, %s38
    %s55 = sphi 0, %s39
    %s65 = sphi 0, %s67
    %s68 = sphi 0, %s65
    %s69 = sphi 0, %s68
    %s85 = sphi 0, %s69
    %s89 = sphi 0, %s89
    %s91 = sphi 0, %s89
    %s92 = sphi 0, %s91
    %s106 = sphi 0, %s92
    %s110 = sphi 0, %s110
    %s112 = sphi 0, %s110
    %s113 = sphi 0, %s112
    %s127 = sphi 0, %s113
    %s131 = sphi 0, %s131
    %s133 = sphi 0, %s131
    %s134 = sphi 0, %s133
    %s148 = sphi 0, %s134
    %s154 = sphi 0, %s156
    %s157 = sphi 0, %s154
    %s158 = sphi 0, %s157
    %s174 = sphi 0, %s158
  $region4: #{macnn_block_forward.4} parent=0 // loop_header_branch
    %14 = sbr.rel (%p12) target = $region8
  $region5: #{macnn_block_forward.4} parent=0 // loop_body
    %s16 = ssub.s32 %s11, 1
    %s17 = ssub.s32 %s11, 2
    %s24 = sadd.s32 1, %s19
    %p25 = scmp.ge.s32.totalorder %s24, 1
    %s26 = scalar_select %p25, 0, %s24
    %s27 = sadd.s32 1, %s18
    %s28 = scalar_select %p25, %s27, %s18
    %p29 = scmp.ge.s32.totalorder %s28, 2
    %s30 = scalar_select %p29, 0, %s28
    %s31 = ssub.s32 %s18, %s30
    %s32 = ssub.s32 %s19, %s26
    %s33 = sor.u32 %s31, %s32
    %p34 = scmp.eq.s32.totalorder %s33, 0
    %s36 = sadd.s32 %s35, 1
    %s37 = scalar_select %p34, %s35, %s36
    %p40 = pneg %p34
    %p41 = scmp.eq.s32.totalorder %s11, 1
    %p42 = por %p40, %p41
    %p43 = scmp.ne.s32.totalorder %s35, %s38
    %p44 = scmp.eq.s32.totalorder %s11, 0
    %p45 = por %p43, %p44
    %p46 = scmp.ne.s32.totalorder %s35, %s38
    %p47 = scmp.eq.s32.totalorder %s16, 1
    %p48 = por %p46, %p47
    %p49 = scmp.ne.s32.totalorder %s38, %s39
    %p50 = scmp.eq.s32.totalorder %s16, 0
    %p51 = por %p49, %p50
    %p52 = scmp.ne.s32.totalorder %s38, %s39
    %p53 = scmp.eq.s32.totalorder %s17, 1
    %p54 = por %p52, %p53
    %p56 = scmp.ne.s32.totalorder %s39, %s55
    %p57 = scmp.eq.s32.totalorder %s17, 0
    %p58 = por %p56, %p57
    %s59 = sadd.s32 %s19, 1
    %s60 = sadd.s32 %s26, 1
    %s61 = ssub.s32 %s18, %s30
    %s62 = ssub.s32 %s59, %s60
    %s63 = sor.u32 %s61, %s62
    %p64 = scmp.eq.s32.totalorder %s63, 0
    %s66 = sadd.s32 %s65, 1
    %s67 = scalar_select %p64, %s65, %s66
    %p70 = pneg %p64
    %p71 = scmp.eq.s32.totalorder %s11, 1
    %p72 = por %p70, %p71
    %p73 = scmp.ne.s32.totalorder %s65, %s68
    %p74 = scmp.eq.s32.totalorder %s11, 0
    %p75 = por %p73, %p74
    %p76 = scmp.ne.s32.totalorder %s65, %s68
    %p77 = scmp.eq.s32.totalorder %s16, 1
    %p78 = por %p76, %p77
    %p79 = scmp.ne.s32.totalorder %s68, %s69
    %p80 = scmp.eq.s32.totalorder %s16, 0
    %p81 = por %p79, %p80
    %p82 = scmp.ne.s32.totalorder %s68, %s69
    %p83 = scmp.eq.s32.totalorder %s17, 1
    %p84 = por %p82, %p83
    %p86 = scmp.ne.s32.totalorder %s69, %s85
    %p87 = scmp.eq.s32.totalorder %s17, 0
    %p88 = por %p86, %p87
    %s90 = sadd.s32 %s89, 1
    %p93 = scmp.eq.s32.totalorder %s11, 1
    %p94 = scmp.ne.s32.totalorder %s89, %s91
    %p95 = scmp.eq.s32.totalorder %s11, 0
    %p96 = por %p94, %p95
    %p97 = scmp.ne.s32.totalorder %s89, %s91
    %p98 = scmp.eq.s32.totalorder %s16, 1
    %p99 = por %p97, %p98
    %p100 = scmp.ne.s32.totalorder %s91, %s92
    %p101 = scmp.eq.s32.totalorder %s16, 0
    %p102 = por %p100, %p101
    %p103 = scmp.ne.s32.totalorder %s91, %s92
    %p104 = scmp.eq.s32.totalorder %s17, 1
    %p105 = por %p103, %p104
    %p107 = scmp.ne.s32.totalorder %s92, %s106
    %p108 = scmp.eq.s32.totalorder %s17, 0
    %p109 = por %p107, %p108
    %s111 = sadd.s32 %s110, 1
    %p114 = scmp.eq.s32.totalorder %s11, 1
    %p115 = scmp.ne.s32.totalorder %s110, %s112
    %p116 = scmp.eq.s32.totalorder %s11, 0
    %p117 = por %p115, %p116
    %p118 = scmp.ne.s32.totalorder %s110, %s112
    %p119 = scmp.eq.s32.totalorder %s16, 1
    %p120 = por %p118, %p119
    %p121 = scmp.ne.s32.totalorder %s112, %s113
    %p122 = scmp.eq.s32.totalorder %s16, 0
    %p123 = por %p121, %p122
    %p124 = scmp.ne.s32.totalorder %s112, %s113
    %p125 = scmp.eq.s32.totalorder %s17, 1
    %p126 = por %p124, %p125
    %p128 = scmp.ne.s32.totalorder %s113, %s127
    %p129 = scmp.eq.s32.totalorder %s17, 0
    %p130 = por %p128, %p129
    %s132 = sadd.s32 %s131, 1
    %p135 = scmp.eq.s32.totalorder %s11, 1
    %p136 = scmp.ne.s32.totalorder %s131, %s133
    %p137 = scmp.eq.s32.totalorder %s11, 0
    %p138 = por %p136, %p137
    %p139 = scmp.ne.s32.totalorder %s131, %s133
    %p140 = scmp.eq.s32.totalorder %s16, 1
    %p141 = por %p139, %p140
    %p142 = scmp.ne.s32.totalorder %s133, %s134
    %p143 = scmp.eq.s32.totalorder %s16, 0
    %p144 = por %p142, %p143
    %p145 = scmp.ne.s32.totalorder %s133, %s134
    %p146 = scmp.eq.s32.totalorder %s17, 1
    %p147 = por %p145, %p146
    %p149 = scmp.ne.s32.totalorder %s134, %s148
    %p150 = scmp.eq.s32.totalorder %s17, 0
    %p151 = por %p149, %p150
    %s152 = ssub.s32 %s18, %s30
    %p153 = scmp.eq.s32.totalorder %s152, 0
    %s155 = sadd.s32 %s154, 1
    %s156 = scalar_select %p153, %s154, %s155
    %p159 = pneg %p153
    %p160 = scmp.eq.s32.totalorder %s11, 1
    %p161 = por %p159, %p160
    %p162 = scmp.ne.s32.totalorder %s154, %s157
    %p163 = scmp.eq.s32.totalorder %s11, 0
    %p164 = por %p162, %p163
    %p165 = scmp.ne.s32.totalorder %s154, %s157
    %p166 = scmp.eq.s32.totalorder %s16, 1
    %p167 = por %p165, %p166
    %p168 = scmp.ne.s32.totalorder %s157, %s158
    %p169 = scmp.eq.s32.totalorder %s16, 0
    %p170 = por %p168, %p169
    %p171 = scmp.ne.s32.totalorder %s157, %s158
    %p172 = scmp.eq.s32.totalorder %s17, 1
    %p173 = por %p171, %p172
    %p175 = scmp.ne.s32.totalorder %s158, %s174
    %p176 = scmp.eq.s32.totalorder %s17, 0
    %p177 = por %p175, %p176
    %p178 = scmp.le.s32.totalorder 1, %s11
    %p179 = scmp.lt.s32.totalorder %s11, 3
    %p180 = pnand %p178, %p179
    %p181 = pneg %p180
    // Predicated region
    $region9: #{macnn_block_forward.4} parent=5 // pred_check
      _
    $region10: #{macnn_block_forward.4} parent=5 // pred_check_branch
      %183 = sbr.rel (%p180) target = $region12
    $region11: #{macnn_block_forward.4} parent=5 // pred_region
      %s184 = ssub.s32 %s11, 1
      // Predicated region
      $region13: #{macnn_block_forward.4} parent=11 // pred_check
        %p185 = pneg %p102
      $region14: #{macnn_block_forward.4} parent=11 // pred_check_branch
        %187 = sbr.rel (%p185) target = $region16
      $region15: #{macnn_block_forward.4} parent=11 // pred_region
        _
      $region16: #{macnn_block_forward.4} parent=11 // pred_fallthru
        _
      // Predicated region
      $region17: #{macnn_block_forward.4} parent=11 // pred_check
        %p188 = pneg %p123
      $region18: #{macnn_block_forward.4} parent=11 // pred_check_branch
        %190 = sbr.rel (%p188) target = $region20
      $region19: #{macnn_block_forward.4} parent=11 // pred_region
        _
      $region20: #{macnn_block_forward.4} parent=11 // pred_fallthru
        _
      // Predicated region
      $region21: #{macnn_block_forward.4} parent=11 // pred_check
        %p191 = pneg %p144
      $region22: #{macnn_block_forward.4} parent=11 // pred_check_branch
        %193 = sbr.rel (%p191) target = $region24
      $region23: #{macnn_block_forward.4} parent=11 // pred_region
        _
      $region24: #{macnn_block_forward.4} parent=11 // pred_fallthru
        _
    $region12: #{macnn_block_forward.4} parent=5 // pred_fallthru
      _
    %p194 = scmp.lt.s32.totalorder %s11, 2
    // Predicated region
    $region25: #{macnn_block_forward.4} parent=5 // pred_check
      %p195 = pneg %p194
    $region26: #{macnn_block_forward.4} parent=5 // pred_check_branch
      %197 = sbr.rel (%p195) target = $region28
    $region27: #{macnn_block_forward.4} parent=5 // pred_region
      // Predicated region
      $region29: #{macnn_block_forward.4} parent=27 // pred_check
        %p198 = pneg %p45
      $region30: #{macnn_block_forward.4} parent=27 // pred_check_branch
        %200 = sbr.rel (%p198) target = $region32
      $region31: #{macnn_block_forward.4} parent=27 // pred_region
        %p201 = scmp.lt.s32.totalorder %s18, 1
        %s202 = scalar_select %p201, %s18, 1
        %p203 = scmp.lt.s32.totalorder %s19, 1
        %s204 = scalar_select %p203, %s19, 1
        %s205 = smul.addr %s202, 2
        %s206 = sadd.s32 %s204, %s205
        %s207 = smul.addr %s206, 4
        %s208 = scalar_lea.vmem %s0, %s207
      $region32: #{macnn_block_forward.4} parent=27 // pred_fallthru
        _
      // Predicated region
      $region33: #{macnn_block_forward.4} parent=27 // pred_check
        %p209 = pneg %p75
      $region34: #{macnn_block_forward.4} parent=27 // pred_check_branch
        %211 = sbr.rel (%p209) target = $region36
      $region35: #{macnn_block_forward.4} parent=27 // pred_region
        %s212 = sadd.s32 %s19, 1
        %p213 = scmp.lt.s32.totalorder %s18, 1
        %s214 = scalar_select %p213, %s18, 1
        %p215 = scmp.lt.s32.totalorder %s212, 1
        %s216 = scalar_select %p215, %s212, 1
        %s217 = smul.addr %s214, 2
        %s218 = sadd.s32 %s216, %s217
        %s219 = smul.addr %s218, 4
        %s220 = scalar_lea.vmem %s1, %s219
        %s221 = sadd.s32 %s19, 1
      $region36: #{macnn_block_forward.4} parent=27 // pred_fallthru
        _
    $region28: #{macnn_block_forward.4} parent=5 // pred_fallthru
      _
    %p222 = scmp.le.s32.totalorder 1, %s11
    %p223 = scmp.lt.s32.totalorder %s11, 3
    %p224 = pnand %p222, %p223
    %p225 = pneg %p224
    // Predicated region
    $region37: #{macnn_block_forward.4} parent=5 // pred_check
      _
    $region38: #{macnn_block_forward.4} parent=5 // pred_check_branch
      %227 = sbr.rel (%p224) target = $region40
    $region39: #{macnn_block_forward.4} parent=5 // pred_region
      %s228 = ssub.s32 %s11, 1
      %p229 = scmp.lt.s32.totalorder %s20, 1
      %s230 = scalar_select %p229, %s20, 1
      %p231 = scmp.lt.s32.totalorder %s21, 1
      %s232 = scalar_select %p231, %s21, 1
      %s233 = smul.addr %s230, 2
      %s234 = sadd.s32 %s232, %s233
      %s235 = smul.addr %s234, 4
      %s236 = scalar_lea.vmem %s0, %s235
      %p237 = pneg %p51
      %p238 = pneg %p48
      %s239 = sadd.s32 %s21, 1
      %p240 = scmp.lt.s32.totalorder %s20, 1
      %s241 = scalar_select %p240, %s20, 1
      %p242 = scmp.lt.s32.totalorder %s239, 1
      %s243 = scalar_select %p242, %s239, 1
      %s244 = smul.addr %s241, 2
      %s245 = sadd.s32 %s243, %s244
      %s246 = smul.addr %s245, 4
      %s247 = scalar_lea.vmem %s1, %s246
      %p248 = pneg %p81
      %p249 = pneg %p78
      %p250 = pneg %p102
      %p251 = pneg %p99
      %p252 = pneg %p123
      %p253 = pneg %p120
      %p254 = pneg %p144
      %p255 = pneg %p141
      %p256 = pneg %p170
      %p257 = pneg %p167
      %p258 = scmp.lt.s32.totalorder %s20, 1
      %s259 = scalar_select %p258, %s20, 1
      %s260 = smul.addr %s259, 12
      %s261 = smul.addr %s260, 8
      %s262 = scalar_lea.vmem %s5, %s261
      %p263 = scmp.lt.s32.totalorder %s20, 1
      %s264 = scalar_select %p263, %s20, 1
      %p265 = scmp.lt.s32.totalorder %s21, 1
      %s266 = scalar_select %p265, %s21, 1
      %s267 = smul.addr %s264, 2
      %s268 = sadd.s32 %s266, %s267
      %s269 = smul.addr %s268, 4
      %s270 = scalar_lea.vmem %s0, %s269
      %s271 = sadd.s32 %s21, 1
      %p272 = scmp.lt.s32.totalorder %s20, 1
      %s273 = scalar_select %p272, %s20, 1
      %p274 = scmp.lt.s32.totalorder %s271, 1
      %s275 = scalar_select %p274, %s271, 1
      %s276 = smul.addr %s273, 2
      %s277 = sadd.s32 %s275, %s276
      %s278 = smul.addr %s277, 4
      %s279 = scalar_lea.vmem %s1, %s278
      %s280 = sadd.s32 %s21, 1
      %p281 = scmp.lt.s32.totalorder %s20, 1
      %s282 = scalar_select %p281, %s20, 1
      %s283 = smul.addr %s282, 12
      %s284 = smul.addr %s283, 8
      %s285 = scalar_lea.vmem %s5, %s284
      %p286 = scmp.eq.s32.totalorder %s21, 0
      // Predicated region
      $region41: #{macnn_block_forward.4} parent=39 // pred_check
        %p287 = pneg %p286
      $region42: #{macnn_block_forward.4} parent=39 // pred_check_branch
        %289 = sbr.rel (%p287) target = $region44
      $region43: #{macnn_block_forward.4} parent=39 // pred_region
        %vm290 = vcmask 7168
        %291 = vst.msk [vmem:[%s285] sm:$0xff] %vm290, 0.0
        %292 = vst.msk [vmem:[%s285 + $0x8] sm:$0xff] %vm290, 0.0
        %293 = vst.msk [vmem:[%s285 + $0x10] sm:$0xff] %vm290, 0.0
        %294 = vst.msk [vmem:[%s285 + $0x18] sm:$0xff] %vm290, 0.0
        %295 = vst.msk [vmem:[%s285 + $0x20] sm:$0xff] %vm290, 0.0
        %296 = vst.msk [vmem:[%s285 + $0x28] sm:$0xff] %vm290, 0.0
        %297 = vst.msk [vmem:[%s285 + $0x30] sm:$0xff] %vm290, 0.0
        %298 = vst.msk [vmem:[%s285 + $0x38] sm:$0xff] %vm290, 0.0
        %299 = vst.msk [vmem:[%s285 + $0x40] sm:$0xff] %vm290, 0.0
        %300 = vst.msk [vmem:[%s285 + $0x48] sm:$0xff] %vm290, 0.0
        %301 = vst.msk [vmem:[%s285 + $0x50] sm:$0xff] %vm290, 0.0
        %302 = vst.msk [vmem:[%s285 + $0x58] sm:$0xff] %vm290, 0.0
      $region44: #{macnn_block_forward.4} parent=39 // pred_fallthru
        _
      %v303 = vld [vmem:[%s270] sm:$0xf]
      %v304 = vld [vmem:[%s279] sm:$0xf]
      %305 = vst [vmem:[#allocation2] sm:$0xf] %v303
      %308 = vrot.lane.b32.xlu0 %v303, 127
      %v309 = vpop.permute.xlu0 %308
      %310 = vrot.lane.b32.xlu0 %v304, 127
      %v311 = vpop.permute.xlu0 %310
      %vm312 = vcmask 1039360
      %v313 = vsel %vm312, %v309, %v311
      %315 = vst [vmem:[#allocation2 + $0x4] sm:$0xf] %v313
      %316 = vrot.lane.b32.xlu0 %v303, 126
      %v317 = vpop.permute.xlu0 %316
      %318 = vrot.lane.b32.xlu0 %v304, 126
      %v319 = vpop.permute.xlu0 %318
      %vm320 = vcmask 1031168
      %v321 = vsel %vm320, %v317, %v319
      %323 = vst [vmem:[#allocation2 + $0x8] sm:$0xf] %v321
      %324 = vrot.lane.b32.xlu0 %v303, 125
      %v325 = vpop.permute.xlu0 %324
      %326 = vrot.lane.b32.xlu0 %v304, 125
      %v327 = vpop.permute.xlu0 %326
      %vm328 = vcmask 1022976
      %v329 = vsel %vm328, %v325, %v327
      %331 = vst [vmem:[#allocation2 + $0xc] sm:$0xf] %v329
      %332 = vrot.lane.b32.xlu0 %v303, 124
      %v333 = vpop.permute.xlu0 %332
      %334 = vrot.lane.b32.xlu0 %v304, 124
      %v335 = vpop.permute.xlu0 %334
      %vm336 = vcmask 1014784
      %v337 = vsel %vm336, %v333, %v335
      %339 = vst [vmem:[#allocation2 + $0x10] sm:$0xf] %v337
      %340 = vrot.lane.b32.xlu0 %v303, 123
      %v341 = vpop.permute.xlu0 %340
      %342 = vrot.lane.b32.xlu0 %v304, 123
      %v343 = vpop.permute.xlu0 %342
      %vm344 = vcmask 1006592
      %v345 = vsel %vm344, %v341, %v343
      %347 = vst [vmem:[#allocation2 + $0x14] sm:$0xf] %v345
      %348 = vrot.lane.b32.xlu0 %v303, 122
      %v349 = vpop.permute.xlu0 %348
      %350 = vrot.lane.b32.xlu0 %v304, 122
      %v351 = vpop.permute.xlu0 %350
      %vm352 = vcmask 998400
      %v353 = vsel %vm352, %v349, %v351
      %355 = vst [vmem:[#allocation2 + $0x18] sm:$0xf] %v353
      %356 = vrot.lane.b32.xlu0 %v303, 121
      %v357 = vpop.permute.xlu0 %356
      %358 = vrot.lane.b32.xlu0 %v304, 121
      %v359 = vpop.permute.xlu0 %358
      %vm360 = vcmask 990208
      %v361 = vsel %vm360, %v357, %v359
      %363 = vst [vmem:[#allocation2 + $0x1c] sm:$0xf] %v361
      %364 = vrot.lane.b32.xlu0 %v303, 120
      %v365 = vpop.permute.xlu0 %364
      %366 = vrot.lane.b32.xlu0 %v304, 120
      %v367 = vpop.permute.xlu0 %366
      %vm368 = vcmask 982016
      %v369 = vsel %vm368, %v365, %v367
      %371 = vst [vmem:[#allocation2 + $0x20] sm:$0xf] %v369
      %372 = vrot.lane.b32.xlu0 %v303, 119
      %v373 = vpop.permute.xlu0 %372
      %374 = vrot.lane.b32.xlu0 %v304, 119
      %v375 = vpop.permute.xlu0 %374
      %vm376 = vcmask 973824
      %v377 = vsel %vm376, %v373, %v375
      %379 = vst [vmem:[#allocation2 + $0x24] sm:$0xf] %v377
      %380 = vrot.lane.b32.xlu0 %v303, 118
      %v381 = vpop.permute.xlu0 %380
      %382 = vrot.lane.b32.xlu0 %v304, 118
      %v383 = vpop.permute.xlu0 %382
      %vm384 = vcmask 965632
      %v385 = vsel %vm384, %v381, %v383
      %387 = vst [vmem:[#allocation2 + $0x28] sm:$0xf] %v385
      %388 = vrot.lane.b32.xlu0 %v303, 117
      %v389 = vpop.permute.xlu0 %388
      %390 = vrot.lane.b32.xlu0 %v304, 117
      %v391 = vpop.permute.xlu0 %390
      %vm392 = vcmask 957440
      %v393 = vsel %vm392, %v389, %v391
      %395 = vst [vmem:[#allocation2 + $0x2c] sm:$0xf] %v393
      %v396 = vld [vmem:[%s2] sm:$0xff]
      %v397 = vld [vmem:[%s2 + $0x8] sm:$0xff]
      %v398 = vld [vmem:[%s2 + $0x10] sm:$0xff]
      %v399 = vld [vmem:[%s2 + $0x18] sm:$0xff]
      %v400 = vld [vmem:[%s2 + $0x20] sm:$0xff]
      %v401 = vld [vmem:[%s2 + $0x28] sm:$0xff]
      %v402 = vld [vmem:[%s2 + $0x30] sm:$0xff]
      %v403 = vld [vmem:[%s2 + $0x38] sm:$0xff]
      %v404 = vld [vmem:[%s2 + $0x40] sm:$0xff]
      %v405 = vld [vmem:[%s2 + $0x48] sm:$0xff]
      %v406 = vld [vmem:[%s2 + $0x50] sm:$0xff]
      %v407 = vld [vmem:[%s2 + $0x58] sm:$0xff]
      %v408 = vld [vmem:[#allocation2] sm:$0xff]
      %v409 = vld [vmem:[#allocation2 + $0x8] sm:$0xff]
      %v410 = vld [vmem:[#allocation2 + $0x10] sm:$0xff]
      %v411 = vld [vmem:[#allocation2 + $0x18] sm:$0xff]
      %v412 = vld [vmem:[#allocation2 + $0x20] sm:$0xff]
      %v413 = vld [vmem:[#allocation2 + $0x28] sm:$0xff]
      %vm414 = vcmask 392192
      %v416 = vsel %vm414, %v396, 0
      %v419 = vsel %vm414, %v397, 0
      %v422 = vsel %vm414, %v398, 0
      %v425 = vsel %vm414, %v399, 0
      %v428 = vsel %vm414, %v400, 0
      %v431 = vsel %vm414, %v401, 0
      %v434 = vsel %vm414, %v402, 0
      %v437 = vsel %vm414, %v403, 0
      %v440 = vsel %vm414, %v404, 0
      %v443 = vsel %vm414, %v405, 0
      %v446 = vsel %vm414, %v406, 0
      %v449 = vsel %vm414, %v407, 0
      %451 = vmatprep.subr.mxu0 0.0
      %452 = vmatpush1.msra.mxu0 %v408
      %453 = vmatprep.subr.mxu0 0.0
      %454 = vmatpush1.msra.mxu0 %v409
      %455 = vmatprep.subr.mxu0 0.0
      %456 = vmatpush1.msra.mxu0 %v410
      %457 = vmatprep.subr.mxu0 0.0
      %458 = vmatpush1.msra.mxu0 %v411
      %459 = vmatprep.subr.mxu0 0.0
      %460 = vmatpush1.msra.mxu0 %v412
      %461 = vmatprep.subr.mxu0 0.0
      %462 = vmatpush1.msra.mxu0 %v413
      %463 = vmatprep.subr.mxu0 0.0
      %464 = vmatpush1.msra.mxu0 0.0
      %465 = vmatprep.subr.mxu0 0.0
      %466 = vmatpush1.msra.mxu0 0.0
      %467 = vmatprep.subr.mxu0 0.0
      %468 = vmatpush1.msra.mxu0 0.0
      %469 = vmatprep.subr.mxu0 0.0
      %470 = vmatpush1.msra.mxu0 0.0
      %471 = vmatprep.subr.mxu0 0.0
      %472 = vmatpush1.msra.mxu0 0.0
      %473 = vmatprep.subr.mxu0 0.0
      %474 = vmatpush1.msra.mxu0 0.0
      %475 = vmatprep.subr.mxu0 0.0
      %476 = vmatpush1.msra.mxu0 0.0
      %477 = vmatprep.subr.mxu0 0.0
      %478 = vmatpush1.msra.mxu0 0.0
      %479 = vmatprep.subr.mxu0 0.0
      %480 = vmatpush1.msra.mxu0 0.0
      %481 = vmatprep.subr.mxu0 0.0
      %482 = vmatpush1.msra.mxu0 0.0
      %483 = vmatprep.subr.mxu0 0.0
      %484 = vmatpush1.msra.mxu0 0.0
      %485 = vmatprep.subr.mxu0 0.0
      %486 = vmatpush1.msra.mxu0 0.0
      %487 = vmatprep.subr.mxu0 0.0
      %488 = vmatpush1.msra.mxu0 0.0
      %489 = vmatprep.subr.mxu0 0.0
      %490 = vmatpush1.msra.mxu0 0.0
      %491 = vmatprep.subr.mxu0 0.0
      %492 = vmatpush1.msra.mxu0 0.0
      %493 = vmatprep.subr.mxu0 0.0
      %494 = vmatpush1.msra.mxu0 0.0
      %495 = vmatprep.subr.mxu0 0.0
      %496 = vmatpush1.msra.mxu0 0.0
      %497 = vmatprep.subr.mxu0 0.0
      %498 = vmatpush1.msra.mxu0 0.0
      %499 = vmatprep.subr.mxu0 0.0
      %500 = vmatpush1.msra.mxu0 0.0
      %501 = vmatprep.subr.mxu0 0.0
      %502 = vmatpush1.msra.mxu0 0.0
      %503 = vmatprep.subr.mxu0 0.0
      %504 = vmatpush1.msra.mxu0 0.0
      %505 = vmatprep.subr.mxu0 0.0
      %506 = vmatpush1.msra.mxu0 0.0
      %507 = vmatprep.subr.mxu0 0.0
      %508 = vmatpush1.msra.mxu0 0.0
      %509 = vmatprep.subr.mxu0 0.0
      %510 = vmatpush1.msra.mxu0 0.0
      %511 = vmatprep.subr.mxu0 0.0
      %512 = vmatpush1.msra.mxu0 0.0
      %513 = vmatprep.subr.mxu0 0.0
      %514 = vmatpush1.msra.mxu0 0.0
      %515 = vmatprep.mubr.f32.mxu0 0.0
      %516 = vmatmul.mubr.f32.gmra.mrb[0].mxu0 %v416
      %v517 = vpop.f32.mrb[0].mxu0
      %v518 = vadd.f32 0.0, %v517
      %v519 = vpop.f32.mrb[0].mxu0
      %520 = vmatprep.mubr.f32.mxu0 0.0
      %521 = vmatmul.mubr.f32.gmra.mrb[0].mxu0 %v419
      %v522 = vpop.f32.mrb[0].mxu0
      %v523 = vadd.f32 0.0, %v522
      %v524 = vpop.f32.mrb[0].mxu0
      %525 = vmatprep.mubr.f32.mxu0 0.0
      %526 = vmatmul.mubr.f32.gmra.mrb[0].mxu0 %v422
      %v527 = vpop.f32.mrb[0].mxu0
      %v528 = vadd.f32 0.0, %v527
      %v529 = vpop.f32.mrb[0].mxu0
      %530 = vmatprep.mubr.f32.mxu0 0.0
      %531 = vmatmul.mubr.f32.gmra.mrb[0].mxu0 %v425
      %v532 = vpop.f32.mrb[0].mxu0
      %v533 = vadd.f32 0.0, %v532
      %v534 = vpop.f32.mrb[0].mxu0
      %535 = vmatprep.mubr.f32.mxu0 0.0
      %536 = vmatmul.mubr.f32.gmra.mrb[0].mxu0 %v428
      %v537 = vpop.f32.mrb[0].mxu0
      %v538 = vadd.f32 0.0, %v537
      %v539 = vpop.f32.mrb[0].mxu0
      %540 = vmatprep.mubr.f32.mxu0 0.0
      %541 = vmatmul.mubr.f32.gmra.mrb[0].mxu0 %v431
      %v542 = vpop.f32.mrb[0].mxu0
      %v543 = vadd.f32 0.0, %v542
      %v544 = vpop.f32.mrb[0].mxu0
      %545 = vmatprep.mubr.f32.mxu0 0.0
      %546 = vmatmul.mubr.f32.gmra.mrb[0].mxu0 %v434
      %v547 = vpop.f32.mrb[0].mxu0
      %v548 = vadd.f32 0.0, %v547
      %v549 = vpop.f32.mrb[0].mxu0
      %550 = vmatprep.mubr.f32.mxu0 0.0
      %551 = vmatmul.mubr.f32.gmra.mrb[0].mxu0 %v437
      %v552 = vpop.f32.mrb[0].mxu0
      %v553 = vadd.f32 0.0, %v552
      %v554 = vpop.f32.mrb[0].mxu0
      %555 = vmatprep.mubr.f32.mxu0 0.0
      %556 = vmatmul.mubr.f32.gmra.mrb[0].mxu0 %v440
      %v557 = vpop.f32.mrb[0].mxu0
      %v558 = vadd.f32 0.0, %v557
      %v559 = vpop.f32.mrb[0].mxu0
      %560 = vmatprep.mubr.f32.mxu0 0.0
      %561 = vmatmul.mubr.f32.gmra.mrb[0].mxu0 %v443
      %v562 = vpop.f32.mrb[0].mxu0
      %v563 = vadd.f32 0.0, %v562
      %v564 = vpop.f32.mrb[0].mxu0
      %565 = vmatprep.mubr.f32.mxu0 0.0
      %566 = vmatmul.mubr.f32.gmra.mrb[0].mxu0 %v446
      %v567 = vpop.f32.mrb[0].mxu0
      %v568 = vadd.f32 0.0, %v567
      %v569 = vpop.f32.mrb[0].mxu0
      %570 = vmatprep.mubr.f32.mxu0 0.0
      %571 = vmatmul.mubr.f32.gmra.mrb[0].mxu0 %v449
      %v572 = vpop.f32.mrb[0].mxu0
      %v573 = vadd.f32 0.0, %v572
      %v574 = vpop.f32.mrb[0].mxu0
      %575 = vdwg.mxu0
      %v576 = vld [vmem:[%s3] sm:$0xff]
      %v577 = vld [vmem:[%s3 + $0x8] sm:$0xff]
      %v578 = vld [vmem:[%s3 + $0x10] sm:$0xff]
      %v579 = vld [vmem:[%s3 + $0x18] sm:$0xff]
      %v580 = vld [vmem:[%s3 + $0x20] sm:$0xff]
      %v581 = vld [vmem:[%s3 + $0x28] sm:$0xff]
      %v582 = vld [vmem:[%s3 + $0x30] sm:$0xff]
      %v583 = vld [vmem:[%s3 + $0x38] sm:$0xff]
      %v584 = vld [vmem:[%s3 + $0x40] sm:$0xff]
      %v585 = vld [vmem:[%s3 + $0x48] sm:$0xff]
      %v586 = vld [vmem:[%s3 + $0x50] sm:$0xff]
      %v587 = vld [vmem:[%s3 + $0x58] sm:$0xff]
      %589 = vset.pattern.permute.xlu0 0
      %590 = vperm.xlu0 %589, %v576
      %v591 = vpop.permute.xlu0 %590
      %594 = vset.pattern.permute.xlu0 0
      %595 = vperm.xlu0 %594, %v577
      %v596 = vpop.permute.xlu0 %595
      %599 = vset.pattern.permute.xlu0 0
      %600 = vperm.xlu0 %599, %v578
      %v601 = vpop.permute.xlu0 %600
      %604 = vset.pattern.permute.xlu0 0
      %605 = vperm.xlu0 %604, %v579
      %v606 = vpop.permute.xlu0 %605
      %609 = vset.pattern.permute.xlu0 0
      %610 = vperm.xlu0 %609, %v580
      %v611 = vpop.permute.xlu0 %610
      %614 = vset.pattern.permute.xlu0 0
      %615 = vperm.xlu0 %614, %v581
      %v616 = vpop.permute.xlu0 %615
      %619 = vset.pattern.permute.xlu0 0
      %620 = vperm.xlu0 %619, %v582
      %v621 = vpop.permute.xlu0 %620
      %624 = vset.pattern.permute.xlu0 0
      %625 = vperm.xlu0 %624, %v583
      %v626 = vpop.permute.xlu0 %625
      %629 = vset.pattern.permute.xlu0 0
      %630 = vperm.xlu0 %629, %v584
      %v631 = vpop.permute.xlu0 %630
      %634 = vset.pattern.permute.xlu0 0
      %635 = vperm.xlu0 %634, %v585
      %v636 = vpop.permute.xlu0 %635
      %639 = vset.pattern.permute.xlu0 0
      %640 = vperm.xlu0 %639, %v586
      %v641 = vpop.permute.xlu0 %640
      %644 = vset.pattern.permute.xlu0 0
      %645 = vperm.xlu0 %644, %v587
      %v646 = vpop.permute.xlu0 %645
      %v648 = vmul.f32 %v518, %v591
      %v649 = vmul.f32 %v523, %v596
      %v650 = vmul.f32 %v528, %v601
      %v651 = vmul.f32 %v533, %v606
      %v652 = vmul.f32 %v538, %v611
      %v653 = vmul.f32 %v543, %v616
      %v654 = vmul.f32 %v548, %v621
      %v655 = vmul.f32 %v553, %v626
      %v656 = vmul.f32 %v558, %v631
      %v657 = vmul.f32 %v563, %v636
      %v658 = vmul.f32 %v568, %v641
      %v659 = vmul.f32 %v573, %v646
      %v660 = vld [vmem:[%s4] sm:$0xff]
      %v661 = vld [vmem:[%s4 + $0x8] sm:$0xff]
      %v662 = vld [vmem:[%s4 + $0x10] sm:$0xff]
      %v663 = vld [vmem:[%s4 + $0x18] sm:$0xff]
      %v664 = vld [vmem:[%s4 + $0x20] sm:$0xff]
      %v665 = vld [vmem:[%s4 + $0x28] sm:$0xff]
      %v666 = vld [vmem:[%s4 + $0x30] sm:$0xff]
      %v667 = vld [vmem:[%s4 + $0x38] sm:$0xff]
      %v668 = vld [vmem:[%s4 + $0x40] sm:$0xff]
      %v669 = vld [vmem:[%s4 + $0x48] sm:$0xff]
      %v670 = vld [vmem:[%s4 + $0x50] sm:$0xff]
      %v671 = vld [vmem:[%s4 + $0x58] sm:$0xff]
      %673 = vset.pattern.permute.xlu0 0
      %674 = vperm.xlu0 %673, %v660
      %v675 = vpop.permute.xlu0 %674
      %678 = vset.pattern.permute.xlu0 0
      %679 = vperm.xlu0 %678, %v661
      %v680 = vpop.permute.xlu0 %679
      %683 = vset.pattern.permute.xlu0 0
      %684 = vperm.xlu0 %683, %v662
      %v685 = vpop.permute.xlu0 %684
      %688 = vset.pattern.permute.xlu0 0
      %689 = vperm.xlu0 %688, %v663
      %v690 = vpop.permute.xlu0 %689
      %693 = vset.pattern.permute.xlu0 0
      %694 = vperm.xlu0 %693, %v664
      %v695 = vpop.permute.xlu0 %694
      %698 = vset.pattern.permute.xlu0 0
      %699 = vperm.xlu0 %698, %v665
      %v700 = vpop.permute.xlu0 %699
      %703 = vset.pattern.permute.xlu0 0
      %704 = vperm.xlu0 %703, %v666
      %v705 = vpop.permute.xlu0 %704
      %708 = vset.pattern.permute.xlu0 0
      %709 = vperm.xlu0 %708, %v667
      %v710 = vpop.permute.xlu0 %709
      %713 = vset.pattern.permute.xlu0 0
      %714 = vperm.xlu0 %713, %v668
      %v715 = vpop.permute.xlu0 %714
      %718 = vset.pattern.permute.xlu0 0
      %719 = vperm.xlu0 %718, %v669
      %v720 = vpop.permute.xlu0 %719
      %723 = vset.pattern.permute.xlu0 0
      %724 = vperm.xlu0 %723, %v670
      %v725 = vpop.permute.xlu0 %724
      %728 = vset.pattern.permute.xlu0 0
      %729 = vperm.xlu0 %728, %v671
      %v730 = vpop.permute.xlu0 %729
      %v732 = vadd.f32 %v648, %v675
      %v733 = vadd.f32 %v649, %v680
      %v734 = vadd.f32 %v650, %v685
      %v735 = vadd.f32 %v651, %v690
      %v736 = vadd.f32 %v652, %v695
      %v737 = vadd.f32 %v653, %v700
      %v738 = vadd.f32 %v654, %v705
      %v739 = vadd.f32 %v655, %v710
      %v740 = vadd.f32 %v656, %v715
      %v741 = vadd.f32 %v657, %v720
      %v742 = vadd.f32 %v658, %v725
      %v743 = vadd.f32 %v659, %v730
      %v744 = vmax.f32 %v732, 0.0
      %v745 = vmax.f32 %v733, 0.0
      %v746 = vmax.f32 %v734, 0.0
      %v747 = vmax.f32 %v735, 0.0
      %v748 = vmax.f32 %v736, 0.0
      %v749 = vmax.f32 %v737, 0.0
      %v750 = vmax.f32 %v738, 0.0
      %v751 = vmax.f32 %v739, 0.0
      %v752 = vmax.f32 %v740, 0.0
      %v753 = vmax.f32 %v741, 0.0
      %v754 = vmax.f32 %v742, 0.0
      %v755 = vmax.f32 %v743, 0.0
      %v756 = vlaneseq
      %v757 = vand.u32 %v756, 127
      %s758 = smul.u32 %s21, 128
      %v759 = vstv %s758
      %v760 = vadd.s32 %v757, %v759
      %vm761 = vcmp.lt.s32.totalorder %v760, 16
      %v762 = vsel %vm761, 1, 0
      %vm763 = vcmp.eq.s32.totalorder %v762, 1
      %v764 = vsel %vm763, %v744, 0.0
      %v765 = vsel %vm763, %v745, 0.0
      %v766 = vsel %vm763, %v746, 0.0
      %v767 = vsel %vm763, %v747, 0.0
      %v768 = vsel %vm763, %v748, 0.0
      %v769 = vsel %vm763, %v749, 0.0
      %v770 = vsel %vm763, %v750, 0.0
      %v771 = vsel %vm763, %v751, 0.0
      %v772 = vsel %vm763, %v752, 0.0
      %v773 = vsel %vm763, %v753, 0.0
      %v774 = vsel %vm763, %v754, 0.0
      %v775 = vsel %vm763, %v755, 0.0
      %v776 = vld [vmem:[%s285] sm:$0xff]
      %v777 = vld [vmem:[%s285 + $0x8] sm:$0xff]
      %v778 = vld [vmem:[%s285 + $0x10] sm:$0xff]
      %v779 = vld [vmem:[%s285 + $0x18] sm:$0xff]
      %v780 = vld [vmem:[%s285 + $0x20] sm:$0xff]
      %v781 = vld [vmem:[%s285 + $0x28] sm:$0xff]
      %v782 = vld [vmem:[%s285 + $0x30] sm:$0xff]
      %v783 = vld [vmem:[%s285 + $0x38] sm:$0xff]
      %v784 = vld [vmem:[%s285 + $0x40] sm:$0xff]
      %v785 = vld [vmem:[%s285 + $0x48] sm:$0xff]
      %v786 = vld [vmem:[%s285 + $0x50] sm:$0xff]
      %v787 = vld [vmem:[%s285 + $0x58] sm:$0xff]
      %788 = vadd.xlane.f32.xlu0 %v764
      %v789 = vpop.xlane.xlu0 %788
      %790 = vadd.xlane.f32.xlu0 %v765
      %v791 = vpop.xlane.xlu0 %790
      %792 = vadd.xlane.f32.xlu0 %v766
      %v793 = vpop.xlane.xlu0 %792
      %794 = vadd.xlane.f32.xlu0 %v767
      %v795 = vpop.xlane.xlu0 %794
      %796 = vadd.xlane.f32.xlu0 %v768
      %v797 = vpop.xlane.xlu0 %796
      %798 = vadd.xlane.f32.xlu0 %v769
      %v799 = vpop.xlane.xlu0 %798
      %800 = vadd.xlane.f32.xlu0 %v770
      %v801 = vpop.xlane.xlu0 %800
      %802 = vadd.xlane.f32.xlu0 %v771
      %v803 = vpop.xlane.xlu0 %802
      %804 = vadd.xlane.f32.xlu0 %v772
      %v805 = vpop.xlane.xlu0 %804
      %806 = vadd.xlane.f32.xlu0 %v773
      %v807 = vpop.xlane.xlu0 %806
      %808 = vadd.xlane.f32.xlu0 %v774
      %v809 = vpop.xlane.xlu0 %808
      %810 = vadd.xlane.f32.xlu0 %v775
      %v811 = vpop.xlane.xlu0 %810
      %v812 = vadd.f32 %v776, %v789
      %v813 = vadd.f32 %v777, %v791
      %v814 = vadd.f32 %v778, %v793
      %v815 = vadd.f32 %v779, %v795
      %v816 = vadd.f32 %v780, %v797
      %v817 = vadd.f32 %v781, %v799
      %v818 = vadd.f32 %v782, %v801
      %v819 = vadd.f32 %v783, %v803
      %v820 = vadd.f32 %v784, %v805
      %v821 = vadd.f32 %v785, %v807
      %v822 = vadd.f32 %v786, %v809
      %v823 = vadd.f32 %v787, %v811
      %vm824 = vcmask 7168
      %825 = vst.msk [vmem:[%s285] sm:$0xff] %vm824, %v812
      %826 = vst.msk [vmem:[%s285 + $0x8] sm:$0xff] %vm824, %v813
      %827 = vst.msk [vmem:[%s285 + $0x10] sm:$0xff] %vm824, %v814
      %828 = vst.msk [vmem:[%s285 + $0x18] sm:$0xff] %vm824, %v815
      %829 = vst.msk [vmem:[%s285 + $0x20] sm:$0xff] %vm824, %v816
      %830 = vst.msk [vmem:[%s285 + $0x28] sm:$0xff] %vm824, %v817
      %831 = vst.msk [vmem:[%s285 + $0x30] sm:$0xff] %vm824, %v818
      %832 = vst.msk [vmem:[%s285 + $0x38] sm:$0xff] %vm824, %v819
      %833 = vst.msk [vmem:[%s285 + $0x40] sm:$0xff] %vm824, %v820
      %834 = vst.msk [vmem:[%s285 + $0x48] sm:$0xff] %vm824, %v821
      %835 = vst.msk [vmem:[%s285 + $0x50] sm:$0xff] %vm824, %v822
      %836 = vst.msk [vmem:[%s285 + $0x58] sm:$0xff] %vm824, %v823
      %p837 = scmp.lt.s32.totalorder %s20, 1
      %s838 = scalar_select %p837, %s20, 1
      %s839 = smul.addr %s838, 12
      %s840 = smul.addr %s839, 8
      %s841 = scalar_lea.vmem %s5, %s840
      // Predicated region
      $region45: #{macnn_block_forward.4} parent=39 // pred_check
        %p842 = pneg %p167
      $region46: #{macnn_block_forward.4} parent=39 // pred_check_branch
        %844 = sbr.rel (%p842) target = $region48
      $region47: #{macnn_block_forward.4} parent=39 // pred_region
        _
      $region48: #{macnn_block_forward.4} parent=39 // pred_fallthru
        _
    $region40: #{macnn_block_forward.4} parent=5 // pred_fallthru
      _
    %p845 = scmp.le.s32.totalorder 2, %s11
    // Predicated region
    $region49: #{macnn_block_forward.4} parent=5 // pred_check
      %p846 = pneg %p845
    $region50: #{macnn_block_forward.4} parent=5 // pred_check_branch
      %848 = sbr.rel (%p846) target = $region52
    $region51: #{macnn_block_forward.4} parent=5 // pred_region
      %s849 = ssub.s32 %s11, 2
      // Predicated region
      $region53: #{macnn_block_forward.4} parent=51 // pred_check
        %p850 = pneg %p173
      $region54: #{macnn_block_forward.4} parent=51 // pred_check_branch
        %852 = sbr.rel (%p850) target = $region56
      $region55: #{macnn_block_forward.4} parent=51 // pred_region
        %p853 = scmp.lt.s32.totalorder %s22, 1
        %s854 = scalar_select %p853, %s22, 1
        %s855 = smul.addr %s854, 12
        %s856 = smul.addr %s855, 8
        %s857 = scalar_lea.vmem %s5, %s856
      $region56: #{macnn_block_forward.4} parent=51 // pred_fallthru
        _
    $region52: #{macnn_block_forward.4} parent=5 // pred_fallthru
      _
  $region6: #{macnn_block_forward.4} parent=0 // loop_footer
    %s15 = sadd.s32 1, %s11
  $region7: #{macnn_block_forward.4} parent=0 // loop_footer_branch
    %10 = sbr.rel target = $region3
  $region8: #{macnn_block_forward.4} parent=0 // loop_exit
    _

</llo_original>
